<compile_context>
chip_gen: v7x
topology: tpu7x:2x2x1
jax: 0.10.0
libtpu: 0.0.40
codegen_flags: <defaults>
</compile_context>

<pallas_src>
import functools

import jax
import jax.numpy as jnp
from jax.experimental import pallas as pl
from jax.experimental.pallas import tpu as pltpu


# Row layout of the packed (16, 128) "vecs" operand.
ROW_BN1_S, ROW_BN1_H = 0, 1
ROW_BN2_S, ROW_BN2_H = 2, 3
ROW_BN3_S, ROW_BN3_H = 4, 5
ROW_BX = 6          # GCN conv_x bias
ROW_BML = 7         # merged mu|logvar GCN bias
ROW_BXD = 8         # decoder GCN bias
ROW_BN4_S, ROW_BN4_H = 9, 10
ROW_B5 = 11         # conv5 bias
ROW_C2 = 12         # precomputed ||c_j||^2
NUM_VEC_ROWS = 16
VEC_WIDTH = 128
SLAB_WIDTH = 128


# ----------------------------------------------------------------- kernel ----
def _vgae_fused_kernel(alpha, n_clusters,
                       # inputs
                       x_ref, adj_ref, eps_ref,
                       w1_ref, w2_ref, w3_ref,
                       wx_ref, wml_ref, zr_ref,
                       w4_ref, w5_ref, vecs_ref,
                       # outputs
                       slab_ref, ra_ref, rx_ref):
    f32 = jnp.float32
    bf16 = jnp.bfloat16

    def vrow(r, f):
        # static (1, f) slice of the packed affine/bias slab
        return vecs_ref[r:r + 1, 0:f]

    def lin_bn_relu(v_bf16, w_ref, srow, hrow):
        f = w_ref.shape[1]
        y = jnp.dot(v_bf16, w_ref[...], preferred_element_type=f32)
        y = y * vrow(srow, f) + vrow(hrow, f)        # eval BN (Linear bias folded)
        return jnp.maximum(y, 0.0)                   # ReLU; Dropout = identity

    # ----- encoder MLP (MXU in bf16, affine/ReLU in f32) -----
    x1 = lin_bn_relu(x_ref[...].astype(bf16), w1_ref, ROW_BN1_S, ROW_BN1_H)
    x2 = lin_bn_relu(x1.astype(bf16), w2_ref, ROW_BN2_S, ROW_BN2_H)
    h = lin_bn_relu(x2.astype(bf16), w3_ref, ROW_BN3_S, ROW_BN3_H)
    n = h.shape[0]
    d_h = h.shape[1]
    slab_ref[:, 0:d_h] = h

    # ----- GCN: conv = Â @ (h @ Wx) + bx     (adj re-read at each use site) -----
    d_conv = wx_ref.shape[1]
    hw = jnp.dot(h.astype(bf16), wx_ref[...], preferred_element_type=f32)
    conv = (jnp.dot(adj_ref[...], hw.astype(bf16), preferred_element_type=f32)
            + vrow(ROW_BX, d_conv))
    slab_ref[:, d_h:d_h + d_conv] = conv

    # ----- merged mu / logvar GCN (one matmul, stored once) -----
    d2lat = wml_ref.shape[1]
    d_lat = d2lat // 2
    cw = jnp.dot(conv.astype(bf16), wml_ref[...], preferred_element_type=f32)
    ml = (jnp.dot(adj_ref[...], cw.astype(bf16), preferred_element_type=f32)
          + vrow(ROW_BML, d2lat))
    o_ml = d_h + d_conv
    slab_ref[:, o_ml:o_ml + d2lat] = ml              # [mu | logvar]
    mu = ml[:, :d_lat]
    logvar = ml[:, d_lat:]

    # ----- reparameterize: z = eps * exp(logvar) + mu   (std = exp(logvar)) -----
    z = eps_ref[...] * jnp.exp(logvar) + mu
    o_z = o_ml + d2lat
    slab_ref[:, o_z:o_z + d_lat] = z

    # ----- fused z-derived NT GEMM:  z @ [z ; Wxd^T ; C]^T  -> (N, N+dec0+K) -----
    z_b = z.astype(bf16)
    rhs = jnp.concatenate([z_b, zr_ref[...]], axis=0)
    big = jax.lax.dot_general(z_b, rhs, (((1,), (1,)), ((), ())),
                              preferred_element_type=f32)
    d_dec0 = w4_ref.shape[0]

    # adjacency decoder: sigmoid(z @ z^T)
    ra_ref[...] = jax.nn.sigmoid(big[:, :n])

    # feature decoder: rec_x = (ReLU(BN(Â @ (z @ Wxd) + bxd) @ W4)) @ W5 + b5
    zxd = big[:, n:n + d_dec0]
    xd = (jnp.dot(adj_ref[...], zxd.astype(bf16), preferred_element_type=f32)
          + vrow(ROW_BXD, d_dec0))
    xd = lin_bn_relu(xd.astype(bf16), w4_ref, ROW_BN4_S, ROW_BN4_H)
    d_in = w5_ref.shape[1]
    rx_ref[...] = (jnp.dot(xd.astype(bf16), w5_ref[...],
                           preferred_element_type=f32) + vrow(ROW_B5, d_in))

    # ----- soft cluster assignment (Student-t) -----
    zc = big[:, n + d_dec0:n + d_dec0 + n_clusters]           # z @ C^T
    z2 = jnp.sum(z * z, axis=1, keepdims=True)                # (N, 1)
    c2 = vrow(ROW_C2, n_clusters)                             # (1, K) precomputed
    d2 = jnp.maximum(z2 + c2 - 2.0 * zc, 0.0)
    q = pl.reciprocal(1.0 + d2 * (1.0 / alpha) + 1e-08, approx=True)
    q = q ** ((alpha + 1.0) / 2.0)
    q = q * pl.reciprocal(jnp.sum(q, axis=1, keepdims=True), approx=True)
    o_q = o_z + d_lat
    slab_ref[:, o_q:o_q + n_clusters] = q

    # zero the slab padding lanes (deterministic output)
    pad = slab_ref.shape[1] - (o_q + n_clusters)
    if pad > 0:
        slab_ref[:, o_q + n_clusters:] = jnp.zeros((n, pad), f32)


# ---------------------------------------------------------------- wrapper ----
def vgae_forward(params, x, adj_bf16, eps, *, alpha, n_clusters):
    p = params
    N, input_dim = x.shape
    d_h = p["w3"].shape[1]            # encoder_hidden[-1]
    d_conv = p["wx"].shape[1]          # conv_hidden[0]
    d_lat = p["wml"].shape[1] // 2     # conv_hidden[1]

    used_lanes = d_h + d_conv + 3 * d_lat + n_clusters
    assert used_lanes <= SLAB_WIDTH, "output slab layout overflows 128 lanes"
    # Whole-array fusion: adj (bf16) + rec_adj (f32) dominate VMEM (~6*N^2 B).
    # Fits v7x's 64 MiB VMEM up to N ~ 2.8k (~4k on v5e/v6e's 128 MiB).
    assert N <= 2048, "TODO(synk): add a row-tiled (grid over N) fallback for large graphs"

    inputs = (
        x, adj_bf16, eps,
        p["w1"], p["w2"], p["w3"],
        p["wx"], p["wml"], p["zr"],
        p["w4"], p["w5"],
        p["vecs"],
    )

    out_shape = (
        jax.ShapeDtypeStruct((N, SLAB_WIDTH), jnp.float32),   # packed slab
        jax.ShapeDtypeStruct((N, N), jnp.float32),            # rec_adj
        jax.ShapeDtypeStruct((N, input_dim), jnp.float32),    # rec_x
    )

    vmem = pl.BlockSpec(memory_space=pltpu.MemorySpace.VMEM)
    slab, rec_adj, rec_x = pl.pallas_call(
        functools.partial(_vgae_fused_kernel, float(alpha), int(n_clusters)),
        out_shape=out_shape,
        in_specs=[vmem] * len(inputs),
        out_specs=tuple(vmem for _ in out_shape),
        compiler_params=pltpu.CompilerParams(vmem_limit_bytes=32 * 1024 * 1024),
    )(*inputs)

    # unpack the lane-dense slab
    o = 0
    h = slab[:, o:o + d_h]; o += d_h
    conv = slab[:, o:o + d_conv]; o += d_conv
    mu = slab[:, o:o + d_lat]; o += d_lat
    logvar = slab[:, o:o + d_lat]; o += d_lat
    z = slab[:, o:o + d_lat]; o += d_lat
    q = slab[:, o:o + n_clusters]
    z_h = jnp.concatenate([h, z], axis=1)
    return h, conv, mu, logvar, z, rec_adj, rec_x, z_h, q


# ----------------------------------------------------------------- params ----
def _dense_init(key, fin, fout):
    kw, kb = jax.random.split(key)
    w = jax.random.normal(kw, (fin, fout), jnp.float32) / jnp.sqrt(float(fin))
    b = 0.01 * jax.random.normal(kb, (fout,), jnp.float32)
    return w, b


def _bn_affine(key, f):
    k1, k2, k3, k4 = jax.random.split(key, 4)
    gamma = 1.0 + 0.1 * jax.random.normal(k1, (f,), jnp.float32)
    beta = 0.1 * jax.random.normal(k2, (f,), jnp.float32)
    mean = 0.1 * jax.random.normal(k3, (f,), jnp.float32)
    var = 1.0 + 0.1 * jnp.abs(jax.random.normal(k4, (f,), jnp.float32))
    scale = gamma / jnp.sqrt(var + 1e-5)   # eval-mode BN folded to affine
    shift = beta - mean * scale
    return scale, shift


def _pad_row(v, width=VEC_WIDTH):
    v = jnp.asarray(v, jnp.float32).reshape(-1)
    return jnp.pad(v, (0, width - v.shape[0]))


def init_params(key, input_dim, enc, conv_h, dec_h, n_clusters):
    ks = jax.random.split(key, 15)
    bf16 = jnp.bfloat16
    p = {}

    w1, b1 = _dense_init(ks[0], input_dim, enc[0])
    w2, b2 = _dense_init(ks[1], enc[0], enc[1])
    w3, b3 = _dense_init(ks[2], enc[1], enc[2])
    wx, bx = _dense_init(ks[3], enc[2], conv_h[0])
    wmu, bmu = _dense_init(ks[4], conv_h[0], conv_h[1])
    wlv, blv = _dense_init(ks[5], conv_h[0], conv_h[1])
    wxd, bxd = _dense_init(ks[6], conv_h[1], dec_h[0])
    w4, b4 = _dense_init(ks[7], dec_h[0], dec_h[1])
    w5, b5 = _dense_init(ks[8], dec_h[1], input_dim)

    s1, h1 = _bn_affine(ks[9], enc[0])
    s2, h2 = _bn_affine(ks[10], enc[1])
    s3, h3 = _bn_affine(ks[11], enc[2])
    s4, h4 = _bn_affine(ks[12], dec_h[1])

    # cluster_layer ~ xavier_normal_
    std = jnp.sqrt(2.0 / (n_clusters + conv_h[1]))
    cluster = std * jax.random.normal(ks[13], (n_clusters, conv_h[1]), jnp.float32)

    # --- MXU weights in bf16 ---
    p["w1"] = w1.astype(bf16)
    p["w2"] = w2.astype(bf16)
    p["w3"] = w3.astype(bf16)
    p["wx"] = wx.astype(bf16)
    p["wml"] = jnp.concatenate([wmu, wlv], axis=1).astype(bf16)   # merged mu|logvar
    p["w4"] = w4.astype(bf16)
    p["w5"] = w5.astype(bf16)

    # --- fused z-GEMM RHS tail: [Wxd^T ; C] (rows padded to a multiple of 16) ---
    zr = jnp.concatenate([wxd.T, cluster], axis=0)                # (dec0 + K, d_lat)
    pad_rows = (-zr.shape[0]) % 16
    if pad_rows:
        zr = jnp.concatenate(
            [zr, jnp.zeros((pad_rows, zr.shape[1]), jnp.float32)], axis=0)
    p["zr"] = zr.astype(bf16)

    # --- packed affine/bias slab (f32): Linear bias folded into BN shift ---
    c2 = jnp.sum(cluster * cluster, axis=1)                       # ||c_j||^2
    rows = [
        s1, b1 * s1 + h1,
        s2, b2 * s2 + h2,
        s3, b3 * s3 + h3,
        bx,
        jnp.concatenate([bmu, blv]),
        bxd,
        s4, b4 * s4 + h4,
        b5,
        c2,
    ]
    rows = [_pad_row(r) for r in rows]
    while len(rows) < NUM_VEC_ROWS:
        rows.append(jnp.zeros((VEC_WIDTH,), jnp.float32))
    p["vecs"] = jnp.stack(rows)                                   # (16, 128) f32
    return p


# ------------------------------------------------------------------- main ----
if __name__ == "__main__":
    N = 128
    input_dim = 64
    encoder_hidden = [128, 64, 32]
    conv_hidden = [32, 16]
    decoder_hidden = [64, 128]
    dec_cluster_n = 15
    alpha = 1.5

    root = jax.random.PRNGKey(0)
    k_param, k_x, k_adj, k_eps = jax.random.split(root, 4)

    params = init_params(k_param, input_dim, encoder_hidden, conv_hidden,
                         decoder_hidden, dec_cluster_n)

    x = jax.random.normal(k_x, (N, input_dim), jnp.float32)

    # dense symmetric-normalized adjacency  Â = D^-1/2 (A + I) D^-1/2  (bf16 input)
    A = (jax.random.uniform(k_adj, (N, N)) < 0.1).astype(jnp.float32)
    A = jnp.minimum(jnp.maximum(A, A.T) + jnp.eye(N, dtype=jnp.float32), 1.0)
    d_inv_sqrt = 1.0 / jnp.sqrt(jnp.sum(A, axis=1))
    adj = (A * d_inv_sqrt[:, None] * d_inv_sqrt[None, :]).astype(jnp.bfloat16)

    eps = jax.random.normal(k_eps, (N, conv_hidden[-1]), jnp.float32)

    fwd = jax.jit(functools.partial(vgae_forward, alpha=alpha,
                                    n_clusters=dec_cluster_n))
    outs = fwd(params, x, adj, eps)
    outs = jax.block_until_ready(outs)

    h, conv, mu, logvar, z, rec_adj, rec_x, z_h, q = outs
    assert h.shape == (N, encoder_hidden[-1])
    assert conv.shape == (N, conv_hidden[0])
    assert mu.shape == (N, conv_hidden[1]) and logvar.shape == (N, conv_hidden[1])
    assert z.shape == (N, conv_hidden[1])
    assert rec_adj.shape == (N, N)
    assert rec_x.shape == (N, input_dim)
    assert z_h.shape == (N, encoder_hidden[-1] + conv_hidden[1])
    assert q.shape == (N, dec_cluster_n)
    for o in outs:
        assert bool(jnp.all(jnp.isfinite(o)))
    # q is row-stochastic up to the approximate-reciprocal normalization error
    assert bool(jnp.allclose(jnp.sum(q, axis=1), 1.0, atol=1e-2))
    assert bool(jnp.allclose(z_h[:, :encoder_hidden[-1]], h))
    assert bool(jnp.allclose(z_h[:, encoder_hidden[-1]:], z))

    print("KERNEL_OK")
</pallas_src>

<mosaic_0001>
module attributes {stable_mosaic.version = 11 : i64} {
  func.func @_vgae_fused_kernel(%arg0: memref<128x64xf32, #tpu.memory_space<vmem>>, %arg1: memref<128x128xbf16, #tpu.memory_space<vmem>>, %arg2: memref<128x16xf32, #tpu.memory_space<vmem>>, %arg3: memref<64x128xbf16, #tpu.memory_space<vmem>>, %arg4: memref<128x64xbf16, #tpu.memory_space<vmem>>, %arg5: memref<64x32xbf16, #tpu.memory_space<vmem>>, %arg6: memref<32x32xbf16, #tpu.memory_space<vmem>>, %arg7: memref<32x32xbf16, #tpu.memory_space<vmem>>, %arg8: memref<80x16xbf16, #tpu.memory_space<vmem>>, %arg9: memref<64x128xbf16, #tpu.memory_space<vmem>>, %arg10: memref<128x64xbf16, #tpu.memory_space<vmem>>, %arg11: memref<16x128xf32, #tpu.memory_space<vmem>>, %arg12: memref<128x128xf32, #tpu.memory_space<vmem>>, %arg13: memref<128x128xf32, #tpu.memory_space<vmem>>, %arg14: memref<128x64xf32, #tpu.memory_space<vmem>>) attributes {dimension_semantics = [], scalar_prefetch = 0 : i64, scratch_operands = 0 : i64, tpu.core_type = #tpu.core_type<tc>} {
    %c0 = arith.constant 0 : index
    %c0_0 = arith.constant 0 : index
    %0 = vector.load %arg0[%c0, %c0_0] : memref<128x64xf32, #tpu.memory_space<vmem>>, vector<128x64xf32>
    %1 = arith.truncf %0 : vector<128x64xf32> to vector<128x64xbf16>
    %c0_1 = arith.constant 0 : index
    %c0_2 = arith.constant 0 : index
    %2 = vector.load %arg3[%c0_1, %c0_2] : memref<64x128xbf16, #tpu.memory_space<vmem>>, vector<64x128xbf16>
    %cst = arith.constant dense<0.000000e+00> : vector<128x128xf32>
    %3 = tpu.matmul %1, %2, %cst {dimension_numbers = #tpu.dot_dimension_numbers<[1], [0], [0], [1], [0, 0, 1, 1], [], []>} : vector<128x64xbf16>, vector<64x128xbf16>, vector<128x128xf32> -> vector<128x128xf32>
    %c0_3 = arith.constant 0 : index
    %c0_4 = arith.constant 0 : index
    %4 = vector.load %arg11[%c0_3, %c0_4] : memref<16x128xf32, #tpu.memory_space<vmem>>, vector<1x128xf32>
    %5 = vector.broadcast %4 : vector<1x128xf32> to vector<128x128xf32>
    %6 = arith.mulf %3, %5 : vector<128x128xf32>
    %c1 = arith.constant 1 : index
    %c0_5 = arith.constant 0 : index
    %7 = vector.load %arg11[%c1, %c0_5] : memref<16x128xf32, #tpu.memory_space<vmem>>, vector<1x128xf32>
    %8 = vector.broadcast %7 : vector<1x128xf32> to vector<128x128xf32>
    %9 = arith.addf %6, %8 : vector<128x128xf32>
    %cst_6 = arith.constant 0.000000e+00 : f32
    %10 = vector.broadcast %cst_6 : f32 to vector<128x128xf32>
    %11 = arith.maximumf %9, %10 : vector<128x128xf32>
    %12 = arith.truncf %11 : vector<128x128xf32> to vector<128x128xbf16>
    %c0_7 = arith.constant 0 : index
    %c0_8 = arith.constant 0 : index
    %13 = vector.load %arg4[%c0_7, %c0_8] : memref<128x64xbf16, #tpu.memory_space<vmem>>, vector<128x64xbf16>
    %cst_9 = arith.constant dense<0.000000e+00> : vector<128x64xf32>
    %14 = tpu.matmul %12, %13, %cst_9 {dimension_numbers = #tpu.dot_dimension_numbers<[1], [0], [0], [1], [0, 0, 1, 1], [], []>} : vector<128x128xbf16>, vector<128x64xbf16>, vector<128x64xf32> -> vector<128x64xf32>
    %c2 = arith.constant 2 : index
    %c0_10 = arith.constant 0 : index
    %15 = vector.load %arg11[%c2, %c0_10] : memref<16x128xf32, #tpu.memory_space<vmem>>, vector<1x64xf32>
    %16 = vector.broadcast %15 : vector<1x64xf32> to vector<128x64xf32>
    %17 = arith.mulf %14, %16 : vector<128x64xf32>
    %c3 = arith.constant 3 : index
    %c0_11 = arith.constant 0 : index
    %18 = vector.load %arg11[%c3, %c0_11] : memref<16x128xf32, #tpu.memory_space<vmem>>, vector<1x64xf32>
    %19 = vector.broadcast %18 : vector<1x64xf32> to vector<128x64xf32>
    %20 = arith.addf %17, %19 : vector<128x64xf32>
    %cst_12 = arith.constant 0.000000e+00 : f32
    %21 = vector.broadcast %cst_12 : f32 to vector<128x64xf32>
    %22 = arith.maximumf %20, %21 : vector<128x64xf32>
    %23 = arith.truncf %22 : vector<128x64xf32> to vector<128x64xbf16>
    %c0_13 = arith.constant 0 : index
    %c0_14 = arith.constant 0 : index
    %24 = vector.load %arg5[%c0_13, %c0_14] : memref<64x32xbf16, #tpu.memory_space<vmem>>, vector<64x32xbf16>
    %cst_15 = arith.constant dense<0.000000e+00> : vector<128x32xf32>
    %25 = tpu.matmul %23, %24, %cst_15 {dimension_numbers = #tpu.dot_dimension_numbers<[1], [0], [0], [1], [0, 0, 1, 1], [], []>} : vector<128x64xbf16>, vector<64x32xbf16>, vector<128x32xf32> -> vector<128x32xf32>
    %c4 = arith.constant 4 : index
    %c0_16 = arith.constant 0 : index
    %26 = vector.load %arg11[%c4, %c0_16] : memref<16x128xf32, #tpu.memory_space<vmem>>, vector<1x32xf32>
    %27 = vector.broadcast %26 : vector<1x32xf32> to vector<128x32xf32>
    %28 = arith.mulf %25, %27 : vector<128x32xf32>
    %c5 = arith.constant 5 : index
    %c0_17 = arith.constant 0 : index
    %29 = vector.load %arg11[%c5, %c0_17] : memref<16x128xf32, #tpu.memory_space<vmem>>, vector<1x32xf32>
    %30 = vector.broadcast %29 : vector<1x32xf32> to vector<128x32xf32>
    %31 = arith.addf %28, %30 : vector<128x32xf32>
    %cst_18 = arith.constant 0.000000e+00 : f32
    %32 = vector.broadcast %cst_18 : f32 to vector<128x32xf32>
    %33 = arith.maximumf %31, %32 : vector<128x32xf32>
    %c0_19 = arith.constant 0 : index
    %c0_20 = arith.constant 0 : index
    %34 = vector.load %arg12[%c0_19, %c0_20] : memref<128x128xf32, #tpu.memory_space<vmem>>, vector<128x32xf32>
    tpu.vector_store %arg12[%c0_19, %c0_20], %33 {strides = array<i32>} : memref<128x128xf32, #tpu.memory_space<vmem>>, vector<128x32xf32>,
    %35 = arith.truncf %33 : vector<128x32xf32> to vector<128x32xbf16>
    %c0_21 = arith.constant 0 : index
    %c0_22 = arith.constant 0 : index
    %36 = vector.load %arg6[%c0_21, %c0_22] : memref<32x32xbf16, #tpu.memory_space<vmem>>, vector<32x32xbf16>
    %cst_23 = arith.constant dense<0.000000e+00> : vector<128x32xf32>
    %37 = tpu.matmul %35, %36, %cst_23 {dimension_numbers = #tpu.dot_dimension_numbers<[1], [0], [0], [1], [0, 0, 1, 1], [], []>} : vector<128x32xbf16>, vector<32x32xbf16>, vector<128x32xf32> -> vector<128x32xf32>
    %c0_24 = arith.constant 0 : index
    %c0_25 = arith.constant 0 : index
    %38 = vector.load %arg1[%c0_24, %c0_25] : memref<128x128xbf16, #tpu.memory_space<vmem>>, vector<128x128xbf16>
    %39 = arith.truncf %37 : vector<128x32xf32> to vector<128x32xbf16>
    %cst_26 = arith.constant dense<0.000000e+00> : vector<128x32xf32>
    %40 = tpu.matmul %38, %39, %cst_26 {dimension_numbers = #tpu.dot_dimension_numbers<[1], [0], [0], [1], [0, 0, 1, 1], [], []>} : vector<128x128xbf16>, vector<128x32xbf16>, vector<128x32xf32> -> vector<128x32xf32>
    %c6 = arith.constant 6 : index
    %c0_27 = arith.constant 0 : index
    %41 = vector.load %arg11[%c6, %c0_27] : memref<16x128xf32, #tpu.memory_space<vmem>>, vector<1x32xf32>
    %42 = vector.broadcast %41 : vector<1x32xf32> to vector<128x32xf32>
    %43 = arith.addf %40, %42 : vector<128x32xf32>
    %c0_28 = arith.constant 0 : index
    %c32 = arith.constant 32 : index
    %44 = vector.load %arg12[%c0_28, %c32] : memref<128x128xf32, #tpu.memory_space<vmem>>, vector<128x32xf32>
    tpu.vector_store %arg12[%c0_28, %c32], %43 {strides = array<i32>} : memref<128x128xf32, #tpu.memory_space<vmem>>, vector<128x32xf32>,
    %45 = arith.truncf %43 : vector<128x32xf32> to vector<128x32xbf16>
    %c0_29 = arith.constant 0 : index
    %c0_30 = arith.constant 0 : index
    %46 = vector.load %arg7[%c0_29, %c0_30] : memref<32x32xbf16, #tpu.memory_space<vmem>>, vector<32x32xbf16>
    %cst_31 = arith.constant dense<0.000000e+00> : vector<128x32xf32>
    %47 = tpu.matmul %45, %46, %cst_31 {dimension_numbers = #tpu.dot_dimension_numbers<[1], [0], [0], [1], [0, 0, 1, 1], [], []>} : vector<128x32xbf16>, vector<32x32xbf16>, vector<128x32xf32> -> vector<128x32xf32>
    %c0_32 = arith.constant 0 : index
    %c0_33 = arith.constant 0 : index
    %48 = vector.load %arg1[%c0_32, %c0_33] : memref<128x128xbf16, #tpu.memory_space<vmem>>, vector<128x128xbf16>
    %49 = arith.truncf %47 : vector<128x32xf32> to vector<128x32xbf16>
    %cst_34 = arith.constant dense<0.000000e+00> : vector<128x32xf32>
    %50 = tpu.matmul %48, %49, %cst_34 {dimension_numbers = #tpu.dot_dimension_numbers<[1], [0], [0], [1], [0, 0, 1, 1], [], []>} : vector<128x128xbf16>, vector<128x32xbf16>, vector<128x32xf32> -> vector<128x32xf32>
    %c7 = arith.constant 7 : index
    %c0_35 = arith.constant 0 : index
    %51 = vector.load %arg11[%c7, %c0_35] : memref<16x128xf32, #tpu.memory_space<vmem>>, vector<1x32xf32>
    %52 = vector.broadcast %51 : vector<1x32xf32> to vector<128x32xf32>
    %53 = arith.addf %50, %52 : vector<128x32xf32>
    %c0_36 = arith.constant 0 : index
    %c64 = arith.constant 64 : index
    %54 = vector.load %arg12[%c0_36, %c64] : memref<128x128xf32, #tpu.memory_space<vmem>>, vector<128x32xf32>
    tpu.vector_store %arg12[%c0_36, %c64], %53 {strides = array<i32>} : memref<128x128xf32, #tpu.memory_space<vmem>>, vector<128x32xf32>,
    %55 = vector.extract_strided_slice %53 {offsets = [0, 0], sizes = [128, 16], strides = [1, 1]} : vector<128x32xf32> to vector<128x16xf32>
    %56 = vector.extract_strided_slice %53 {offsets = [0, 16], sizes = [128, 16], strides = [1, 1]} : vector<128x32xf32> to vector<128x16xf32>
    %c0_37 = arith.constant 0 : index
    %c0_38 = arith.constant 0 : index
    %57 = vector.load %arg2[%c0_37, %c0_38] : memref<128x16xf32, #tpu.memory_space<vmem>>, vector<128x16xf32>
    %58 = math.exp %56 : vector<128x16xf32>
    %59 = arith.mulf %57, %58 : vector<128x16xf32>
    %60 = arith.addf %59, %55 : vector<128x16xf32>
    %c0_39 = arith.constant 0 : index
    %c96 = arith.constant 96 : index
    %61 = vector.load %arg12[%c0_39, %c96] : memref<128x128xf32, #tpu.memory_space<vmem>>, vector<128x16xf32>
    tpu.vector_store %arg12[%c0_39, %c96], %60 {strides = array<i32>} : memref<128x128xf32, #tpu.memory_space<vmem>>, vector<128x16xf32>,
    %62 = arith.truncf %60 : vector<128x16xf32> to vector<128x16xbf16>
    %c0_40 = arith.constant 0 : index
    %c0_41 = arith.constant 0 : index
    %63 = vector.load %arg8[%c0_40, %c0_41] : memref<80x16xbf16, #tpu.memory_space<vmem>>, vector<80x16xbf16>
    %64 = tpu.concatenate %62, %63 in 0 : vector<128x16xbf16>, vector<80x16xbf16> -> vector<208x16xbf16>
    %cst_42 = arith.constant dense<0.000000e+00> : vector<128x208xf32>
    %65 = tpu.matmul %62, %64, %cst_42 {dimension_numbers = #tpu.dot_dimension_numbers<[1], [1], [0], [0], [0, 0, 1, 0], [], []>} : vector<128x16xbf16>, vector<208x16xbf16>, vector<128x208xf32> -> vector<128x208xf32>
    %66 = vector.extract_strided_slice %65 {offsets = [0, 0], sizes = [128, 128], strides = [1, 1]} : vector<128x208xf32> to vector<128x128xf32>
    %67 = arith.negf %66 : vector<128x128xf32>
    %68 = math.exp %67 : vector<128x128xf32>
    %cst_43 = arith.constant 1.000000e+00 : f32
    %69 = vector.broadcast %cst_43 : f32 to vector<128x128xf32>
    %70 = arith.addf %69, %68 : vector<128x128xf32>
    %71 = arith.divf %69, %70 : vector<128x128xf32>
    %c0_44 = arith.constant 0 : index
    %c0_45 = arith.constant 0 : index
    %72 = vector.load %arg13[%c0_44, %c0_45] : memref<128x128xf32, #tpu.memory_space<vmem>>, vector<128x128xf32>
    tpu.vector_store %arg13[%c0_44, %c0_45], %71 {strides = array<i32>} : memref<128x128xf32, #tpu.memory_space<vmem>>, vector<128x128xf32>,
    %73 = vector.extract_strided_slice %65 {offsets = [0, 128], sizes = [128, 64], strides = [1, 1]} : vector<128x208xf32> to vector<128x64xf32>
    %c0_46 = arith.constant 0 : index
    %c0_47 = arith.constant 0 : index
    %74 = vector.load %arg1[%c0_46, %c0_47] : memref<128x128xbf16, #tpu.memory_space<vmem>>, vector<128x128xbf16>
    %75 = arith.truncf %73 : vector<128x64xf32> to vector<128x64xbf16>
    %cst_48 = arith.constant dense<0.000000e+00> : vector<128x64xf32>
    %76 = tpu.matmul %74, %75, %cst_48 {dimension_numbers = #tpu.dot_dimension_numbers<[1], [0], [0], [1], [0, 0, 1, 1], [], []>} : vector<128x128xbf16>, vector<128x64xbf16>, vector<128x64xf32> -> vector<128x64xf32>
    %c8 = arith.constant 8 : index
    %c0_49 = arith.constant 0 : index
    %77 = vector.load %arg11[%c8, %c0_49] : memref<16x128xf32, #tpu.memory_space<vmem>>, vector<1x64xf32>
    %78 = vector.broadcast %77 : vector<1x64xf32> to vector<128x64xf32>
    %79 = arith.addf %76, %78 : vector<128x64xf32>
    %80 = arith.truncf %79 : vector<128x64xf32> to vector<128x64xbf16>
    %c0_50 = arith.constant 0 : index
    %c0_51 = arith.constant 0 : index
    %81 = vector.load %arg9[%c0_50, %c0_51] : memref<64x128xbf16, #tpu.memory_space<vmem>>, vector<64x128xbf16>
    %cst_52 = arith.constant dense<0.000000e+00> : vector<128x128xf32>
    %82 = tpu.matmul %80, %81, %cst_52 {dimension_numbers = #tpu.dot_dimension_numbers<[1], [0], [0], [1], [0, 0, 1, 1], [], []>} : vector<128x64xbf16>, vector<64x128xbf16>, vector<128x128xf32> -> vector<128x128xf32>
    %c9 = arith.constant 9 : index
    %c0_53 = arith.constant 0 : index
    %83 = vector.load %arg11[%c9, %c0_53] : memref<16x128xf32, #tpu.memory_space<vmem>>, vector<1x128xf32>
    %84 = vector.broadcast %83 : vector<1x128xf32> to vector<128x128xf32>
    %85 = arith.mulf %82, %84 : vector<128x128xf32>
    %c10 = arith.constant 10 : index
    %c0_54 = arith.constant 0 : index
    %86 = vector.load %arg11[%c10, %c0_54] : memref<16x128xf32, #tpu.memory_space<vmem>>, vector<1x128xf32>
    %87 = vector.broadcast %86 : vector<1x128xf32> to vector<128x128xf32>
    %88 = arith.addf %85, %87 : vector<128x128xf32>
    %cst_55 = arith.constant 0.000000e+00 : f32
    %89 = vector.broadcast %cst_55 : f32 to vector<128x128xf32>
    %90 = arith.maximumf %88, %89 : vector<128x128xf32>
    %91 = arith.truncf %90 : vector<128x128xf32> to vector<128x128xbf16>
    %c0_56 = arith.constant 0 : index
    %c0_57 = arith.constant 0 : index
    %92 = vector.load %arg10[%c0_56, %c0_57] : memref<128x64xbf16, #tpu.memory_space<vmem>>, vector<128x64xbf16>
    %cst_58 = arith.constant dense<0.000000e+00> : vector<128x64xf32>
    %93 = tpu.matmul %91, %92, %cst_58 {dimension_numbers = #tpu.dot_dimension_numbers<[1], [0], [0], [1], [0, 0, 1, 1], [], []>} : vector<128x128xbf16>, vector<128x64xbf16>, vector<128x64xf32> -> vector<128x64xf32>
    %c11 = arith.constant 11 : index
    %c0_59 = arith.constant 0 : index
    %94 = vector.load %arg11[%c11, %c0_59] : memref<16x128xf32, #tpu.memory_space<vmem>>, vector<1x64xf32>
    %95 = vector.broadcast %94 : vector<1x64xf32> to vector<128x64xf32>
    %96 = arith.addf %93, %95 : vector<128x64xf32>
    %c0_60 = arith.constant 0 : index
    %c0_61 = arith.constant 0 : index
    %97 = vector.load %arg14[%c0_60, %c0_61] : memref<128x64xf32, #tpu.memory_space<vmem>>, vector<128x64xf32>
    tpu.vector_store %arg14[%c0_60, %c0_61], %96 {strides = array<i32>} : memref<128x64xf32, #tpu.memory_space<vmem>>, vector<128x64xf32>,
    %98 = vector.extract_strided_slice %65 {offsets = [0, 192], sizes = [128, 15], strides = [1, 1]} : vector<128x208xf32> to vector<128x15xf32>
    %99 = arith.mulf %60, %60 : vector<128x16xf32>
    %cst_62 = arith.constant dense<0.000000e+00> : vector<128xf32>
    %100 = vector.multi_reduction <add>, %99, %cst_62 [1] : vector<128x16xf32> to vector<128xf32>
    %101 = vector.shape_cast %100 : vector<128xf32> to vector<128x1xf32>
    %c12 = arith.constant 12 : index
    %c0_63 = arith.constant 0 : index
    %102 = vector.load %arg11[%c12, %c0_63] : memref<16x128xf32, #tpu.memory_space<vmem>>, vector<1x15xf32>
    %103 = vector.broadcast %101 : vector<128x1xf32> to vector<128x15xf32>
    %104 = vector.broadcast %102 : vector<1x15xf32> to vector<128x15xf32>
    %105 = arith.addf %103, %104 : vector<128x15xf32>
    %cst_64 = arith.constant 2.000000e+00 : f32
    %106 = vector.broadcast %cst_64 : f32 to vector<128x15xf32>
    %107 = arith.mulf %106, %98 : vector<128x15xf32>
    %108 = arith.subf %105, %107 : vector<128x15xf32>
    %cst_65 = arith.constant 0.000000e+00 : f32
    %109 = vector.broadcast %cst_65 : f32 to vector<128x15xf32>
    %110 = arith.maximumf %108, %109 : vector<128x15xf32>
    %cst_66 = arith.constant 0.666666686 : f32
    %111 = vector.broadcast %cst_66 : f32 to vector<128x15xf32>
    %112 = arith.mulf %110, %111 : vector<128x15xf32>
    %cst_67 = arith.constant 1.000000e+00 : f32
    %113 = vector.broadcast %cst_67 : f32 to vector<128x15xf32>
    %114 = arith.addf %113, %112 : vector<128x15xf32>
    %cst_68 = arith.constant 9.99999993E-9 : f32
    %115 = vector.broadcast %cst_68 : f32 to vector<128x15xf32>
    %116 = arith.addf %114, %115 : vector<128x15xf32>
    %117 = tpu.reciprocal %116 {approx = true} : vector<128x15xf32> -> vector<128x15xf32>
    %cst_69 = arith.constant 1.250000e+00 : f32
    %118 = vector.broadcast %cst_69 : f32 to vector<128x15xf32>
    %119 = math.powf %117, %118 : vector<128x15xf32>
    %cst_70 = arith.constant dense<0.000000e+00> : vector<128xf32>
    %120 = vector.multi_reduction <add>, %119, %cst_70 [1] : vector<128x15xf32> to vector<128xf32>
    %121 = vector.shape_cast %120 : vector<128xf32> to vector<128x1xf32>
    %122 = tpu.reciprocal %121 {approx = true} : vector<128x1xf32> -> vector<128x1xf32>
    %123 = vector.broadcast %122 : vector<128x1xf32> to vector<128x15xf32>
    %124 = arith.mulf %119, %123 : vector<128x15xf32>
    %c0_71 = arith.constant 0 : index
    %c112 = arith.constant 112 : index
    %125 = vector.load %arg12[%c0_71, %c112] : memref<128x128xf32, #tpu.memory_space<vmem>>, vector<128x15xf32>
    tpu.vector_store %arg12[%c0_71, %c112], %124 {strides = array<i32>} : memref<128x128xf32, #tpu.memory_space<vmem>>, vector<128x15xf32>,
    %cst_72 = arith.constant 0.000000e+00 : f32
    %126 = vector.broadcast %cst_72 : f32 to vector<128x1xf32>
    %c0_73 = arith.constant 0 : index
    %c127 = arith.constant 127 : index
    %127 = vector.load %arg12[%c0_73, %c127] : memref<128x128xf32, #tpu.memory_space<vmem>>, vector<128x1xf32>
    tpu.vector_store %arg12[%c0_73, %c127], %126 {strides = array<i32>} : memref<128x128xf32, #tpu.memory_space<vmem>>, vector<128x1xf32>,
    return
  }
}

</mosaic_0001>

<llo_original>
// kernel: vgae_forward.1
$region0: #{vgae_forward.1}
  #allocation0 [shape = 'u32[]', space=smem, size = 0x4, offset = 0x4, fixed_abs, tag = 'smem constant byte address 0x4 - core index']
  #allocation1 [shape = 'u32[144,128]{1,0:T(1,128)}', space=vmem, size = 0x12000, scoped, tag = 'internal scratch']
  %s0 = inlined_call_operand.vmem [shape: f32[128,64], index: 0, kind: input, shape index: {}]
  %s1 = inlined_call_operand.vmem [shape: bf16[128,128], index: 1, kind: input, shape index: {}]
  %s2 = inlined_call_operand.vmem [shape: f32[128,16], index: 2, kind: input, shape index: {}]
  %s3 = inlined_call_operand.vmem [shape: bf16[64,128], index: 3, kind: input, shape index: {}]
  %s4 = inlined_call_operand.vmem [shape: bf16[128,64], index: 4, kind: input, shape index: {}]
  %s5 = inlined_call_operand.vmem [shape: bf16[64,32], index: 5, kind: input, shape index: {}]
  %s6 = inlined_call_operand.vmem [shape: bf16[32,32], index: 6, kind: input, shape index: {}]
  %s7 = inlined_call_operand.vmem [shape: bf16[32,32], index: 7, kind: input, shape index: {}]
  %s8 = inlined_call_operand.vmem [shape: bf16[80,16], index: 8, kind: input, shape index: {}]
  %s9 = inlined_call_operand.vmem [shape: bf16[64,128], index: 9, kind: input, shape index: {}]
  %s10 = inlined_call_operand.vmem [shape: bf16[128,64], index: 10, kind: input, shape index: {}]
  %s11 = inlined_call_operand.vmem [shape: f32[16,128], index: 11, kind: input, shape index: {}]
  %s12 = inlined_call_operand.vmem [shape: f32[128,128], index: 12, kind: output, shape index: {0}]
  %s13 = inlined_call_operand.hbm [shape: f32[128,128], index: 13, kind: output, shape index: {1}]
  %s14 = inlined_call_operand.vmem [shape: f32[128,64], index: 14, kind: output, shape index: {2}]
  %15 = xla_tuple %s12, %s13, %s14
  %s16 = sld [smem:[#allocation0]]
  $region74: #{vgae_forward.1} parent=0
    _
  %s18 = ssub.s32 1, %s16
  %s19 = scalar_select 0, %s18, %s16
  $region1: #{vgae_forward.1} parent=0
    #allocation2 [shape = 'u8[65536]{0}', space=vmem, size = 0x10000, scoped, tag = 'output window, operand 1, single buffered']
    #allocation3 [shape = 's32[1]{0}', space=sflag, size = 0x4, scoped, tag = 'scoped memory for vgae_forward.1']
    %20 = vsyncpa [#allocation3], 0
    // Predicated region
    $region2: #{vgae_forward.1} parent=1 // pred_check
      _
    $region3: #{vgae_forward.1} parent=1 // pred_check_branch
      %22 = sbr.rel (0) target = $region5
    $region4: #{vgae_forward.1} parent=1 // pred_region
      _
    $region5: #{vgae_forward.1} parent=1 // pred_fallthru
      _
    // Predicated region
    $region6: #{vgae_forward.1} parent=1 // pred_check
      _
    $region7: #{vgae_forward.1} parent=1 // pred_check_branch
      %24 = sbr.rel (0) target = $region9
    $region8: #{vgae_forward.1} parent=1 // pred_region
      _
    $region9: #{vgae_forward.1} parent=1 // pred_fallthru
      _
    // Predicated region
    $region10: #{vgae_forward.1} parent=1 // pred_check
      _
    $region11: #{vgae_forward.1} parent=1 // pred_check_branch
      %26 = sbr.rel (0) target = $region13
    $region12: #{vgae_forward.1} parent=1 // pred_region
      _
    $region13: #{vgae_forward.1} parent=1 // pred_fallthru
      _
    // Predicated region
    $region14: #{vgae_forward.1} parent=1 // pred_check
      _
    $region15: #{vgae_forward.1} parent=1 // pred_check_branch
      %28 = sbr.rel (0) target = $region17
    $region16: #{vgae_forward.1} parent=1 // pred_region
      _
    $region17: #{vgae_forward.1} parent=1 // pred_fallthru
      _
    // Predicated region
    $region18: #{vgae_forward.1} parent=1 // pred_check
      _
    $region19: #{vgae_forward.1} parent=1 // pred_check_branch
      %30 = sbr.rel (0) target = $region21
    $region20: #{vgae_forward.1} parent=1 // pred_region
      _
    $region21: #{vgae_forward.1} parent=1 // pred_fallthru
      _
    // Predicated region
    $region22: #{vgae_forward.1} parent=1 // pred_check
      _
    $region23: #{vgae_forward.1} parent=1 // pred_check_branch
      %32 = sbr.rel (0) target = $region25
    $region24: #{vgae_forward.1} parent=1 // pred_region
      _
    $region25: #{vgae_forward.1} parent=1 // pred_fallthru
      _
    // Predicated region
    $region26: #{vgae_forward.1} parent=1 // pred_check
      _
    $region27: #{vgae_forward.1} parent=1 // pred_check_branch
      %34 = sbr.rel (0) target = $region29
    $region28: #{vgae_forward.1} parent=1 // pred_region
      _
    $region29: #{vgae_forward.1} parent=1 // pred_fallthru
      _
    // Predicated region
    $region30: #{vgae_forward.1} parent=1 // pred_check
      _
    $region31: #{vgae_forward.1} parent=1 // pred_check_branch
      %36 = sbr.rel (0) target = $region33
    $region32: #{vgae_forward.1} parent=1 // pred_region
      _
    $region33: #{vgae_forward.1} parent=1 // pred_fallthru
      _
    // Predicated region
    $region34: #{vgae_forward.1} parent=1 // pred_check
      _
    $region35: #{vgae_forward.1} parent=1 // pred_check_branch
      %38 = sbr.rel (0) target = $region37
    $region36: #{vgae_forward.1} parent=1 // pred_region
      _
    $region37: #{vgae_forward.1} parent=1 // pred_fallthru
      _
    // Predicated region
    $region38: #{vgae_forward.1} parent=1 // pred_check
      _
    $region39: #{vgae_forward.1} parent=1 // pred_check_branch
      %40 = sbr.rel (0) target = $region41
    $region40: #{vgae_forward.1} parent=1 // pred_region
      _
    $region41: #{vgae_forward.1} parent=1 // pred_fallthru
      _
    // Predicated region
    $region42: #{vgae_forward.1} parent=1 // pred_check
      _
    $region43: #{vgae_forward.1} parent=1 // pred_check_branch
      %42 = sbr.rel (0) target = $region45
    $region44: #{vgae_forward.1} parent=1 // pred_region
      _
    $region45: #{vgae_forward.1} parent=1 // pred_fallthru
      _
    // Predicated region
    $region46: #{vgae_forward.1} parent=1 // pred_check
      _
    $region47: #{vgae_forward.1} parent=1 // pred_check_branch
      %44 = sbr.rel (0) target = $region49
    $region48: #{vgae_forward.1} parent=1 // pred_region
      _
    $region49: #{vgae_forward.1} parent=1 // pred_fallthru
      _
    %v46 = vld [vmem:[%s0] sm:$0xff]
    %v47 = vld [vmem:[%s0 + $0x8] sm:$0xff]
    %v48 = vld [vmem:[%s0 + $0x10] sm:$0xff]
    %v49 = vld [vmem:[%s0 + $0x18] sm:$0xff]
    %v50 = vld [vmem:[%s0 + $0x20] sm:$0xff]
    %v51 = vld [vmem:[%s0 + $0x28] sm:$0xff]
    %v52 = vld [vmem:[%s0 + $0x30] sm:$0xff]
    %v53 = vld [vmem:[%s0 + $0x38] sm:$0xff]
    %v54 = vld [vmem:[%s0 + $0x40] sm:$0xff]
    %v55 = vld [vmem:[%s0 + $0x48] sm:$0xff]
    %v56 = vld [vmem:[%s0 + $0x50] sm:$0xff]
    %v57 = vld [vmem:[%s0 + $0x58] sm:$0xff]
    %v58 = vld [vmem:[%s0 + $0x60] sm:$0xff]
    %v59 = vld [vmem:[%s0 + $0x68] sm:$0xff]
    %v60 = vld [vmem:[%s0 + $0x70] sm:$0xff]
    %v61 = vld [vmem:[%s0 + $0x78] sm:$0xff]
    %v62 = vpack.c.bf16 %v47, %v46
    %v63 = vpack.c.bf16 %v49, %v48
    %v64 = vpack.c.bf16 %v51, %v50
    %v65 = vpack.c.bf16 %v53, %v52
    %v66 = vpack.c.bf16 %v55, %v54
    %v67 = vpack.c.bf16 %v57, %v56
    %v68 = vpack.c.bf16 %v59, %v58
    %v69 = vpack.c.bf16 %v61, %v60
    %v70 = vld [vmem:[%s3] sm:$0xf]
    %v71 = vld [vmem:[%s3 + $0x4] sm:$0xf]
    %v72 = vld [vmem:[%s3 + $0x8] sm:$0xf]
    %v73 = vld [vmem:[%s3 + $0xc] sm:$0xf]
    %v74 = vld [vmem:[%s3 + $0x10] sm:$0xf]
    %v75 = vld [vmem:[%s3 + $0x14] sm:$0xf]
    %v76 = vld [vmem:[%s3 + $0x18] sm:$0xf]
    %v77 = vld [vmem:[%s3 + $0x1c] sm:$0xf]
    %v86 = vunpack.c.l.b16 %v70
    %v87 = vunpack.c.l.b16 %v71
    %v88 = vunpack.c.l.b16 %v72
    %v89 = vunpack.c.l.b16 %v73
    %v90 = vunpack.c.l.b16 %v74
    %v91 = vunpack.c.l.b16 %v75
    %v92 = vunpack.c.l.b16 %v76
    %v93 = vunpack.c.l.b16 %v77
    %v94 = vpack.c.b16 %v87, %v86
    %v95 = vpack.c.b16 %v89, %v88
    %v96 = vpack.c.b16 %v91, %v90
    %v97 = vpack.c.b16 %v93, %v92
    %vm102 = vcmask 523264
    %v104 = vsel %vm102, %v62, 0
    %v107 = vsel %vm102, %v63, 0
    %v110 = vsel %vm102, %v64, 0
    %v113 = vsel %vm102, %v65, 0
    %v116 = vsel %vm102, %v66, 0
    %v119 = vsel %vm102, %v67, 0
    %v122 = vsel %vm102, %v68, 0
    %v125 = vsel %vm102, %v69, 0
    %127 = vmatprep.subr.bf16.mxu0 0
    %128 = vmatpush1.bf16.msra.mxu0 %v94
    %129 = vmatprep.subr.bf16.mxu0 0
    %130 = vmatpush1.bf16.msra.mxu0 %v95
    %131 = vmatprep.subr.bf16.mxu0 0
    %132 = vmatpush1.bf16.msra.mxu0 %v96
    %133 = vmatprep.subr.bf16.mxu0 0
    %134 = vmatpush1.bf16.msra.mxu0 %v97
    %135 = vmatprep.subr.bf16.mxu0 0
    %136 = vmatpush1.bf16.msra.mxu0 0
    %137 = vmatprep.subr.bf16.mxu0 0
    %138 = vmatpush1.bf16.msra.mxu0 0
    %139 = vmatprep.subr.bf16.mxu0 0
    %140 = vmatpush1.bf16.msra.mxu0 0
    %141 = vmatprep.subr.bf16.mxu0 0
    %142 = vmatpush1.bf16.msra.mxu0 0
    %143 = vmatprep.subr.bf16.mxu0 0
    %144 = vmatpush1.bf16.msra.mxu0 0
    %145 = vmatprep.subr.bf16.mxu0 0
    %146 = vmatpush1.bf16.msra.mxu0 0
    %147 = vmatprep.subr.bf16.mxu0 0
    %148 = vmatpush1.bf16.msra.mxu0 0
    %149 = vmatprep.subr.bf16.mxu0 0
    %150 = vmatpush1.bf16.msra.mxu0 0
    %151 = vmatprep.subr.bf16.mxu0 0
    %152 = vmatpush1.bf16.msra.mxu0 0
    %153 = vmatprep.subr.bf16.mxu0 0
    %154 = vmatpush1.bf16.msra.mxu0 0
    %155 = vmatprep.subr.bf16.mxu0 0
    %156 = vmatpush1.bf16.msra.mxu0 0
    %157 = vmatprep.subr.bf16.mxu0 0
    %158 = vmatpush1.bf16.msra.mxu0 0
    %159 = vmatprep.mubr.bf16.mxu0 0
    %160 = vmatmul.mubr.bf16.gmra.mrb[0].mxu0 %v104
    %v161 = vpop.f32.mrb[0].mxu0
    %v162 = vadd.f32 0.0, %v161
    %v163 = vpop.f32.mrb[0].mxu0
    %v164 = vpop.f32.mrb[0].mxu0
    %v165 = vadd.f32 0.0, %v164
    %v166 = vpop.f32.mrb[0].mxu0
    %167 = vmatprep.mubr.bf16.mxu0 0
    %168 = vmatmul.mubr.bf16.gmra.mrb[0].mxu0 %v107
    %v169 = vpop.f32.mrb[0].mxu0
    %v170 = vadd.f32 0.0, %v169
    %v171 = vpop.f32.mrb[0].mxu0
    %v172 = vpop.f32.mrb[0].mxu0
    %v173 = vadd.f32 0.0, %v172
    %v174 = vpop.f32.mrb[0].mxu0
    %175 = vmatprep.mubr.bf16.mxu0 0
    %176 = vmatmul.mubr.bf16.gmra.mrb[0].mxu0 %v110
    %v177 = vpop.f32.mrb[0].mxu0
    %v178 = vadd.f32 0.0, %v177
    %v179 = vpop.f32.mrb[0].mxu0
    %v180 = vpop.f32.mrb[0].mxu0
    %v181 = vadd.f32 0.0, %v180
    %v182 = vpop.f32.mrb[0].mxu0
    %183 = vmatprep.mubr.bf16.mxu0 0
    %184 = vmatmul.mubr.bf16.gmra.mrb[0].mxu0 %v113
    %v185 = vpop.f32.mrb[0].mxu0
    %v186 = vadd.f32 0.0, %v185
    %v187 = vpop.f32.mrb[0].mxu0
    %v188 = vpop.f32.mrb[0].mxu0
    %v189 = vadd.f32 0.0, %v188
    %v190 = vpop.f32.mrb[0].mxu0
    %191 = vmatprep.mubr.bf16.mxu0 0
    %192 = vmatmul.mubr.bf16.gmra.mrb[0].mxu0 %v116
    %v193 = vpop.f32.mrb[0].mxu0
    %v194 = vadd.f32 0.0, %v193
    %v195 = vpop.f32.mrb[0].mxu0
    %v196 = vpop.f32.mrb[0].mxu0
    %v197 = vadd.f32 0.0, %v196
    %v198 = vpop.f32.mrb[0].mxu0
    %199 = vmatprep.mubr.bf16.mxu0 0
    %200 = vmatmul.mubr.bf16.gmra.mrb[0].mxu0 %v119
    %v201 = vpop.f32.mrb[0].mxu0
    %v202 = vadd.f32 0.0, %v201
    %v203 = vpop.f32.mrb[0].mxu0
    %v204 = vpop.f32.mrb[0].mxu0
    %v205 = vadd.f32 0.0, %v204
    %v206 = vpop.f32.mrb[0].mxu0
    %207 = vmatprep.mubr.bf16.mxu0 0
    %208 = vmatmul.mubr.bf16.gmra.mrb[0].mxu0 %v122
    %v209 = vpop.f32.mrb[0].mxu0
    %v210 = vadd.f32 0.0, %v209
    %v211 = vpop.f32.mrb[0].mxu0
    %v212 = vpop.f32.mrb[0].mxu0
    %v213 = vadd.f32 0.0, %v212
    %v214 = vpop.f32.mrb[0].mxu0
    %215 = vmatprep.mubr.bf16.mxu0 0
    %216 = vmatmul.mubr.bf16.gmra.mrb[0].mxu0 %v125
    %v217 = vpop.f32.mrb[0].mxu0
    %v218 = vadd.f32 0.0, %v217
    %v219 = vpop.f32.mrb[0].mxu0
    %v220 = vpop.f32.mrb[0].mxu0
    %v221 = vadd.f32 0.0, %v220
    %v222 = vpop.f32.mrb[0].mxu0
    %223 = vdwg.mxu0
    %v224 = vld [vmem:[%s11] sm:$0x1]
    %v225 = vlaneseq
    %v226 = vshrl.u32 %v225, 7
    %v227 = vsub.s32 0, %v226
    %v228 = vrot.slane %v224, %v227
    %v229 = vmul.f32 %v162, %v228
    %v230 = vmul.f32 %v165, %v228
    %v231 = vmul.f32 %v170, %v228
    %v232 = vmul.f32 %v173, %v228
    %v233 = vmul.f32 %v178, %v228
    %v234 = vmul.f32 %v181, %v228
    %v235 = vmul.f32 %v186, %v228
    %v236 = vmul.f32 %v189, %v228
    %v237 = vmul.f32 %v194, %v228
    %v238 = vmul.f32 %v197, %v228
    %v239 = vmul.f32 %v202, %v228
    %v240 = vmul.f32 %v205, %v228
    %v241 = vmul.f32 %v210, %v228
    %v242 = vmul.f32 %v213, %v228
    %v243 = vmul.f32 %v218, %v228
    %v244 = vmul.f32 %v221, %v228
    %v245 = vld [vmem:[%s11 + $0x1] sm:$0x1]
    %v246 = vlaneseq
    %v247 = vshrl.u32 %v246, 7
    %v248 = vsub.s32 0, %v247
    %v249 = vrot.slane %v245, %v248
    %v250 = vadd.f32 %v229, %v249
    %v251 = vadd.f32 %v230, %v249
    %v252 = vadd.f32 %v231, %v249
    %v253 = vadd.f32 %v232, %v249
    %v254 = vadd.f32 %v233, %v249
    %v255 = vadd.f32 %v234, %v249
    %v256 = vadd.f32 %v235, %v249
    %v257 = vadd.f32 %v236, %v249
    %v258 = vadd.f32 %v237, %v249
    %v259 = vadd.f32 %v238, %v249
    %v260 = vadd.f32 %v239, %v249
    %v261 = vadd.f32 %v240, %v249
    %v262 = vadd.f32 %v241, %v249
    %v263 = vadd.f32 %v242, %v249
    %v264 = vadd.f32 %v243, %v249
    %v265 = vadd.f32 %v244, %v249
    %v266 = vmax.f32 %v250, 0.0
    %v267 = vmax.f32 %v251, 0.0
    %v268 = vmax.f32 %v252, 0.0
    %v269 = vmax.f32 %v253, 0.0
    %v270 = vmax.f32 %v254, 0.0
    %v271 = vmax.f32 %v255, 0.0
    %v272 = vmax.f32 %v256, 0.0
    %v273 = vmax.f32 %v257, 0.0
    %v274 = vmax.f32 %v258, 0.0
    %v275 = vmax.f32 %v259, 0.0
    %v276 = vmax.f32 %v260, 0.0
    %v277 = vmax.f32 %v261, 0.0
    %v278 = vmax.f32 %v262, 0.0
    %v279 = vmax.f32 %v263, 0.0
    %v280 = vmax.f32 %v264, 0.0
    %v281 = vmax.f32 %v265, 0.0
    %v282 = vpack.c.bf16 %v267, %v266
    %v283 = vpack.c.bf16 %v269, %v268
    %v284 = vpack.c.bf16 %v271, %v270
    %v285 = vpack.c.bf16 %v273, %v272
    %v286 = vpack.c.bf16 %v275, %v274
    %v287 = vpack.c.bf16 %v277, %v276
    %v288 = vpack.c.bf16 %v279, %v278
    %v289 = vpack.c.bf16 %v281, %v280
    %v290 = vld [vmem:[%s4] sm:$0xf]
    %v291 = vld [vmem:[%s4 + $0x4] sm:$0xf]
    %v292 = vld [vmem:[%s4 + $0x8] sm:$0xf]
    %v293 = vld [vmem:[%s4 + $0xc] sm:$0xf]
    %v294 = vld [vmem:[%s4 + $0x10] sm:$0xf]
    %v295 = vld [vmem:[%s4 + $0x14] sm:$0xf]
    %v296 = vld [vmem:[%s4 + $0x18] sm:$0xf]
    %v297 = vld [vmem:[%s4 + $0x1c] sm:$0xf]
    %v298 = vld [vmem:[%s4 + $0x20] sm:$0xf]
    %v299 = vld [vmem:[%s4 + $0x24] sm:$0xf]
    %v300 = vld [vmem:[%s4 + $0x28] sm:$0xf]
    %v301 = vld [vmem:[%s4 + $0x2c] sm:$0xf]
    %v302 = vld [vmem:[%s4 + $0x30] sm:$0xf]
    %v303 = vld [vmem:[%s4 + $0x34] sm:$0xf]
    %v304 = vld [vmem:[%s4 + $0x38] sm:$0xf]
    %v305 = vld [vmem:[%s4 + $0x3c] sm:$0xf]
    %v322 = vunpack.c.l.b16 %v290
    %v323 = vunpack.c.l.b16 %v291
    %v324 = vunpack.c.l.b16 %v292
    %v325 = vunpack.c.l.b16 %v293
    %v326 = vunpack.c.l.b16 %v294
    %v327 = vunpack.c.l.b16 %v295
    %v328 = vunpack.c.l.b16 %v296
    %v329 = vunpack.c.l.b16 %v297
    %v330 = vunpack.c.l.b16 %v298
    %v331 = vunpack.c.l.b16 %v299
    %v332 = vunpack.c.l.b16 %v300
    %v333 = vunpack.c.l.b16 %v301
    %v334 = vunpack.c.l.b16 %v302
    %v335 = vunpack.c.l.b16 %v303
    %v336 = vunpack.c.l.b16 %v304
    %v337 = vunpack.c.l.b16 %v305
    %v338 = vpack.c.b16 %v323, %v322
    %v339 = vpack.c.b16 %v325, %v324
    %v340 = vpack.c.b16 %v327, %v326
    %v341 = vpack.c.b16 %v329, %v328
    %v342 = vpack.c.b16 %v331, %v330
    %v343 = vpack.c.b16 %v333, %v332
    %v344 = vpack.c.b16 %v335, %v334
    %v345 = vpack.c.b16 %v337, %v336
    %354 = vmatprep.subr.bf16.mxu0 0
    %355 = vmatpush1.bf16.msra.mxu0 %v338
    %356 = vmatprep.subr.bf16.mxu0 0
    %357 = vmatpush1.bf16.msra.mxu0 %v339
    %358 = vmatprep.subr.bf16.mxu0 0
    %359 = vmatpush1.bf16.msra.mxu0 %v340
    %360 = vmatprep.subr.bf16.mxu0 0
    %361 = vmatpush1.bf16.msra.mxu0 %v341
    %362 = vmatprep.subr.bf16.mxu0 0
    %363 = vmatpush1.bf16.msra.mxu0 %v342
    %364 = vmatprep.subr.bf16.mxu0 0
    %365 = vmatpush1.bf16.msra.mxu0 %v343
    %366 = vmatprep.subr.bf16.mxu0 0
    %367 = vmatpush1.bf16.msra.mxu0 %v344
    %368 = vmatprep.subr.bf16.mxu0 0
    %369 = vmatpush1.bf16.msra.mxu0 %v345
    %370 = vmatprep.subr.bf16.mxu0 0
    %371 = vmatpush1.bf16.msra.mxu0 0
    %372 = vmatprep.subr.bf16.mxu0 0
    %373 = vmatpush1.bf16.msra.mxu0 0
    %374 = vmatprep.subr.bf16.mxu0 0
    %375 = vmatpush1.bf16.msra.mxu0 0
    %376 = vmatprep.subr.bf16.mxu0 0
    %377 = vmatpush1.bf16.msra.mxu0 0
    %378 = vmatprep.subr.bf16.mxu0 0
    %379 = vmatpush1.bf16.msra.mxu0 0
    %380 = vmatprep.subr.bf16.mxu0 0
    %381 = vmatpush1.bf16.msra.mxu0 0
    %382 = vmatprep.subr.bf16.mxu0 0
    %383 = vmatpush1.bf16.msra.mxu0 0
    %384 = vmatprep.subr.bf16.mxu0 0
    %385 = vmatpush1.bf16.msra.mxu0 0
    %386 = vmatprep.mubr.bf16.mxu0 0
    %387 = vmatmul.mubr.bf16.gmra.mrb[0].mxu0 %v282
    %v388 = vpop.f32.mrb[0].mxu0
    %v389 = vadd.f32 0.0, %v388
    %v390 = vpop.f32.mrb[0].mxu0
    %v391 = vpop.f32.mrb[0].mxu0
    %v392 = vadd.f32 0.0, %v391
    %v393 = vpop.f32.mrb[0].mxu0
    %394 = vmatprep.mubr.bf16.mxu0 0
    %395 = vmatmul.mubr.bf16.gmra.mrb[0].mxu0 %v283
    %v396 = vpop.f32.mrb[0].mxu0
    %v397 = vadd.f32 0.0, %v396
    %v398 = vpop.f32.mrb[0].mxu0
    %v399 = vpop.f32.mrb[0].mxu0
    %v400 = vadd.f32 0.0, %v399
    %v401 = vpop.f32.mrb[0].mxu0
    %402 = vmatprep.mubr.bf16.mxu0 0
    %403 = vmatmul.mubr.bf16.gmra.mrb[0].mxu0 %v284
    %v404 = vpop.f32.mrb[0].mxu0
    %v405 = vadd.f32 0.0, %v404
    %v406 = vpop.f32.mrb[0].mxu0
    %v407 = vpop.f32.mrb[0].mxu0
    %v408 = vadd.f32 0.0, %v407
    %v409 = vpop.f32.mrb[0].mxu0
    %410 = vmatprep.mubr.bf16.mxu0 0
    %411 = vmatmul.mubr.bf16.gmra.mrb[0].mxu0 %v285
    %v412 = vpop.f32.mrb[0].mxu0
    %v413 = vadd.f32 0.0, %v412
    %v414 = vpop.f32.mrb[0].mxu0
    %v415 = vpop.f32.mrb[0].mxu0
    %v416 = vadd.f32 0.0, %v415
    %v417 = vpop.f32.mrb[0].mxu0
    %418 = vmatprep.mubr.bf16.mxu0 0
    %419 = vmatmul.mubr.bf16.gmra.mrb[0].mxu0 %v286
    %v420 = vpop.f32.mrb[0].mxu0
    %v421 = vadd.f32 0.0, %v420
    %v422 = vpop.f32.mrb[0].mxu0
    %v423 = vpop.f32.mrb[0].mxu0
    %v424 = vadd.f32 0.0, %v423
    %v425 = vpop.f32.mrb[0].mxu0
    %426 = vmatprep.mubr.bf16.mxu0 0
    %427 = vmatmul.mubr.bf16.gmra.mrb[0].mxu0 %v287
    %v428 = vpop.f32.mrb[0].mxu0
    %v429 = vadd.f32 0.0, %v428
    %v430 = vpop.f32.mrb[0].mxu0
    %v431 = vpop.f32.mrb[0].mxu0
    %v432 = vadd.f32 0.0, %v431
    %v433 = vpop.f32.mrb[0].mxu0
    %434 = vmatprep.mubr.bf16.mxu0 0
    %435 = vmatmul.mubr.bf16.gmra.mrb[0].mxu0 %v288
    %v436 = vpop.f32.mrb[0].mxu0
    %v437 = vadd.f32 0.0, %v436
    %v438 = vpop.f32.mrb[0].mxu0
    %v439 = vpop.f32.mrb[0].mxu0
    %v440 = vadd.f32 0.0, %v439
    %v441 = vpop.f32.mrb[0].mxu0
    %442 = vmatprep.mubr.bf16.mxu0 0
    %443 = vmatmul.mubr.bf16.gmra.mrb[0].mxu0 %v289
    %v444 = vpop.f32.mrb[0].mxu0
    %v445 = vadd.f32 0.0, %v444
    %v446 = vpop.f32.mrb[0].mxu0
    %v447 = vpop.f32.mrb[0].mxu0
    %v448 = vadd.f32 0.0, %v447
    %v449 = vpop.f32.mrb[0].mxu0
    %450 = vdwg.mxu0
    %v451 = vld [vmem:[%s11 + $0x2] sm:$0x1]
    %v452 = vlaneseq
    %v453 = vshrl.u32 %v452, 7
    %v454 = vsub.s32 0, %v453
    %v455 = vrot.slane %v451, %v454
    %v456 = vmul.f32 %v389, %v455
    %v457 = vmul.f32 %v392, %v455
    %v458 = vmul.f32 %v397, %v455
    %v459 = vmul.f32 %v400, %v455
    %v460 = vmul.f32 %v405, %v455
    %v461 = vmul.f32 %v408, %v455
    %v462 = vmul.f32 %v413, %v455
    %v463 = vmul.f32 %v416, %v455
    %v464 = vmul.f32 %v421, %v455
    %v465 = vmul.f32 %v424, %v455
    %v466 = vmul.f32 %v429, %v455
    %v467 = vmul.f32 %v432, %v455
    %v468 = vmul.f32 %v437, %v455
    %v469 = vmul.f32 %v440, %v455
    %v470 = vmul.f32 %v445, %v455
    %v471 = vmul.f32 %v448, %v455
    %v472 = vld [vmem:[%s11 + $0x3] sm:$0x1]
    %v473 = vlaneseq
    %v474 = vshrl.u32 %v473, 7
    %v475 = vsub.s32 0, %v474
    %v476 = vrot.slane %v472, %v475
    %v477 = vadd.f32 %v456, %v476
    %v478 = vadd.f32 %v457, %v476
    %v479 = vadd.f32 %v458, %v476
    %v480 = vadd.f32 %v459, %v476
    %v481 = vadd.f32 %v460, %v476
    %v482 = vadd.f32 %v461, %v476
    %v483 = vadd.f32 %v462, %v476
    %v484 = vadd.f32 %v463, %v476
    %v485 = vadd.f32 %v464, %v476
    %v486 = vadd.f32 %v465, %v476
    %v487 = vadd.f32 %v466, %v476
    %v488 = vadd.f32 %v467, %v476
    %v489 = vadd.f32 %v468, %v476
    %v490 = vadd.f32 %v469, %v476
    %v491 = vadd.f32 %v470, %v476
    %v492 = vadd.f32 %v471, %v476
    %v493 = vmax.f32 %v477, 0.0
    %v494 = vmax.f32 %v478, 0.0
    %v495 = vmax.f32 %v479, 0.0
    %v496 = vmax.f32 %v480, 0.0
    %v497 = vmax.f32 %v481, 0.0
    %v498 = vmax.f32 %v482, 0.0
    %v499 = vmax.f32 %v483, 0.0
    %v500 = vmax.f32 %v484, 0.0
    %v501 = vmax.f32 %v485, 0.0
    %v502 = vmax.f32 %v486, 0.0
    %v503 = vmax.f32 %v487, 0.0
    %v504 = vmax.f32 %v488, 0.0
    %v505 = vmax.f32 %v489, 0.0
    %v506 = vmax.f32 %v490, 0.0
    %v507 = vmax.f32 %v491, 0.0
    %v508 = vmax.f32 %v492, 0.0
    %v509 = vpack.c.bf16 %v494, %v493
    %v510 = vpack.c.bf16 %v496, %v495
    %v511 = vpack.c.bf16 %v498, %v497
    %v512 = vpack.c.bf16 %v500, %v499
    %v513 = vpack.c.bf16 %v502, %v501
    %v514 = vpack.c.bf16 %v504, %v503
    %v515 = vpack.c.bf16 %v506, %v505
    %v516 = vpack.c.bf16 %v508, %v507
    %v517 = vld [vmem:[%s5] sm:$0xf]
    %v518 = vld [vmem:[%s5 + $0x4] sm:$0xf]
    %v519 = vld [vmem:[%s5 + $0x8] sm:$0xf]
    %v520 = vld [vmem:[%s5 + $0xc] sm:$0xf]
    %v521 = vld [vmem:[%s5 + $0x10] sm:$0xf]
    %v522 = vld [vmem:[%s5 + $0x14] sm:$0xf]
    %v523 = vld [vmem:[%s5 + $0x18] sm:$0xf]
    %v524 = vld [vmem:[%s5 + $0x1c] sm:$0xf]
    %v533 = vunpack.c.l.b16 %v517
    %v534 = vunpack.c.l.b16 %v518
    %v535 = vunpack.c.l.b16 %v519
    %v536 = vunpack.c.l.b16 %v520
    %v537 = vunpack.c.l.b16 %v521
    %v538 = vunpack.c.l.b16 %v522
    %v539 = vunpack.c.l.b16 %v523
    %v540 = vunpack.c.l.b16 %v524
    %v541 = vpack.c.b16 %v534, %v533
    %v542 = vpack.c.b16 %v536, %v535
    %v543 = vpack.c.b16 %v538, %v537
    %v544 = vpack.c.b16 %v540, %v539
    %v550 = vsel %vm102, %v509, 0
    %v553 = vsel %vm102, %v510, 0
    %v556 = vsel %vm102, %v511, 0
    %v559 = vsel %vm102, %v512, 0
    %v562 = vsel %vm102, %v513, 0
    %v565 = vsel %vm102, %v514, 0
    %v568 = vsel %vm102, %v515, 0
    %v571 = vsel %vm102, %v516, 0
    %573 = vmatprep.subr.bf16.mxu0 0
    %574 = vmatpush1.bf16.msra.mxu0 %v541
    %575 = vmatprep.subr.bf16.mxu0 0
    %576 = vmatpush1.bf16.msra.mxu0 %v542
    %577 = vmatprep.subr.bf16.mxu0 0
    %578 = vmatpush1.bf16.msra.mxu0 %v543
    %579 = vmatprep.subr.bf16.mxu0 0
    %580 = vmatpush1.bf16.msra.mxu0 %v544
    %581 = vmatprep.subr.bf16.mxu0 0
    %582 = vmatpush1.bf16.msra.mxu0 0
    %583 = vmatprep.subr.bf16.mxu0 0
    %584 = vmatpush1.bf16.msra.mxu0 0
    %585 = vmatprep.subr.bf16.mxu0 0
    %586 = vmatpush1.bf16.msra.mxu0 0
    %587 = vmatprep.subr.bf16.mxu0 0
    %588 = vmatpush1.bf16.msra.mxu0 0
    %589 = vmatprep.subr.bf16.mxu0 0
    %590 = vmatpush1.bf16.msra.mxu0 0
    %591 = vmatprep.subr.bf16.mxu0 0
    %592 = vmatpush1.bf16.msra.mxu0 0
    %593 = vmatprep.subr.bf16.mxu0 0
    %594 = vmatpush1.bf16.msra.mxu0 0
    %595 = vmatprep.subr.bf16.mxu0 0
    %596 = vmatpush1.bf16.msra.mxu0 0
    %597 = vmatprep.subr.bf16.mxu0 0
    %598 = vmatpush1.bf16.msra.mxu0 0
    %599 = vmatprep.subr.bf16.mxu0 0
    %600 = vmatpush1.bf16.msra.mxu0 0
    %601 = vmatprep.subr.bf16.mxu0 0
    %602 = vmatpush1.bf16.msra.mxu0 0
    %603 = vmatprep.subr.bf16.mxu0 0
    %604 = vmatpush1.bf16.msra.mxu0 0
    %605 = vmatprep.mubr.bf16.mxu0 0
    %606 = vmatmul.mubr.bf16.gmra.mrb[0].mxu0 %v550
    %v607 = vpop.f32.mrb[0].mxu0
    %v608 = vadd.f32 0.0, %v607
    %v609 = vpop.f32.mrb[0].mxu0
    %v610 = vpop.f32.mrb[0].mxu0
    %v611 = vadd.f32 0.0, %v610
    %v612 = vpop.f32.mrb[0].mxu0
    %613 = vmatprep.mubr.bf16.mxu0 0
    %614 = vmatmul.mubr.bf16.gmra.mrb[0].mxu0 %v553
    %v615 = vpop.f32.mrb[0].mxu0
    %v616 = vadd.f32 0.0, %v615
    %v617 = vpop.f32.mrb[0].mxu0
    %v618 = vpop.f32.mrb[0].mxu0
    %v619 = vadd.f32 0.0, %v618
    %v620 = vpop.f32.mrb[0].mxu0
    %621 = vmatprep.mubr.bf16.mxu0 0
    %622 = vmatmul.mubr.bf16.gmra.mrb[0].mxu0 %v556
    %v623 = vpop.f32.mrb[0].mxu0
    %v624 = vadd.f32 0.0, %v623
    %v625 = vpop.f32.mrb[0].mxu0
    %v626 = vpop.f32.mrb[0].mxu0
    %v627 = vadd.f32 0.0, %v626
    %v628 = vpop.f32.mrb[0].mxu0
    %629 = vmatprep.mubr.bf16.mxu0 0
    %630 = vmatmul.mubr.bf16.gmra.mrb[0].mxu0 %v559
    %v631 = vpop.f32.mrb[0].mxu0
    %v632 = vadd.f32 0.0, %v631
    %v633 = vpop.f32.mrb[0].mxu0
    %v634 = vpop.f32.mrb[0].mxu0
    %v635 = vadd.f32 0.0, %v634
    %v636 = vpop.f32.mrb[0].mxu0
    %637 = vmatprep.mubr.bf16.mxu0 0
    %638 = vmatmul.mubr.bf16.gmra.mrb[0].mxu0 %v562
    %v639 = vpop.f32.mrb[0].mxu0
    %v640 = vadd.f32 0.0, %v639
    %v641 = vpop.f32.mrb[0].mxu0
    %v642 = vpop.f32.mrb[0].mxu0
    %v643 = vadd.f32 0.0, %v642
    %v644 = vpop.f32.mrb[0].mxu0
    %645 = vmatprep.mubr.bf16.mxu0 0
    %646 = vmatmul.mubr.bf16.gmra.mrb[0].mxu0 %v565
    %v647 = vpop.f32.mrb[0].mxu0
    %v648 = vadd.f32 0.0, %v647
    %v649 = vpop.f32.mrb[0].mxu0
    %v650 = vpop.f32.mrb[0].mxu0
    %v651 = vadd.f32 0.0, %v650
    %v652 = vpop.f32.mrb[0].mxu0
    %653 = vmatprep.mubr.bf16.mxu0 0
    %654 = vmatmul.mubr.bf16.gmra.mrb[0].mxu0 %v568
    %v655 = vpop.f32.mrb[0].mxu0
    %v656 = vadd.f32 0.0, %v655
    %v657 = vpop.f32.mrb[0].mxu0
    %v658 = vpop.f32.mrb[0].mxu0
    %v659 = vadd.f32 0.0, %v658
    %v660 = vpop.f32.mrb[0].mxu0
    %661 = vmatprep.mubr.bf16.mxu0 0
    %662 = vmatmul.mubr.bf16.gmra.mrb[0].mxu0 %v571
    %v663 = vpop.f32.mrb[0].mxu0
    %v664 = vadd.f32 0.0, %v663
    %v665 = vpop.f32.mrb[0].mxu0
    %v666 = vpop.f32.mrb[0].mxu0
    %v667 = vadd.f32 0.0, %v666
    %v668 = vpop.f32.mrb[0].mxu0
    %669 = vdwg.mxu0
    %v670 = vld [vmem:[%s11 + $0x4] sm:$0x1]
    %v671 = vlaneseq
    %v672 = vshrl.u32 %v671, 7
    %v673 = vsub.s32 0, %v672
    %v674 = vrot.slane %v670, %v673
    %v675 = vmul.f32 %v608, %v674
    %v676 = vmul.f32 %v611, %v674
    %v677 = vmul.f32 %v616, %v674
    %v678 = vmul.f32 %v619, %v674
    %v679 = vmul.f32 %v624, %v674
    %v680 = vmul.f32 %v627, %v674
    %v681 = vmul.f32 %v632, %v674
    %v682 = vmul.f32 %v635, %v674
    %v683 = vmul.f32 %v640, %v674
    %v684 = vmul.f32 %v643, %v674
    %v685 = vmul.f32 %v648, %v674
    %v686 = vmul.f32 %v651, %v674
    %v687 = vmul.f32 %v656, %v674
    %v688 = vmul.f32 %v659, %v674
    %v689 = vmul.f32 %v664, %v674
    %v690 = vmul.f32 %v667, %v674
    %v691 = vld [vmem:[%s11 + $0x5] sm:$0x1]
    %v692 = vlaneseq
    %v693 = vshrl.u32 %v692, 7
    %v694 = vsub.s32 0, %v693
    %v695 = vrot.slane %v691, %v694
    %v696 = vadd.f32 %v675, %v695
    %v697 = vadd.f32 %v676, %v695
    %v698 = vadd.f32 %v677, %v695
    %v699 = vadd.f32 %v678, %v695
    %v700 = vadd.f32 %v679, %v695
    %v701 = vadd.f32 %v680, %v695
    %v702 = vadd.f32 %v681, %v695
    %v703 = vadd.f32 %v682, %v695
    %v704 = vadd.f32 %v683, %v695
    %v705 = vadd.f32 %v684, %v695
    %v706 = vadd.f32 %v685, %v695
    %v707 = vadd.f32 %v686, %v695
    %v708 = vadd.f32 %v687, %v695
    %v709 = vadd.f32 %v688, %v695
    %v710 = vadd.f32 %v689, %v695
    %v711 = vadd.f32 %v690, %v695
    %v712 = vmax.f32 %v696, 0.0
    %v713 = vmax.f32 %v697, 0.0
    %v714 = vmax.f32 %v698, 0.0
    %v715 = vmax.f32 %v699, 0.0
    %v716 = vmax.f32 %v700, 0.0
    %v717 = vmax.f32 %v701, 0.0
    %v718 = vmax.f32 %v702, 0.0
    %v719 = vmax.f32 %v703, 0.0
    %v720 = vmax.f32 %v704, 0.0
    %v721 = vmax.f32 %v705, 0.0
    %v722 = vmax.f32 %v706, 0.0
    %v723 = vmax.f32 %v707, 0.0
    %v724 = vmax.f32 %v708, 0.0
    %v725 = vmax.f32 %v709, 0.0
    %v726 = vmax.f32 %v710, 0.0
    %v727 = vmax.f32 %v711, 0.0
    %vm728 = vcmask 261120
    %729 = vst.msk [vmem:[%s12] sm:$0xff] %vm728, %v712
    %730 = vst.msk [vmem:[%s12 + $0x8] sm:$0xff] %vm728, %v713
    %731 = vst.msk [vmem:[%s12 + $0x10] sm:$0xff] %vm728, %v714
    %732 = vst.msk [vmem:[%s12 + $0x18] sm:$0xff] %vm728, %v715
    %733 = vst.msk [vmem:[%s12 + $0x20] sm:$0xff] %vm728, %v716
    %734 = vst.msk [vmem:[%s12 + $0x28] sm:$0xff] %vm728, %v717
    %735 = vst.msk [vmem:[%s12 + $0x30] sm:$0xff] %vm728, %v718
    %736 = vst.msk [vmem:[%s12 + $0x38] sm:$0xff] %vm728, %v719
    %737 = vst.msk [vmem:[%s12 + $0x40] sm:$0xff] %vm728, %v720
    %738 = vst.msk [vmem:[%s12 + $0x48] sm:$0xff] %vm728, %v721
    %739 = vst.msk [vmem:[%s12 + $0x50] sm:$0xff] %vm728, %v722
    %740 = vst.msk [vmem:[%s12 + $0x58] sm:$0xff] %vm728, %v723
    %741 = vst.msk [vmem:[%s12 + $0x60] sm:$0xff] %vm728, %v724
    %742 = vst.msk [vmem:[%s12 + $0x68] sm:$0xff] %vm728, %v725
    %743 = vst.msk [vmem:[%s12 + $0x70] sm:$0xff] %vm728, %v726
    %744 = vst.msk [vmem:[%s12 + $0x78] sm:$0xff] %vm728, %v727
    %v745 = vpack.c.bf16 %v713, %v712
    %v746 = vpack.c.bf16 %v715, %v714
    %v747 = vpack.c.bf16 %v717, %v716
    %v748 = vpack.c.bf16 %v719, %v718
    %v749 = vpack.c.bf16 %v721, %v720
    %v750 = vpack.c.bf16 %v723, %v722
    %v751 = vpack.c.bf16 %v725, %v724
    %v752 = vpack.c.bf16 %v727, %v726
    %v753 = vld [vmem:[%s6] sm:$0xf]
    %v754 = vld [vmem:[%s6 + $0x4] sm:$0xf]
    %v755 = vld [vmem:[%s6 + $0x8] sm:$0xf]
    %v756 = vld [vmem:[%s6 + $0xc] sm:$0xf]
    %v761 = vunpack.c.l.b16 %v753
    %v762 = vunpack.c.l.b16 %v754
    %v763 = vunpack.c.l.b16 %v755
    %v764 = vunpack.c.l.b16 %v756
    %v765 = vpack.c.b16 %v762, %v761
    %v766 = vpack.c.b16 %v764, %v763
    %v770 = vsel %vm728, %v745, 0
    %v773 = vsel %vm728, %v746, 0
    %v776 = vsel %vm728, %v747, 0
    %v779 = vsel %vm728, %v748, 0
    %v782 = vsel %vm728, %v749, 0
    %v785 = vsel %vm728, %v750, 0
    %v788 = vsel %vm728, %v751, 0
    %v791 = vsel %vm728, %v752, 0
    %793 = vmatprep.subr.bf16.mxu0 0
    %794 = vmatpush1.bf16.msra.mxu0 %v765
    %795 = vmatprep.subr.bf16.mxu0 0
    %796 = vmatpush1.bf16.msra.mxu0 %v766
    %797 = vmatprep.subr.bf16.mxu0 0
    %798 = vmatpush1.bf16.msra.mxu0 0
    %799 = vmatprep.subr.bf16.mxu0 0
    %800 = vmatpush1.bf16.msra.mxu0 0
    %801 = vmatprep.subr.bf16.mxu0 0
    %802 = vmatpush1.bf16.msra.mxu0 0
    %803 = vmatprep.subr.bf16.mxu0 0
    %804 = vmatpush1.bf16.msra.mxu0 0
    %805 = vmatprep.subr.bf16.mxu0 0
    %806 = vmatpush1.bf16.msra.mxu0 0
    %807 = vmatprep.subr.bf16.mxu0 0
    %808 = vmatpush1.bf16.msra.mxu0 0
    %809 = vmatprep.subr.bf16.mxu0 0
    %810 = vmatpush1.bf16.msra.mxu0 0
    %811 = vmatprep.subr.bf16.mxu0 0
    %812 = vmatpush1.bf16.msra.mxu0 0
    %813 = vmatprep.subr.bf16.mxu0 0
    %814 = vmatpush1.bf16.msra.mxu0 0
    %815 = vmatprep.subr.bf16.mxu0 0
    %816 = vmatpush1.bf16.msra.mxu0 0
    %817 = vmatprep.subr.bf16.mxu0 0
    %818 = vmatpush1.bf16.msra.mxu0 0
    %819 = vmatprep.subr.bf16.mxu0 0
    %820 = vmatpush1.bf16.msra.mxu0 0
    %821 = vmatprep.subr.bf16.mxu0 0
    %822 = vmatpush1.bf16.msra.mxu0 0
    %823 = vmatprep.subr.bf16.mxu0 0
    %824 = vmatpush1.bf16.msra.mxu0 0
    %825 = vmatprep.mubr.bf16.mxu0 0
    %826 = vmatmul.mubr.bf16.gmra.mrb[0].mxu0 %v770
    %v827 = vpop.f32.mrb[0].mxu0
    %v828 = vadd.f32 0.0, %v827
    %v829 = vpop.f32.mrb[0].mxu0
    %v830 = vpop.f32.mrb[0].mxu0
    %v831 = vadd.f32 0.0, %v830
    %v832 = vpop.f32.mrb[0].mxu0
    %833 = vmatprep.mubr.bf16.mxu0 0
    %834 = vmatmul.mubr.bf16.gmra.mrb[0].mxu0 %v773
    %v835 = vpop.f32.mrb[0].mxu0
    %v836 = vadd.f32 0.0, %v835
    %v837 = vpop.f32.mrb[0].mxu0
    %v838 = vpop.f32.mrb[0].mxu0
    %v839 = vadd.f32 0.0, %v838
    %v840 = vpop.f32.mrb[0].mxu0
    %841 = vmatprep.mubr.bf16.mxu0 0
    %842 = vmatmul.mubr.bf16.gmra.mrb[0].mxu0 %v776
    %v843 = vpop.f32.mrb[0].mxu0
    %v844 = vadd.f32 0.0, %v843
    %v845 = vpop.f32.mrb[0].mxu0
    %v846 = vpop.f32.mrb[0].mxu0
    %v847 = vadd.f32 0.0, %v846
    %v848 = vpop.f32.mrb[0].mxu0
    %849 = vmatprep.mubr.bf16.mxu0 0
    %850 = vmatmul.mubr.bf16.gmra.mrb[0].mxu0 %v779
    %v851 = vpop.f32.mrb[0].mxu0
    %v852 = vadd.f32 0.0, %v851
    %v853 = vpop.f32.mrb[0].mxu0
    %v854 = vpop.f32.mrb[0].mxu0
    %v855 = vadd.f32 0.0, %v854
    %v856 = vpop.f32.mrb[0].mxu0
    %857 = vmatprep.mubr.bf16.mxu0 0
    %858 = vmatmul.mubr.bf16.gmra.mrb[0].mxu0 %v782
    %v859 = vpop.f32.mrb[0].mxu0
    %v860 = vadd.f32 0.0, %v859
    %v861 = vpop.f32.mrb[0].mxu0
    %v862 = vpop.f32.mrb[0].mxu0
    %v863 = vadd.f32 0.0, %v862
    %v864 = vpop.f32.mrb[0].mxu0
    %865 = vmatprep.mubr.bf16.mxu0 0
    %866 = vmatmul.mubr.bf16.gmra.mrb[0].mxu0 %v785
    %v867 = vpop.f32.mrb[0].mxu0
    %v868 = vadd.f32 0.0, %v867
    %v869 = vpop.f32.mrb[0].mxu0
    %v870 = vpop.f32.mrb[0].mxu0
    %v871 = vadd.f32 0.0, %v870
    %v872 = vpop.f32.mrb[0].mxu0
    %873 = vmatprep.mubr.bf16.mxu0 0
    %874 = vmatmul.mubr.bf16.gmra.mrb[0].mxu0 %v788
    %v875 = vpop.f32.mrb[0].mxu0
    %v876 = vadd.f32 0.0, %v875
    %v877 = vpop.f32.mrb[0].mxu0
    %v878 = vpop.f32.mrb[0].mxu0
    %v879 = vadd.f32 0.0, %v878
    %v880 = vpop.f32.mrb[0].mxu0
    %881 = vmatprep.mubr.bf16.mxu0 0
    %882 = vmatmul.mubr.bf16.gmra.mrb[0].mxu0 %v791
    %v883 = vpop.f32.mrb[0].mxu0
    %v884 = vadd.f32 0.0, %v883
    %v885 = vpop.f32.mrb[0].mxu0
    %v886 = vpop.f32.mrb[0].mxu0
    %v887 = vadd.f32 0.0, %v886
    %v888 = vpop.f32.mrb[0].mxu0
    %889 = vdwg.mxu0
    %v890 = vld [vmem:[%s1] sm:$0xf]
    %v891 = vld [vmem:[%s1 + $0x4] sm:$0xf]
    %v892 = vld [vmem:[%s1 + $0x8] sm:$0xf]
    %v893 = vld [vmem:[%s1 + $0xc] sm:$0xf]
    %v894 = vld [vmem:[%s1 + $0x10] sm:$0xf]
    %v895 = vld [vmem:[%s1 + $0x14] sm:$0xf]
    %v896 = vld [vmem:[%s1 + $0x18] sm:$0xf]
    %v897 = vld [vmem:[%s1 + $0x1c] sm:$0xf]
    %v898 = vld [vmem:[%s1 + $0x20] sm:$0xf]
    %v899 = vld [vmem:[%s1 + $0x24] sm:$0xf]
    %v900 = vld [vmem:[%s1 + $0x28] sm:$0xf]
    %v901 = vld [vmem:[%s1 + $0x2c] sm:$0xf]
    %v902 = vld [vmem:[%s1 + $0x30] sm:$0xf]
    %v903 = vld [vmem:[%s1 + $0x34] sm:$0xf]
    %v904 = vld [vmem:[%s1 + $0x38] sm:$0xf]
    %v905 = vld [vmem:[%s1 + $0x3c] sm:$0xf]
    %v906 = vpack.c.bf16 %v831, %v828
    %v907 = vpack.c.bf16 %v839, %v836
    %v908 = vpack.c.bf16 %v847, %v844
    %v909 = vpack.c.bf16 %v855, %v852
    %v910 = vpack.c.bf16 %v863, %v860
    %v911 = vpack.c.bf16 %v871, %v868
    %v912 = vpack.c.bf16 %v879, %v876
    %v913 = vpack.c.bf16 %v887, %v884
    %v914 = vld [vmem:[%s11 + $0x6] sm:$0x1]
    %v915 = vlaneseq
    %v916 = vshrl.u32 %v915, 7
    %v917 = vsub.s32 0, %v916
    %v918 = vrot.slane %v914, %v917
    %v935 = vunpack.c.l.b16 %v890
    %v936 = vunpack.c.l.b16 %v891
    %v937 = vunpack.c.l.b16 %v892
    %v938 = vunpack.c.l.b16 %v893
    %v939 = vunpack.c.l.b16 %v894
    %v940 = vunpack.c.l.b16 %v895
    %v941 = vunpack.c.l.b16 %v896
    %v942 = vunpack.c.l.b16 %v897
    %v943 = vunpack.c.l.b16 %v898
    %v944 = vunpack.c.l.b16 %v899
    %v945 = vunpack.c.l.b16 %v900
    %v946 = vunpack.c.l.b16 %v901
    %v947 = vunpack.c.l.b16 %v902
    %v948 = vunpack.c.l.b16 %v903
    %v949 = vunpack.c.l.b16 %v904
    %v950 = vunpack.c.l.b16 %v905
    %v951 = vpack.c.b16 %v936, %v935
    %v952 = vpack.c.b16 %v938, %v937
    %v953 = vpack.c.b16 %v940, %v939
    %v954 = vpack.c.b16 %v942, %v941
    %v955 = vpack.c.b16 %v944, %v943
    %v956 = vpack.c.b16 %v946, %v945
    %v957 = vpack.c.b16 %v948, %v947
    %v958 = vpack.c.b16 %v950, %v949
    %967 = vmatprep.subr.bf16.mxu0 0
    %968 = vmatpush1.bf16.msra.mxu0 %v906
    %969 = vmatprep.subr.bf16.mxu0 0
    %970 = vmatpush1.bf16.msra.mxu0 %v907
    %971 = vmatprep.subr.bf16.mxu0 0
    %972 = vmatpush1.bf16.msra.mxu0 %v908
    %973 = vmatprep.subr.bf16.mxu0 0
    %974 = vmatpush1.bf16.msra.mxu0 %v909
    %975 = vmatprep.subr.bf16.mxu0 0
    %976 = vmatpush1.bf16.msra.mxu0 %v910
    %977 = vmatprep.subr.bf16.mxu0 0
    %978 = vmatpush1.bf16.msra.mxu0 %v911
    %979 = vmatprep.subr.bf16.mxu0 0
    %980 = vmatpush1.bf16.msra.mxu0 %v912
    %981 = vmatprep.subr.bf16.mxu0 0
    %982 = vmatpush1.bf16.msra.mxu0 %v913
    %983 = vmatprep.subr.bf16.mxu0 0
    %984 = vmatpush1.bf16.msra.mxu0 0
    %985 = vmatprep.subr.bf16.mxu0 0
    %986 = vmatpush1.bf16.msra.mxu0 0
    %987 = vmatprep.subr.bf16.mxu0 0
    %988 = vmatpush1.bf16.msra.mxu0 0
    %989 = vmatprep.subr.bf16.mxu0 0
    %990 = vmatpush1.bf16.msra.mxu0 0
    %991 = vmatprep.subr.bf16.mxu0 0
    %992 = vmatpush1.bf16.msra.mxu0 0
    %993 = vmatprep.subr.bf16.mxu0 0
    %994 = vmatpush1.bf16.msra.mxu0 0
    %995 = vmatprep.subr.bf16.mxu0 0
    %996 = vmatpush1.bf16.msra.mxu0 0
    %997 = vmatprep.subr.bf16.mxu0 0
    %998 = vmatpush1.bf16.msra.mxu0 0
    %999 = vmatprep.mubr.bf16.mxu0 0
    %1000 = vmatmul.mubr.bf16.gmra.mrb[0].mxu0 %v951
    %v1001 = vpop.f32.mrb[0].mxu0
    %v1002 = vadd.f32 %v918, %v1001
    %v1003 = vpop.f32.mrb[0].mxu0
    %v1004 = vpop.f32.mrb[0].mxu0
    %v1005 = vadd.f32 %v918, %v1004
    %v1006 = vpop.f32.mrb[0].mxu0
    %1007 = vmatprep.mubr.bf16.mxu0 0
    %1008 = vmatmul.mubr.bf16.gmra.mrb[0].mxu0 %v952
    %v1009 = vpop.f32.mrb[0].mxu0
    %v1010 = vadd.f32 %v918, %v1009
    %v1011 = vpop.f32.mrb[0].mxu0
    %v1012 = vpop.f32.mrb[0].mxu0
    %v1013 = vadd.f32 %v918, %v1012
    %v1014 = vpop.f32.mrb[0].mxu0
    %1015 = vmatprep.mubr.bf16.mxu0 0
    %1016 = vmatmul.mubr.bf16.gmra.mrb[0].mxu0 %v953
    %v1017 = vpop.f32.mrb[0].mxu0
    %v1018 = vadd.f32 %v918, %v1017
    %v1019 = vpop.f32.mrb[0].mxu0
    %v1020 = vpop.f32.mrb[0].mxu0
    %v1021 = vadd.f32 %v918, %v1020
    %v1022 = vpop.f32.mrb[0].mxu0
    %1023 = vmatprep.mubr.bf16.mxu0 0
    %1024 = vmatmul.mubr.bf16.gmra.mrb[0].mxu0 %v954
    %v1025 = vpop.f32.mrb[0].mxu0
    %v1026 = vadd.f32 %v918, %v1025
    %v1027 = vpop.f32.mrb[0].mxu0
    %v1028 = vpop.f32.mrb[0].mxu0
    %v1029 = vadd.f32 %v918, %v1028
    %v1030 = vpop.f32.mrb[0].mxu0
    %1031 = vmatprep.mubr.bf16.mxu0 0
    %1032 = vmatmul.mubr.bf16.gmra.mrb[0].mxu0 %v955
    %v1033 = vpop.f32.mrb[0].mxu0
    %v1034 = vadd.f32 %v918, %v1033
    %v1035 = vpop.f32.mrb[0].mxu0
    %v1036 = vpop.f32.mrb[0].mxu0
    %v1037 = vadd.f32 %v918, %v1036
    %v1038 = vpop.f32.mrb[0].mxu0
    %1039 = vmatprep.mubr.bf16.mxu0 0
    %1040 = vmatmul.mubr.bf16.gmra.mrb[0].mxu0 %v956
    %v1041 = vpop.f32.mrb[0].mxu0
    %v1042 = vadd.f32 %v918, %v1041
    %v1043 = vpop.f32.mrb[0].mxu0
    %v1044 = vpop.f32.mrb[0].mxu0
    %v1045 = vadd.f32 %v918, %v1044
    %v1046 = vpop.f32.mrb[0].mxu0
    %1047 = vmatprep.mubr.bf16.mxu0 0
    %1048 = vmatmul.mubr.bf16.gmra.mrb[0].mxu0 %v957
    %v1049 = vpop.f32.mrb[0].mxu0
    %v1050 = vadd.f32 %v918, %v1049
    %v1051 = vpop.f32.mrb[0].mxu0
    %v1052 = vpop.f32.mrb[0].mxu0
    %v1053 = vadd.f32 %v918, %v1052
    %v1054 = vpop.f32.mrb[0].mxu0
    %1055 = vmatprep.mubr.bf16.mxu0 0
    %1056 = vmatmul.mubr.bf16.gmra.mrb[0].mxu0 %v958
    %v1057 = vpop.f32.mrb[0].mxu0
    %v1058 = vadd.f32 %v918, %v1057
    %v1059 = vpop.f32.mrb[0].mxu0
    %v1060 = vpop.f32.mrb[0].mxu0
    %v1061 = vadd.f32 %v918, %v1060
    %v1062 = vpop.f32.mrb[0].mxu0
    %1063 = vdwg.mxu0
    %1080 = vrot.lane.b32.xlu0 %v1002, 32
    %v1081 = vpop.permute.xlu0 %1080
    %1082 = vrot.lane.b32.xlu0 %v1005, 32
    %v1083 = vpop.permute.xlu0 %1082
    %1084 = vrot.lane.b32.xlu0 %v1010, 32
    %v1085 = vpop.permute.xlu0 %1084
    %1086 = vrot.lane.b32.xlu0 %v1013, 32
    %v1087 = vpop.permute.xlu0 %1086
    %1088 = vrot.lane.b32.xlu0 %v1018, 32
    %v1089 = vpop.permute.xlu0 %1088
    %1090 = vrot.lane.b32.xlu0 %v1021, 32
    %v1091 = vpop.permute.xlu0 %1090
    %1092 = vrot.lane.b32.xlu0 %v1026, 32
    %v1093 = vpop.permute.xlu0 %1092
    %1094 = vrot.lane.b32.xlu0 %v1029, 32
    %v1095 = vpop.permute.xlu0 %1094
    %1096 = vrot.lane.b32.xlu0 %v1034, 32
    %v1097 = vpop.permute.xlu0 %1096
    %1098 = vrot.lane.b32.xlu0 %v1037, 32
    %v1099 = vpop.permute.xlu0 %1098
    %1100 = vrot.lane.b32.xlu0 %v1042, 32
    %v1101 = vpop.permute.xlu0 %1100
    %1102 = vrot.lane.b32.xlu0 %v1045, 32
    %v1103 = vpop.permute.xlu0 %1102
    %1104 = vrot.lane.b32.xlu0 %v1050, 32
    %v1105 = vpop.permute.xlu0 %1104
    %1106 = vrot.lane.b32.xlu0 %v1053, 32
    %v1107 = vpop.permute.xlu0 %1106
    %1108 = vrot.lane.b32.xlu0 %v1058, 32
    %v1109 = vpop.permute.xlu0 %1108
    %1110 = vrot.lane.b32.xlu0 %v1061, 32
    %v1111 = vpop.permute.xlu0 %1110
    %vm1128 = vcmask 523520
    %1129 = vst.msk [vmem:[%s12] sm:$0xff] %vm1128, %v1081
    %1130 = vst.msk [vmem:[%s12 + $0x8] sm:$0xff] %vm1128, %v1083
    %1131 = vst.msk [vmem:[%s12 + $0x10] sm:$0xff] %vm1128, %v1085
    %1132 = vst.msk [vmem:[%s12 + $0x18] sm:$0xff] %vm1128, %v1087
    %1133 = vst.msk [vmem:[%s12 + $0x20] sm:$0xff] %vm1128, %v1089
    %1134 = vst.msk [vmem:[%s12 + $0x28] sm:$0xff] %vm1128, %v1091
    %1135 = vst.msk [vmem:[%s12 + $0x30] sm:$0xff] %vm1128, %v1093
    %1136 = vst.msk [vmem:[%s12 + $0x38] sm:$0xff] %vm1128, %v1095
    %1137 = vst.msk [vmem:[%s12 + $0x40] sm:$0xff] %vm1128, %v1097
    %1138 = vst.msk [vmem:[%s12 + $0x48] sm:$0xff] %vm1128, %v1099
    %1139 = vst.msk [vmem:[%s12 + $0x50] sm:$0xff] %vm1128, %v1101
    %1140 = vst.msk [vmem:[%s12 + $0x58] sm:$0xff] %vm1128, %v1103
    %1141 = vst.msk [vmem:[%s12 + $0x60] sm:$0xff] %vm1128, %v1105
    %1142 = vst.msk [vmem:[%s12 + $0x68] sm:$0xff] %vm1128, %v1107
    %1143 = vst.msk [vmem:[%s12 + $0x70] sm:$0xff] %vm1128, %v1109
    %1144 = vst.msk [vmem:[%s12 + $0x78] sm:$0xff] %vm1128, %v1111
    %v1145 = vpack.c.bf16 %v1005, %v1002
    %v1146 = vpack.c.bf16 %v1013, %v1010
    %v1147 = vpack.c.bf16 %v1021, %v1018
    %v1148 = vpack.c.bf16 %v1029, %v1026
    %v1149 = vpack.c.bf16 %v1037, %v1034
    %v1150 = vpack.c.bf16 %v1045, %v1042
    %v1151 = vpack.c.bf16 %v1053, %v1050
    %v1152 = vpack.c.bf16 %v1061, %v1058
    %v1153 = vld [vmem:[%s7] sm:$0xf]
    %v1154 = vld [vmem:[%s7 + $0x4] sm:$0xf]
    %v1155 = vld [vmem:[%s7 + $0x8] sm:$0xf]
    %v1156 = vld [vmem:[%s7 + $0xc] sm:$0xf]
    %v1161 = vunpack.c.l.b16 %v1153
    %v1162 = vunpack.c.l.b16 %v1154
    %v1163 = vunpack.c.l.b16 %v1155
    %v1164 = vunpack.c.l.b16 %v1156
    %v1165 = vpack.c.b16 %v1162, %v1161
    %v1166 = vpack.c.b16 %v1164, %v1163
    %v1170 = vsel %vm728, %v1145, 0
    %v1173 = vsel %vm728, %v1146, 0
    %v1176 = vsel %vm728, %v1147, 0
    %v1179 = vsel %vm728, %v1148, 0
    %v1182 = vsel %vm728, %v1149, 0
    %v1185 = vsel %vm728, %v1150, 0
    %v1188 = vsel %vm728, %v1151, 0
    %v1191 = vsel %vm728, %v1152, 0
    %1193 = vmatprep.subr.bf16.mxu0 0
    %1194 = vmatpush1.bf16.msra.mxu0 %v1165
    %1195 = vmatprep.subr.bf16.mxu0 0
    %1196 = vmatpush1.bf16.msra.mxu0 %v1166
    %1197 = vmatprep.subr.bf16.mxu0 0
    %1198 = vmatpush1.bf16.msra.mxu0 0
    %1199 = vmatprep.subr.bf16.mxu0 0
    %1200 = vmatpush1.bf16.msra.mxu0 0
    %1201 = vmatprep.subr.bf16.mxu0 0
    %1202 = vmatpush1.bf16.msra.mxu0 0
    %1203 = vmatprep.subr.bf16.mxu0 0
    %1204 = vmatpush1.bf16.msra.mxu0 0
    %1205 = vmatprep.subr.bf16.mxu0 0
    %1206 = vmatpush1.bf16.msra.mxu0 0
    %1207 = vmatprep.subr.bf16.mxu0 0
    %1208 = vmatpush1.bf16.msra.mxu0 0
    %1209 = vmatprep.subr.bf16.mxu0 0
    %1210 = vmatpush1.bf16.msra.mxu0 0
    %1211 = vmatprep.subr.bf16.mxu0 0
    %1212 = vmatpush1.bf16.msra.mxu0 0
    %1213 = vmatprep.subr.bf16.mxu0 0
    %1214 = vmatpush1.bf16.msra.mxu0 0
    %1215 = vmatprep.subr.bf16.mxu0 0
    %1216 = vmatpush1.bf16.msra.mxu0 0
    %1217 = vmatprep.subr.bf16.mxu0 0
    %1218 = vmatpush1.bf16.msra.mxu0 0
    %1219 = vmatprep.subr.bf16.mxu0 0
    %1220 = vmatpush1.bf16.msra.mxu0 0
    %1221 = vmatprep.subr.bf16.mxu0 0
    %1222 = vmatpush1.bf16.msra.mxu0 0
    %1223 = vmatprep.subr.bf16.mxu0 0
    %1224 = vmatpush1.bf16.msra.mxu0 0
    %1225 = vmatprep.mubr.bf16.mxu0 0
    %1226 = vmatmul.mubr.bf16.gmra.mrb[0].mxu0 %v1170
    %v1227 = vpop.f32.mrb[0].mxu0
    %v1228 = vadd.f32 0.0, %v1227
    %v1229 = vpop.f32.mrb[0].mxu0
    %v1230 = vpop.f32.mrb[0].mxu0
    %v1231 = vadd.f32 0.0, %v1230
    %v1232 = vpop.f32.mrb[0].mxu0
    %1233 = vmatprep.mubr.bf16.mxu0 0
    %1234 = vmatmul.mubr.bf16.gmra.mrb[0].mxu0 %v1173
    %v1235 = vpop.f32.mrb[0].mxu0
    %v1236 = vadd.f32 0.0, %v1235
    %v1237 = vpop.f32.mrb[0].mxu0
    %v1238 = vpop.f32.mrb[0].mxu0
    %v1239 = vadd.f32 0.0, %v1238
    %v1240 = vpop.f32.mrb[0].mxu0
    %1241 = vmatprep.mubr.bf16.mxu0 0
    %1242 = vmatmul.mubr.bf16.gmra.mrb[0].mxu0 %v1176
    %v1243 = vpop.f32.mrb[0].mxu0
    %v1244 = vadd.f32 0.0, %v1243
    %v1245 = vpop.f32.mrb[0].mxu0
    %v1246 = vpop.f32.mrb[0].mxu0
    %v1247 = vadd.f32 0.0, %v1246
    %v1248 = vpop.f32.mrb[0].mxu0
    %1249 = vmatprep.mubr.bf16.mxu0 0
    %1250 = vmatmul.mubr.bf16.gmra.mrb[0].mxu0 %v1179
    %v1251 = vpop.f32.mrb[0].mxu0
    %v1252 = vadd.f32 0.0, %v1251
    %v1253 = vpop.f32.mrb[0].mxu0
    %v1254 = vpop.f32.mrb[0].mxu0
    %v1255 = vadd.f32 0.0, %v1254
    %v1256 = vpop.f32.mrb[0].mxu0
    %1257 = vmatprep.mubr.bf16.mxu0 0
    %1258 = vmatmul.mubr.bf16.gmra.mrb[0].mxu0 %v1182
    %v1259 = vpop.f32.mrb[0].mxu0
    %v1260 = vadd.f32 0.0, %v1259
    %v1261 = vpop.f32.mrb[0].mxu0
    %v1262 = vpop.f32.mrb[0].mxu0
    %v1263 = vadd.f32 0.0, %v1262
    %v1264 = vpop.f32.mrb[0].mxu0
    %1265 = vmatprep.mubr.bf16.mxu0 0
    %1266 = vmatmul.mubr.bf16.gmra.mrb[0].mxu0 %v1185
    %v1267 = vpop.f32.mrb[0].mxu0
    %v1268 = vadd.f32 0.0, %v1267
    %v1269 = vpop.f32.mrb[0].mxu0
    %v1270 = vpop.f32.mrb[0].mxu0
    %v1271 = vadd.f32 0.0, %v1270
    %v1272 = vpop.f32.mrb[0].mxu0
    %1273 = vmatprep.mubr.bf16.mxu0 0
    %1274 = vmatmul.mubr.bf16.gmra.mrb[0].mxu0 %v1188
    %v1275 = vpop.f32.mrb[0].mxu0
    %v1276 = vadd.f32 0.0, %v1275
    %v1277 = vpop.f32.mrb[0].mxu0
    %v1278 = vpop.f32.mrb[0].mxu0
    %v1279 = vadd.f32 0.0, %v1278
    %v1280 = vpop.f32.mrb[0].mxu0
    %1281 = vmatprep.mubr.bf16.mxu0 0
    %1282 = vmatmul.mubr.bf16.gmra.mrb[0].mxu0 %v1191
    %v1283 = vpop.f32.mrb[0].mxu0
    %v1284 = vadd.f32 0.0, %v1283
    %v1285 = vpop.f32.mrb[0].mxu0
    %v1286 = vpop.f32.mrb[0].mxu0
    %v1287 = vadd.f32 0.0, %v1286
    %v1288 = vpop.f32.mrb[0].mxu0
    %1289 = vdwg.mxu0
    %v1290 = vld [vmem:[%s1] sm:$0xf]
    %v1291 = vld [vmem:[%s1 + $0x4] sm:$0xf]
    %v1292 = vld [vmem:[%s1 + $0x8] sm:$0xf]
    %v1293 = vld [vmem:[%s1 + $0xc] sm:$0xf]
    %v1294 = vld [vmem:[%s1 + $0x10] sm:$0xf]
    %v1295 = vld [vmem:[%s1 + $0x14] sm:$0xf]
    %v1296 = vld [vmem:[%s1 + $0x18] sm:$0xf]
    %v1297 = vld [vmem:[%s1 + $0x1c] sm:$0xf]
    %v1298 = vld [vmem:[%s1 + $0x20] sm:$0xf]
    %v1299 = vld [vmem:[%s1 + $0x24] sm:$0xf]
    %v1300 = vld [vmem:[%s1 + $0x28] sm:$0xf]
    %v1301 = vld [vmem:[%s1 + $0x2c] sm:$0xf]
    %v1302 = vld [vmem:[%s1 + $0x30] sm:$0xf]
    %v1303 = vld [vmem:[%s1 + $0x34] sm:$0xf]
    %v1304 = vld [vmem:[%s1 + $0x38] sm:$0xf]
    %v1305 = vld [vmem:[%s1 + $0x3c] sm:$0xf]
    %v1306 = vpack.c.bf16 %v1231, %v1228
    %v1307 = vpack.c.bf16 %v1239, %v1236
    %v1308 = vpack.c.bf16 %v1247, %v1244
    %v1309 = vpack.c.bf16 %v1255, %v1252
    %v1310 = vpack.c.bf16 %v1263, %v1260
    %v1311 = vpack.c.bf16 %v1271, %v1268
    %v1312 = vpack.c.bf16 %v1279, %v1276
    %v1313 = vpack.c.bf16 %v1287, %v1284
    %v1314 = vld [vmem:[%s11 + $0x7] sm:$0x1]
    %v1315 = vlaneseq
    %v1316 = vshrl.u32 %v1315, 7
    %v1317 = vsub.s32 0, %v1316
    %v1318 = vrot.slane %v1314, %v1317
    %v1335 = vunpack.c.l.b16 %v1290
    %v1336 = vunpack.c.l.b16 %v1291
    %v1337 = vunpack.c.l.b16 %v1292
    %v1338 = vunpack.c.l.b16 %v1293
    %v1339 = vunpack.c.l.b16 %v1294
    %v1340 = vunpack.c.l.b16 %v1295
    %v1341 = vunpack.c.l.b16 %v1296
    %v1342 = vunpack.c.l.b16 %v1297
    %v1343 = vunpack.c.l.b16 %v1298
    %v1344 = vunpack.c.l.b16 %v1299
    %v1345 = vunpack.c.l.b16 %v1300
    %v1346 = vunpack.c.l.b16 %v1301
    %v1347 = vunpack.c.l.b16 %v1302
    %v1348 = vunpack.c.l.b16 %v1303
    %v1349 = vunpack.c.l.b16 %v1304
    %v1350 = vunpack.c.l.b16 %v1305
    %v1351 = vpack.c.b16 %v1336, %v1335
    %v1352 = vpack.c.b16 %v1338, %v1337
    %v1353 = vpack.c.b16 %v1340, %v1339
    %v1354 = vpack.c.b16 %v1342, %v1341
    %v1355 = vpack.c.b16 %v1344, %v1343
    %v1356 = vpack.c.b16 %v1346, %v1345
    %v1357 = vpack.c.b16 %v1348, %v1347
    %v1358 = vpack.c.b16 %v1350, %v1349
    %1367 = vmatprep.subr.bf16.mxu0 0
    %1368 = vmatpush1.bf16.msra.mxu0 %v1306
    %1369 = vmatprep.subr.bf16.mxu0 0
    %1370 = vmatpush1.bf16.msra.mxu0 %v1307
    %1371 = vmatprep.subr.bf16.mxu0 0
    %1372 = vmatpush1.bf16.msra.mxu0 %v1308
    %1373 = vmatprep.subr.bf16.mxu0 0
    %1374 = vmatpush1.bf16.msra.mxu0 %v1309
    %1375 = vmatprep.subr.bf16.mxu0 0
    %1376 = vmatpush1.bf16.msra.mxu0 %v1310
    %1377 = vmatprep.subr.bf16.mxu0 0
    %1378 = vmatpush1.bf16.msra.mxu0 %v1311
    %1379 = vmatprep.subr.bf16.mxu0 0
    %1380 = vmatpush1.bf16.msra.mxu0 %v1312
    %1381 = vmatprep.subr.bf16.mxu0 0
    %1382 = vmatpush1.bf16.msra.mxu0 %v1313
    %1383 = vmatprep.subr.bf16.mxu0 0
    %1384 = vmatpush1.bf16.msra.mxu0 0
    %1385 = vmatprep.subr.bf16.mxu0 0
    %1386 = vmatpush1.bf16.msra.mxu0 0
    %1387 = vmatprep.subr.bf16.mxu0 0
    %1388 = vmatpush1.bf16.msra.mxu0 0
    %1389 = vmatprep.subr.bf16.mxu0 0
    %1390 = vmatpush1.bf16.msra.mxu0 0
    %1391 = vmatprep.subr.bf16.mxu0 0
    %1392 = vmatpush1.bf16.msra.mxu0 0
    %1393 = vmatprep.subr.bf16.mxu0 0
    %1394 = vmatpush1.bf16.msra.mxu0 0
    %1395 = vmatprep.subr.bf16.mxu0 0
    %1396 = vmatpush1.bf16.msra.mxu0 0
    %1397 = vmatprep.subr.bf16.mxu0 0
    %1398 = vmatpush1.bf16.msra.mxu0 0
    %1399 = vmatprep.mubr.bf16.mxu0 0
    %1400 = vmatmul.mubr.bf16.gmra.mrb[0].mxu0 %v1351
    %v1401 = vpop.f32.mrb[0].mxu0
    %v1402 = vadd.f32 %v1318, %v1401
    %v1403 = vpop.f32.mrb[0].mxu0
    %v1404 = vpop.f32.mrb[0].mxu0
    %v1405 = vadd.f32 %v1318, %v1404
    %v1406 = vpop.f32.mrb[0].mxu0
    %1407 = vmatprep.mubr.bf16.mxu0 0
    %1408 = vmatmul.mubr.bf16.gmra.mrb[0].mxu0 %v1352
    %v1409 = vpop.f32.mrb[0].mxu0
    %v1410 = vadd.f32 %v1318, %v1409
    %v1411 = vpop.f32.mrb[0].mxu0
    %v1412 = vpop.f32.mrb[0].mxu0
    %v1413 = vadd.f32 %v1318, %v1412
    %v1414 = vpop.f32.mrb[0].mxu0
    %1415 = vmatprep.mubr.bf16.mxu0 0
    %1416 = vmatmul.mubr.bf16.gmra.mrb[0].mxu0 %v1353
    %v1417 = vpop.f32.mrb[0].mxu0
    %v1418 = vadd.f32 %v1318, %v1417
    %v1419 = vpop.f32.mrb[0].mxu0
    %v1420 = vpop.f32.mrb[0].mxu0
    %v1421 = vadd.f32 %v1318, %v1420
    %v1422 = vpop.f32.mrb[0].mxu0
    %1423 = vmatprep.mubr.bf16.mxu0 0
    %1424 = vmatmul.mubr.bf16.gmra.mrb[0].mxu0 %v1354
    %v1425 = vpop.f32.mrb[0].mxu0
    %v1426 = vadd.f32 %v1318, %v1425
    %v1427 = vpop.f32.mrb[0].mxu0
    %v1428 = vpop.f32.mrb[0].mxu0
    %v1429 = vadd.f32 %v1318, %v1428
    %v1430 = vpop.f32.mrb[0].mxu0
    %1431 = vmatprep.mubr.bf16.mxu0 0
    %1432 = vmatmul.mubr.bf16.gmra.mrb[0].mxu0 %v1355
    %v1433 = vpop.f32.mrb[0].mxu0
    %v1434 = vadd.f32 %v1318, %v1433
    %v1435 = vpop.f32.mrb[0].mxu0
    %v1436 = vpop.f32.mrb[0].mxu0
    %v1437 = vadd.f32 %v1318, %v1436
    %v1438 = vpop.f32.mrb[0].mxu0
    %1439 = vmatprep.mubr.bf16.mxu0 0
    %1440 = vmatmul.mubr.bf16.gmra.mrb[0].mxu0 %v1356
    %v1441 = vpop.f32.mrb[0].mxu0
    %v1442 = vadd.f32 %v1318, %v1441
    %v1443 = vpop.f32.mrb[0].mxu0
    %v1444 = vpop.f32.mrb[0].mxu0
    %v1445 = vadd.f32 %v1318, %v1444
    %v1446 = vpop.f32.mrb[0].mxu0
    %1447 = vmatprep.mubr.bf16.mxu0 0
    %1448 = vmatmul.mubr.bf16.gmra.mrb[0].mxu0 %v1357
    %v1449 = vpop.f32.mrb[0].mxu0
    %v1450 = vadd.f32 %v1318, %v1449
    %v1451 = vpop.f32.mrb[0].mxu0
    %v1452 = vpop.f32.mrb[0].mxu0
    %v1453 = vadd.f32 %v1318, %v1452
    %v1454 = vpop.f32.mrb[0].mxu0
    %1455 = vmatprep.mubr.bf16.mxu0 0
    %1456 = vmatmul.mubr.bf16.gmra.mrb[0].mxu0 %v1358
    %v1457 = vpop.f32.mrb[0].mxu0
    %v1458 = vadd.f32 %v1318, %v1457
    %v1459 = vpop.f32.mrb[0].mxu0
    %v1460 = vpop.f32.mrb[0].mxu0
    %v1461 = vadd.f32 %v1318, %v1460
    %v1462 = vpop.f32.mrb[0].mxu0
    %1463 = vdwg.mxu0
    %1480 = vrot.lane.b32.xlu0 %v1402, 64
    %v1481 = vpop.permute.xlu0 %1480
    %1482 = vrot.lane.b32.xlu0 %v1405, 64
    %v1483 = vpop.permute.xlu0 %1482
    %1484 = vrot.lane.b32.xlu0 %v1410, 64
    %v1485 = vpop.permute.xlu0 %1484
    %1486 = vrot.lane.b32.xlu0 %v1413, 64
    %v1487 = vpop.permute.xlu0 %1486
    %1488 = vrot.lane.b32.xlu0 %v1418, 64
    %v1489 = vpop.permute.xlu0 %1488
    %1490 = vrot.lane.b32.xlu0 %v1421, 64
    %v1491 = vpop.permute.xlu0 %1490
    %1492 = vrot.lane.b32.xlu0 %v1426, 64
    %v1493 = vpop.permute.xlu0 %1492
    %1494 = vrot.lane.b32.xlu0 %v1429, 64
    %v1495 = vpop.permute.xlu0 %1494
    %1496 = vrot.lane.b32.xlu0 %v1434, 64
    %v1497 = vpop.permute.xlu0 %1496
    %1498 = vrot.lane.b32.xlu0 %v1437, 64
    %v1499 = vpop.permute.xlu0 %1498
    %1500 = vrot.lane.b32.xlu0 %v1442, 64
    %v1501 = vpop.permute.xlu0 %1500
    %1502 = vrot.lane.b32.xlu0 %v1445, 64
    %v1503 = vpop.permute.xlu0 %1502
    %1504 = vrot.lane.b32.xlu0 %v1450, 64
    %v1505 = vpop.permute.xlu0 %1504
    %1506 = vrot.lane.b32.xlu0 %v1453, 64
    %v1507 = vpop.permute.xlu0 %1506
    %1508 = vrot.lane.b32.xlu0 %v1458, 64
    %v1509 = vpop.permute.xlu0 %1508
    %1510 = vrot.lane.b32.xlu0 %v1461, 64
    %v1511 = vpop.permute.xlu0 %1510
    %vm1528 = vcmask 785920
    %1529 = vst.msk [vmem:[%s12] sm:$0xff] %vm1528, %v1481
    %1530 = vst.msk [vmem:[%s12 + $0x8] sm:$0xff] %vm1528, %v1483
    %1531 = vst.msk [vmem:[%s12 + $0x10] sm:$0xff] %vm1528, %v1485
    %1532 = vst.msk [vmem:[%s12 + $0x18] sm:$0xff] %vm1528, %v1487
    %1533 = vst.msk [vmem:[%s12 + $0x20] sm:$0xff] %vm1528, %v1489
    %1534 = vst.msk [vmem:[%s12 + $0x28] sm:$0xff] %vm1528, %v1491
    %1535 = vst.msk [vmem:[%s12 + $0x30] sm:$0xff] %vm1528, %v1493
    %1536 = vst.msk [vmem:[%s12 + $0x38] sm:$0xff] %vm1528, %v1495
    %1537 = vst.msk [vmem:[%s12 + $0x40] sm:$0xff] %vm1528, %v1497
    %1538 = vst.msk [vmem:[%s12 + $0x48] sm:$0xff] %vm1528, %v1499
    %1539 = vst.msk [vmem:[%s12 + $0x50] sm:$0xff] %vm1528, %v1501
    %1540 = vst.msk [vmem:[%s12 + $0x58] sm:$0xff] %vm1528, %v1503
    %1541 = vst.msk [vmem:[%s12 + $0x60] sm:$0xff] %vm1528, %v1505
    %1542 = vst.msk [vmem:[%s12 + $0x68] sm:$0xff] %vm1528, %v1507
    %1543 = vst.msk [vmem:[%s12 + $0x70] sm:$0xff] %vm1528, %v1509
    %1544 = vst.msk [vmem:[%s12 + $0x78] sm:$0xff] %vm1528, %v1511
    %v1545 = vld [vmem:[%s2] sm:$0xff]
    %v1546 = vld [vmem:[%s2 + $0x8] sm:$0xff]
    %v1547 = vld [vmem:[%s2 + $0x10] sm:$0xff]
    %v1548 = vld [vmem:[%s2 + $0x18] sm:$0xff]
    %v1549 = vld [vmem:[%s2 + $0x20] sm:$0xff]
    %v1550 = vld [vmem:[%s2 + $0x28] sm:$0xff]
    %v1551 = vld [vmem:[%s2 + $0x30] sm:$0xff]
    %v1552 = vld [vmem:[%s2 + $0x38] sm:$0xff]
    %v1553 = vld [vmem:[%s2 + $0x40] sm:$0xff]
    %v1554 = vld [vmem:[%s2 + $0x48] sm:$0xff]
    %v1555 = vld [vmem:[%s2 + $0x50] sm:$0xff]
    %v1556 = vld [vmem:[%s2 + $0x58] sm:$0xff]
    %v1557 = vld [vmem:[%s2 + $0x60] sm:$0xff]
    %v1558 = vld [vmem:[%s2 + $0x68] sm:$0xff]
    %v1559 = vld [vmem:[%s2 + $0x70] sm:$0xff]
    %v1560 = vld [vmem:[%s2 + $0x78] sm:$0xff]
    %v1561 = vmul.f32 %v1402, 1.442695
    %v1562 = vpow.pop %v1561
    %v1563 = vmul.f32 %v1405, 1.442695
    %v1564 = vpow.pop %v1563
    %v1565 = vmul.f32 %v1410, 1.442695
    %v1566 = vpow.pop %v1565
    %v1567 = vmul.f32 %v1413, 1.442695
    %v1568 = vpow.pop %v1567
    %v1569 = vmul.f32 %v1418, 1.442695
    %v1570 = vpow.pop %v1569
    %v1571 = vmul.f32 %v1421, 1.442695
    %v1572 = vpow.pop %v1571
    %v1573 = vmul.f32 %v1426, 1.442695
    %v1574 = vpow.pop %v1573
    %v1575 = vmul.f32 %v1429, 1.442695
    %v1576 = vpow.pop %v1575
    %v1577 = vmul.f32 %v1434, 1.442695
    %v1578 = vpow.pop %v1577
    %v1579 = vmul.f32 %v1437, 1.442695
    %v1580 = vpow.pop %v1579
    %v1581 = vmul.f32 %v1442, 1.442695
    %v1582 = vpow.pop %v1581
    %v1583 = vmul.f32 %v1445, 1.442695
    %v1584 = vpow.pop %v1583
    %v1585 = vmul.f32 %v1450, 1.442695
    %v1586 = vpow.pop %v1585
    %v1587 = vmul.f32 %v1453, 1.442695
    %v1588 = vpow.pop %v1587
    %v1589 = vmul.f32 %v1458, 1.442695
    %v1590 = vpow.pop %v1589
    %v1591 = vmul.f32 %v1461, 1.442695
    %v1592 = vpow.pop %v1591
    %1609 = vrot.lane.b32.xlu0 %v1562, 112
    %v1610 = vpop.permute.xlu0 %1609
    %1611 = vrot.lane.b32.xlu0 %v1564, 112
    %v1612 = vpop.permute.xlu0 %1611
    %1613 = vrot.lane.b32.xlu0 %v1566, 112
    %v1614 = vpop.permute.xlu0 %1613
    %1615 = vrot.lane.b32.xlu0 %v1568, 112
    %v1616 = vpop.permute.xlu0 %1615
    %1617 = vrot.lane.b32.xlu0 %v1570, 112
    %v1618 = vpop.permute.xlu0 %1617
    %1619 = vrot.lane.b32.xlu0 %v1572, 112
    %v1620 = vpop.permute.xlu0 %1619
    %1621 = vrot.lane.b32.xlu0 %v1574, 112
    %v1622 = vpop.permute.xlu0 %1621
    %1623 = vrot.lane.b32.xlu0 %v1576, 112
    %v1624 = vpop.permute.xlu0 %1623
    %1625 = vrot.lane.b32.xlu0 %v1578, 112
    %v1626 = vpop.permute.xlu0 %1625
    %1627 = vrot.lane.b32.xlu0 %v1580, 112
    %v1628 = vpop.permute.xlu0 %1627
    %1629 = vrot.lane.b32.xlu0 %v1582, 112
    %v1630 = vpop.permute.xlu0 %1629
    %1631 = vrot.lane.b32.xlu0 %v1584, 112
    %v1632 = vpop.permute.xlu0 %1631
    %1633 = vrot.lane.b32.xlu0 %v1586, 112
    %v1634 = vpop.permute.xlu0 %1633
    %1635 = vrot.lane.b32.xlu0 %v1588, 112
    %v1636 = vpop.permute.xlu0 %1635
    %1637 = vrot.lane.b32.xlu0 %v1590, 112
    %v1638 = vpop.permute.xlu0 %1637
    %1639 = vrot.lane.b32.xlu0 %v1592, 112
    %v1640 = vpop.permute.xlu0 %1639
    %v1657 = vmul.f32 %v1545, %v1610
    %v1658 = vmul.f32 %v1546, %v1612
    %v1659 = vmul.f32 %v1547, %v1614
    %v1660 = vmul.f32 %v1548, %v1616
    %v1661 = vmul.f32 %v1549, %v1618
    %v1662 = vmul.f32 %v1550, %v1620
    %v1663 = vmul.f32 %v1551, %v1622
    %v1664 = vmul.f32 %v1552, %v1624
    %v1665 = vmul.f32 %v1553, %v1626
    %v1666 = vmul.f32 %v1554, %v1628
    %v1667 = vmul.f32 %v1555, %v1630
    %v1668 = vmul.f32 %v1556, %v1632
    %v1669 = vmul.f32 %v1557, %v1634
    %v1670 = vmul.f32 %v1558, %v1636
    %v1671 = vmul.f32 %v1559, %v1638
    %v1672 = vmul.f32 %v1560, %v1640
    %v1673 = vadd.f32 %v1657, %v1402
    %v1674 = vadd.f32 %v1658, %v1405
    %v1675 = vadd.f32 %v1659, %v1410
    %v1676 = vadd.f32 %v1660, %v1413
    %v1677 = vadd.f32 %v1661, %v1418
    %v1678 = vadd.f32 %v1662, %v1421
    %v1679 = vadd.f32 %v1663, %v1426
    %v1680 = vadd.f32 %v1664, %v1429
    %v1681 = vadd.f32 %v1665, %v1434
    %v1682 = vadd.f32 %v1666, %v1437
    %v1683 = vadd.f32 %v1667, %v1442
    %v1684 = vadd.f32 %v1668, %v1445
    %v1685 = vadd.f32 %v1669, %v1450
    %v1686 = vadd.f32 %v1670, %v1453
    %v1687 = vadd.f32 %v1671, %v1458
    %v1688 = vadd.f32 %v1672, %v1461
    %1705 = vrot.lane.b32.xlu0 %v1673, 96
    %v1706 = vpop.permute.xlu0 %1705
    %1707 = vrot.lane.b32.xlu0 %v1674, 96
    %v1708 = vpop.permute.xlu0 %1707
    %1709 = vrot.lane.b32.xlu0 %v1675, 96
    %v1710 = vpop.permute.xlu0 %1709
    %1711 = vrot.lane.b32.xlu0 %v1676, 96
    %v1712 = vpop.permute.xlu0 %1711
    %1713 = vrot.lane.b32.xlu0 %v1677, 96
    %v1714 = vpop.permute.xlu0 %1713
    %1715 = vrot.lane.b32.xlu0 %v1678, 96
    %v1716 = vpop.permute.xlu0 %1715
    %1717 = vrot.lane.b32.xlu0 %v1679, 96
    %v1718 = vpop.permute.xlu0 %1717
    %1719 = vrot.lane.b32.xlu0 %v1680, 96
    %v1720 = vpop.permute.xlu0 %1719
    %1721 = vrot.lane.b32.xlu0 %v1681, 96
    %v1722 = vpop.permute.xlu0 %1721
    %1723 = vrot.lane.b32.xlu0 %v1682, 96
    %v1724 = vpop.permute.xlu0 %1723
    %1725 = vrot.lane.b32.xlu0 %v1683, 96
    %v1726 = vpop.permute.xlu0 %1725
    %1727 = vrot.lane.b32.xlu0 %v1684, 96
    %v1728 = vpop.permute.xlu0 %1727
    %1729 = vrot.lane.b32.xlu0 %v1685, 96
    %v1730 = vpop.permute.xlu0 %1729
    %1731 = vrot.lane.b32.xlu0 %v1686, 96
    %v1732 = vpop.permute.xlu0 %1731
    %1733 = vrot.lane.b32.xlu0 %v1687, 96
    %v1734 = vpop.permute.xlu0 %1733
    %1735 = vrot.lane.b32.xlu0 %v1688, 96
    %v1736 = vpop.permute.xlu0 %1735
    %vm1753 = vcmask 917248
    %1754 = vst.msk [vmem:[%s12] sm:$0xff] %vm1753, %v1706
    %1755 = vst.msk [vmem:[%s12 + $0x8] sm:$0xff] %vm1753, %v1708
    %1756 = vst.msk [vmem:[%s12 + $0x10] sm:$0xff] %vm1753, %v1710
    %1757 = vst.msk [vmem:[%s12 + $0x18] sm:$0xff] %vm1753, %v1712
    %1758 = vst.msk [vmem:[%s12 + $0x20] sm:$0xff] %vm1753, %v1714
    %1759 = vst.msk [vmem:[%s12 + $0x28] sm:$0xff] %vm1753, %v1716
    %1760 = vst.msk [vmem:[%s12 + $0x30] sm:$0xff] %vm1753, %v1718
    %1761 = vst.msk [vmem:[%s12 + $0x38] sm:$0xff] %vm1753, %v1720
    %1762 = vst.msk [vmem:[%s12 + $0x40] sm:$0xff] %vm1753, %v1722
    %1763 = vst.msk [vmem:[%s12 + $0x48] sm:$0xff] %vm1753, %v1724
    %1764 = vst.msk [vmem:[%s12 + $0x50] sm:$0xff] %vm1753, %v1726
    %1765 = vst.msk [vmem:[%s12 + $0x58] sm:$0xff] %vm1753, %v1728
    %1766 = vst.msk [vmem:[%s12 + $0x60] sm:$0xff] %vm1753, %v1730
    %1767 = vst.msk [vmem:[%s12 + $0x68] sm:$0xff] %vm1753, %v1732
    %1768 = vst.msk [vmem:[%s12 + $0x70] sm:$0xff] %vm1753, %v1734
    %1769 = vst.msk [vmem:[%s12 + $0x78] sm:$0xff] %vm1753, %v1736
    %v1770 = vpack.c.bf16 %v1674, %v1673
    %v1771 = vpack.c.bf16 %v1676, %v1675
    %v1772 = vpack.c.bf16 %v1678, %v1677
    %v1773 = vpack.c.bf16 %v1680, %v1679
    %v1774 = vpack.c.bf16 %v1682, %v1681
    %v1775 = vpack.c.bf16 %v1684, %v1683
    %v1776 = vpack.c.bf16 %v1686, %v1685
    %v1777 = vpack.c.bf16 %v1688, %v1687
    %v1778 = vld [vmem:[%s8] sm:$0xf]
    %v1779 = vld [vmem:[%s8 + $0x4] sm:$0xf]
    %v1780 = vld [vmem:[%s8 + $0x8] sm:$0xf]
    %v1781 = vld [vmem:[%s8 + $0xc] sm:$0xf]
    %v1782 = vld [vmem:[%s8 + $0x10] sm:$0xf]
    %v1783 = vld [vmem:[%s8 + $0x14] sm:$0xf]
    %v1784 = vld [vmem:[%s8 + $0x18] sm:$0xf]
    %v1785 = vld [vmem:[%s8 + $0x1c] sm:$0xf]
    %v1786 = vld [vmem:[%s8 + $0x20] sm:$0xf]
    %v1787 = vld [vmem:[%s8 + $0x24] sm:$0xf]
    %v1798 = vunpack.c.l.b16 %v1778
    %v1799 = vunpack.c.l.b16 %v1779
    %v1800 = vunpack.c.l.b16 %v1780
    %v1801 = vunpack.c.l.b16 %v1781
    %v1802 = vunpack.c.l.b16 %v1782
    %v1803 = vunpack.c.l.b16 %v1783
    %v1804 = vunpack.c.l.b16 %v1784
    %v1805 = vunpack.c.l.b16 %v1785
    %v1806 = vunpack.c.l.b16 %v1786
    %v1807 = vunpack.c.l.b16 %v1787
    %v1808 = vpack.c.b16 %v1799, %v1798
    %v1809 = vpack.c.b16 %v1801, %v1800
    %v1810 = vpack.c.b16 %v1803, %v1802
    %v1811 = vpack.c.b16 %v1805, %v1804
    %v1812 = vpack.c.b16 %v1807, %v1806
    %vm1813 = vcmask 130048
    %v1815 = vsel %vm1813, %v1770, 0
    %v1818 = vsel %vm1813, %v1771, 0
    %v1821 = vsel %vm1813, %v1772, 0
    %v1824 = vsel %vm1813, %v1773, 0
    %v1827 = vsel %vm1813, %v1774, 0
    %v1830 = vsel %vm1813, %v1775, 0
    %v1833 = vsel %vm1813, %v1776, 0
    %v1836 = vsel %vm1813, %v1777, 0
    %v1839 = vsel %vm1813, %v1808, 0
    %v1842 = vsel %vm1813, %v1809, 0
    %v1845 = vsel %vm1813, %v1810, 0
    %v1848 = vsel %vm1813, %v1811, 0
    %v1851 = vsel %vm1813, %v1812, 0
    %1853 = vmatprep.subr.bf16.mxu0 0
    %1854 = vmatpush1.bf16.xpose.msra.mxu0 %v1815
    %1855 = vmatprep.subr.bf16.mxu0 0
    %1856 = vmatpush1.bf16.xpose.msra.mxu0 %v1818
    %1857 = vmatprep.subr.bf16.mxu0 0
    %1858 = vmatpush1.bf16.xpose.msra.mxu0 %v1821
    %1859 = vmatprep.subr.bf16.mxu0 0
    %1860 = vmatpush1.bf16.xpose.msra.mxu0 %v1824
    %1861 = vmatprep.subr.bf16.mxu0 0
    %1862 = vmatpush1.bf16.xpose.msra.mxu0 %v1827
    %1863 = vmatprep.subr.bf16.mxu0 0
    %1864 = vmatpush1.bf16.xpose.msra.mxu0 %v1830
    %1865 = vmatprep.subr.bf16.mxu0 0
    %1866 = vmatpush1.bf16.xpose.msra.mxu0 %v1833
    %1867 = vmatprep.subr.bf16.mxu0 0
    %1868 = vmatpush1.bf16.xpose.msra.mxu0 %v1836
    %1869 = vmatprep.subr.bf16.mxu0 0
    %1870 = vmatpush1.bf16.xpose.msra.mxu0 %v1839
    %1871 = vmatprep.subr.bf16.mxu0 0
    %1872 = vmatpush1.bf16.xpose.msra.mxu0 %v1842
    %1873 = vmatprep.subr.bf16.mxu0 0
    %1874 = vmatpush1.bf16.xpose.msra.mxu0 %v1845
    %1875 = vmatprep.subr.bf16.mxu0 0
    %1876 = vmatpush1.bf16.xpose.msra.mxu0 %v1848
    %1877 = vmatprep.subr.bf16.mxu0 0
    %1878 = vmatpush1.bf16.xpose.msra.mxu0 %v1851
    %1879 = vmatprep.subr.bf16.mxu0 0
    %1880 = vmatpush1.bf16.xpose.msra.mxu0 0
    %1881 = vmatprep.subr.bf16.mxu0 0
    %1882 = vmatpush1.bf16.xpose.msra.mxu0 0
    %1883 = vmatprep.subr.bf16.mxu0 0
    %1884 = vmatpush1.bf16.xpose.msra.mxu0 0
    %1885 = vmatprep.mubr.bf16.mxu0 0
    %1886 = vmatmul.mubr.bf16.gmra.mrb[0].mxu0 %v1815
    %v1887 = vpop.f32.mrb[0].mxu0
    %v1888 = vadd.f32 0.0, %v1887
    %v1889 = vpop.f32.mrb[0].mxu0
    %v1890 = vadd.f32 0.0, %v1889
    %v1891 = vpop.f32.mrb[0].mxu0
    %v1892 = vadd.f32 0.0, %v1891
    %v1893 = vpop.f32.mrb[0].mxu0
    %v1894 = vadd.f32 0.0, %v1893
    %1895 = vmatprep.mubr.bf16.mxu0 0
    %1896 = vmatmul.mubr.bf16.gmra.mrb[0].mxu0 %v1818
    %v1897 = vpop.f32.mrb[0].mxu0
    %v1898 = vadd.f32 0.0, %v1897
    %v1899 = vpop.f32.mrb[0].mxu0
    %v1900 = vadd.f32 0.0, %v1899
    %v1901 = vpop.f32.mrb[0].mxu0
    %v1902 = vadd.f32 0.0, %v1901
    %v1903 = vpop.f32.mrb[0].mxu0
    %v1904 = vadd.f32 0.0, %v1903
    %1905 = vmatprep.mubr.bf16.mxu0 0
    %1906 = vmatmul.mubr.bf16.gmra.mrb[0].mxu0 %v1821
    %v1907 = vpop.f32.mrb[0].mxu0
    %v1908 = vadd.f32 0.0, %v1907
    %v1909 = vpop.f32.mrb[0].mxu0
    %v1910 = vadd.f32 0.0, %v1909
    %v1911 = vpop.f32.mrb[0].mxu0
    %v1912 = vadd.f32 0.0, %v1911
    %v1913 = vpop.f32.mrb[0].mxu0
    %v1914 = vadd.f32 0.0, %v1913
    %1915 = vmatprep.mubr.bf16.mxu0 0
    %1916 = vmatmul.mubr.bf16.gmra.mrb[0].mxu0 %v1824
    %v1917 = vpop.f32.mrb[0].mxu0
    %v1918 = vadd.f32 0.0, %v1917
    %v1919 = vpop.f32.mrb[0].mxu0
    %v1920 = vadd.f32 0.0, %v1919
    %v1921 = vpop.f32.mrb[0].mxu0
    %v1922 = vadd.f32 0.0, %v1921
    %v1923 = vpop.f32.mrb[0].mxu0
    %v1924 = vadd.f32 0.0, %v1923
    %1925 = vmatprep.mubr.bf16.mxu0 0
    %1926 = vmatmul.mubr.bf16.gmra.mrb[0].mxu0 %v1827
    %v1927 = vpop.f32.mrb[0].mxu0
    %v1928 = vadd.f32 0.0, %v1927
    %v1929 = vpop.f32.mrb[0].mxu0
    %v1930 = vadd.f32 0.0, %v1929
    %v1931 = vpop.f32.mrb[0].mxu0
    %v1932 = vadd.f32 0.0, %v1931
    %v1933 = vpop.f32.mrb[0].mxu0
    %v1934 = vadd.f32 0.0, %v1933
    %1935 = vmatprep.mubr.bf16.mxu0 0
    %1936 = vmatmul.mubr.bf16.gmra.mrb[0].mxu0 %v1830
    %v1937 = vpop.f32.mrb[0].mxu0
    %v1938 = vadd.f32 0.0, %v1937
    %v1939 = vpop.f32.mrb[0].mxu0
    %v1940 = vadd.f32 0.0, %v1939
    %v1941 = vpop.f32.mrb[0].mxu0
    %v1942 = vadd.f32 0.0, %v1941
    %v1943 = vpop.f32.mrb[0].mxu0
    %v1944 = vadd.f32 0.0, %v1943
    %1945 = vmatprep.mubr.bf16.mxu0 0
    %1946 = vmatmul.mubr.bf16.gmra.mrb[0].mxu0 %v1833
    %v1947 = vpop.f32.mrb[0].mxu0
    %v1948 = vadd.f32 0.0, %v1947
    %v1949 = vpop.f32.mrb[0].mxu0
    %v1950 = vadd.f32 0.0, %v1949
    %v1951 = vpop.f32.mrb[0].mxu0
    %v1952 = vadd.f32 0.0, %v1951
    %v1953 = vpop.f32.mrb[0].mxu0
    %v1954 = vadd.f32 0.0, %v1953
    %1955 = vmatprep.mubr.bf16.mxu0 0
    %1956 = vmatmul.mubr.bf16.gmra.mrb[0].mxu0 %v1836
    %v1957 = vpop.f32.mrb[0].mxu0
    %v1958 = vadd.f32 0.0, %v1957
    %v1959 = vpop.f32.mrb[0].mxu0
    %v1960 = vadd.f32 0.0, %v1959
    %v1961 = vpop.f32.mrb[0].mxu0
    %v1962 = vadd.f32 0.0, %v1961
    %v1963 = vpop.f32.mrb[0].mxu0
    %v1964 = vadd.f32 0.0, %v1963
    %1965 = vdwg.mxu0
    %v1966 = vxor.u32 %v1888, 2147483648
    %v1967 = vxor.u32 %v1892, 2147483648
    %v1968 = vxor.u32 %v1898, 2147483648
    %v1969 = vxor.u32 %v1902, 2147483648
    %v1970 = vxor.u32 %v1908, 2147483648
    %v1971 = vxor.u32 %v1912, 2147483648
    %v1972 = vxor.u32 %v1918, 2147483648
    %v1973 = vxor.u32 %v1922, 2147483648
    %v1974 = vxor.u32 %v1928, 2147483648
    %v1975 = vxor.u32 %v1932, 2147483648
    %v1976 = vxor.u32 %v1938, 2147483648
    %v1977 = vxor.u32 %v1942, 2147483648
    %v1978 = vxor.u32 %v1948, 2147483648
    %v1979 = vxor.u32 %v1952, 2147483648
    %v1980 = vxor.u32 %v1958, 2147483648
    %v1981 = vxor.u32 %v1962, 2147483648
    %v1982 = vmul.f32 %v1966, 1.442695
    %v1983 = vpow.pop %v1982
    %v1984 = vmul.f32 %v1967, 1.442695
    %v1985 = vpow.pop %v1984
    %v1986 = vmul.f32 %v1968, 1.442695
    %v1987 = vpow.pop %v1986
    %v1988 = vmul.f32 %v1969, 1.442695
    %v1989 = vpow.pop %v1988
    %v1990 = vmul.f32 %v1970, 1.442695
    %v1991 = vpow.pop %v1990
    %v1992 = vmul.f32 %v1971, 1.442695
    %v1993 = vpow.pop %v1992
    %v1994 = vmul.f32 %v1972, 1.442695
    %v1995 = vpow.pop %v1994
    %v1996 = vmul.f32 %v1973, 1.442695
    %v1997 = vpow.pop %v1996
    %v1998 = vmul.f32 %v1974, 1.442695
    %v1999 = vpow.pop %v1998
    %v2000 = vmul.f32 %v1975, 1.442695
    %v2001 = vpow.pop %v2000
    %v2002 = vmul.f32 %v1976, 1.442695
    %v2003 = vpow.pop %v2002
    %v2004 = vmul.f32 %v1977, 1.442695
    %v2005 = vpow.pop %v2004
    %v2006 = vmul.f32 %v1978, 1.442695
    %v2007 = vpow.pop %v2006
    %v2008 = vmul.f32 %v1979, 1.442695
    %v2009 = vpow.pop %v2008
    %v2010 = vmul.f32 %v1980, 1.442695
    %v2011 = vpow.pop %v2010
    %v2012 = vmul.f32 %v1981, 1.442695
    %v2013 = vpow.pop %v2012
    %v2014 = vadd.f32 %v1983, 1.0
    %v2015 = vadd.f32 %v1985, 1.0
    %v2016 = vadd.f32 %v1987, 1.0
    %v2017 = vadd.f32 %v1989, 1.0
    %v2018 = vadd.f32 %v1991, 1.0
    %v2019 = vadd.f32 %v1993, 1.0
    %v2020 = vadd.f32 %v1995, 1.0
    %v2021 = vadd.f32 %v1997, 1.0
    %v2022 = vadd.f32 %v1999, 1.0
    %v2023 = vadd.f32 %v2001, 1.0
    %v2024 = vadd.f32 %v2003, 1.0
    %v2025 = vadd.f32 %v2005, 1.0
    %v2026 = vadd.f32 %v2007, 1.0
    %v2027 = vadd.f32 %v2009, 1.0
    %v2028 = vadd.f32 %v2011, 1.0
    %v2029 = vadd.f32 %v2013, 1.0
    %v2030 = vrcp.pop %v2014
    %v2031 = vmul.f32 1.0, %v2030
    %v2032 = vrcp.pop %v2015
    %v2033 = vmul.f32 1.0, %v2032
    %v2034 = vrcp.pop %v2016
    %v2035 = vmul.f32 1.0, %v2034
    %v2036 = vrcp.pop %v2017
    %v2037 = vmul.f32 1.0, %v2036
    %v2038 = vrcp.pop %v2018
    %v2039 = vmul.f32 1.0, %v2038
    %v2040 = vrcp.pop %v2019
    %v2041 = vmul.f32 1.0, %v2040
    %v2042 = vrcp.pop %v2020
    %v2043 = vmul.f32 1.0, %v2042
    %v2044 = vrcp.pop %v2021
    %v2045 = vmul.f32 1.0, %v2044
    %v2046 = vrcp.pop %v2022
    %v2047 = vmul.f32 1.0, %v2046
    %v2048 = vrcp.pop %v2023
    %v2049 = vmul.f32 1.0, %v2048
    %v2050 = vrcp.pop %v2024
    %v2051 = vmul.f32 1.0, %v2050
    %v2052 = vrcp.pop %v2025
    %v2053 = vmul.f32 1.0, %v2052
    %v2054 = vrcp.pop %v2026
    %v2055 = vmul.f32 1.0, %v2054
    %v2056 = vrcp.pop %v2027
    %v2057 = vmul.f32 1.0, %v2056
    %v2058 = vrcp.pop %v2028
    %v2059 = vmul.f32 1.0, %v2058
    %v2060 = vrcp.pop %v2029
    %v2061 = vmul.f32 1.0, %v2060
    %2062 = vst [vmem:[#allocation2] sm:$0xff] %v2031
    %2063 = vst [vmem:[#allocation2 + $0x8] sm:$0xff] %v2033
    %2064 = vst [vmem:[#allocation2 + $0x10] sm:$0xff] %v2035
    %2065 = vst [vmem:[#allocation2 + $0x18] sm:$0xff] %v2037
    %2066 = vst [vmem:[#allocation2 + $0x20] sm:$0xff] %v2039
    %2067 = vst [vmem:[#allocation2 + $0x28] sm:$0xff] %v2041
    %2068 = vst [vmem:[#allocation2 + $0x30] sm:$0xff] %v2043
    %2069 = vst [vmem:[#allocation2 + $0x38] sm:$0xff] %v2045
    %2070 = vst [vmem:[#allocation2 + $0x40] sm:$0xff] %v2047
    %2071 = vst [vmem:[#allocation2 + $0x48] sm:$0xff] %v2049
    %2072 = vst [vmem:[#allocation2 + $0x50] sm:$0xff] %v2051
    %2073 = vst [vmem:[#allocation2 + $0x58] sm:$0xff] %v2053
    %2074 = vst [vmem:[#allocation2 + $0x60] sm:$0xff] %v2055
    %2075 = vst [vmem:[#allocation2 + $0x68] sm:$0xff] %v2057
    %2076 = vst [vmem:[#allocation2 + $0x70] sm:$0xff] %v2059
    %2077 = vst [vmem:[#allocation2 + $0x78] sm:$0xff] %v2061
    %v2078 = vld [vmem:[%s1] sm:$0xf]
    %v2079 = vld [vmem:[%s1 + $0x4] sm:$0xf]
    %v2080 = vld [vmem:[%s1 + $0x8] sm:$0xf]
    %v2081 = vld [vmem:[%s1 + $0xc] sm:$0xf]
    %v2082 = vld [vmem:[%s1 + $0x10] sm:$0xf]
    %v2083 = vld [vmem:[%s1 + $0x14] sm:$0xf]
    %v2084 = vld [vmem:[%s1 + $0x18] sm:$0xf]
    %v2085 = vld [vmem:[%s1 + $0x1c] sm:$0xf]
    %v2086 = vld [vmem:[%s1 + $0x20] sm:$0xf]
    %v2087 = vld [vmem:[%s1 + $0x24] sm:$0xf]
    %v2088 = vld [vmem:[%s1 + $0x28] sm:$0xf]
    %v2089 = vld [vmem:[%s1 + $0x2c] sm:$0xf]
    %v2090 = vld [vmem:[%s1 + $0x30] sm:$0xf]
    %v2091 = vld [vmem:[%s1 + $0x34] sm:$0xf]
    %v2092 = vld [vmem:[%s1 + $0x38] sm:$0xf]
    %v2093 = vld [vmem:[%s1 + $0x3c] sm:$0xf]
    %v2094 = vpack.c.bf16 %v1894, %v1890
    %v2095 = vpack.c.bf16 %v1904, %v1900
    %v2096 = vpack.c.bf16 %v1914, %v1910
    %v2097 = vpack.c.bf16 %v1924, %v1920
    %v2098 = vpack.c.bf16 %v1934, %v1930
    %v2099 = vpack.c.bf16 %v1944, %v1940
    %v2100 = vpack.c.bf16 %v1954, %v1950
    %v2101 = vpack.c.bf16 %v1964, %v1960
    %v2102 = vld [vmem:[%s11 + $0x8] sm:$0x1]
    %v2103 = vlaneseq
    %v2104 = vshrl.u32 %v2103, 7
    %v2105 = vsub.s32 0, %v2104
    %v2106 = vrot.slane %v2102, %v2105
    %v2123 = vunpack.c.l.b16 %v2078
    %v2124 = vunpack.c.l.b16 %v2079
    %v2125 = vunpack.c.l.b16 %v2080
    %v2126 = vunpack.c.l.b16 %v2081
    %v2127 = vunpack.c.l.b16 %v2082
    %v2128 = vunpack.c.l.b16 %v2083
    %v2129 = vunpack.c.l.b16 %v2084
    %v2130 = vunpack.c.l.b16 %v2085
    %v2131 = vunpack.c.l.b16 %v2086
    %v2132 = vunpack.c.l.b16 %v2087
    %v2133 = vunpack.c.l.b16 %v2088
    %v2134 = vunpack.c.l.b16 %v2089
    %v2135 = vunpack.c.l.b16 %v2090
    %v2136 = vunpack.c.l.b16 %v2091
    %v2137 = vunpack.c.l.b16 %v2092
    %v2138 = vunpack.c.l.b16 %v2093
    %v2139 = vpack.c.b16 %v2124, %v2123
    %v2140 = vpack.c.b16 %v2126, %v2125
    %v2141 = vpack.c.b16 %v2128, %v2127
    %v2142 = vpack.c.b16 %v2130, %v2129
    %v2143 = vpack.c.b16 %v2132, %v2131
    %v2144 = vpack.c.b16 %v2134, %v2133
    %v2145 = vpack.c.b16 %v2136, %v2135
    %v2146 = vpack.c.b16 %v2138, %v2137
    %2155 = vmatprep.subr.bf16.mxu0 0
    %2156 = vmatpush1.bf16.msra.mxu0 %v2094
    %2157 = vmatprep.subr.bf16.mxu0 0
    %2158 = vmatpush1.bf16.msra.mxu0 %v2095
    %2159 = vmatprep.subr.bf16.mxu0 0
    %2160 = vmatpush1.bf16.msra.mxu0 %v2096
    %2161 = vmatprep.subr.bf16.mxu0 0
    %2162 = vmatpush1.bf16.msra.mxu0 %v2097
    %2163 = vmatprep.subr.bf16.mxu0 0
    %2164 = vmatpush1.bf16.msra.mxu0 %v2098
    %2165 = vmatprep.subr.bf16.mxu0 0
    %2166 = vmatpush1.bf16.msra.mxu0 %v2099
    %2167 = vmatprep.subr.bf16.mxu0 0
    %2168 = vmatpush1.bf16.msra.mxu0 %v2100
    %2169 = vmatprep.subr.bf16.mxu0 0
    %2170 = vmatpush1.bf16.msra.mxu0 %v2101
    %2171 = vmatprep.subr.bf16.mxu0 0
    %2172 = vmatpush1.bf16.msra.mxu0 0
    %2173 = vmatprep.subr.bf16.mxu0 0
    %2174 = vmatpush1.bf16.msra.mxu0 0
    %2175 = vmatprep.subr.bf16.mxu0 0
    %2176 = vmatpush1.bf16.msra.mxu0 0
    %2177 = vmatprep.subr.bf16.mxu0 0
    %2178 = vmatpush1.bf16.msra.mxu0 0
    %2179 = vmatprep.subr.bf16.mxu0 0
    %2180 = vmatpush1.bf16.msra.mxu0 0
    %2181 = vmatprep.subr.bf16.mxu0 0
    %2182 = vmatpush1.bf16.msra.mxu0 0
    %2183 = vmatprep.subr.bf16.mxu0 0
    %2184 = vmatpush1.bf16.msra.mxu0 0
    %2185 = vmatprep.subr.bf16.mxu0 0
    %2186 = vmatpush1.bf16.msra.mxu0 0
    %2187 = vmatprep.mubr.bf16.mxu0 0
    %2188 = vmatmul.mubr.bf16.gmra.mrb[0].mxu0 %v2139
    %v2189 = vpop.f32.mrb[0].mxu0
    %v2190 = vadd.f32 %v2106, %v2189
    %v2191 = vpop.f32.mrb[0].mxu0
    %v2192 = vpop.f32.mrb[0].mxu0
    %v2193 = vadd.f32 %v2106, %v2192
    %v2194 = vpop.f32.mrb[0].mxu0
    %2195 = vmatprep.mubr.bf16.mxu0 0
    %2196 = vmatmul.mubr.bf16.gmra.mrb[0].mxu0 %v2140
    %v2197 = vpop.f32.mrb[0].mxu0
    %v2198 = vadd.f32 %v2106, %v2197
    %v2199 = vpop.f32.mrb[0].mxu0
    %v2200 = vpop.f32.mrb[0].mxu0
    %v2201 = vadd.f32 %v2106, %v2200
    %v2202 = vpop.f32.mrb[0].mxu0
    %2203 = vmatprep.mubr.bf16.mxu0 0
    %2204 = vmatmul.mubr.bf16.gmra.mrb[0].mxu0 %v2141
    %v2205 = vpop.f32.mrb[0].mxu0
    %v2206 = vadd.f32 %v2106, %v2205
    %v2207 = vpop.f32.mrb[0].mxu0
    %v2208 = vpop.f32.mrb[0].mxu0
    %v2209 = vadd.f32 %v2106, %v2208
    %v2210 = vpop.f32.mrb[0].mxu0
    %2211 = vmatprep.mubr.bf16.mxu0 0
    %2212 = vmatmul.mubr.bf16.gmra.mrb[0].mxu0 %v2142
    %v2213 = vpop.f32.mrb[0].mxu0
    %v2214 = vadd.f32 %v2106, %v2213
    %v2215 = vpop.f32.mrb[0].mxu0
    %v2216 = vpop.f32.mrb[0].mxu0
    %v2217 = vadd.f32 %v2106, %v2216
    %v2218 = vpop.f32.mrb[0].mxu0
    %2219 = vmatprep.mubr.bf16.mxu0 0
    %2220 = vmatmul.mubr.bf16.gmra.mrb[0].mxu0 %v2143
    %v2221 = vpop.f32.mrb[0].mxu0
    %v2222 = vadd.f32 %v2106, %v2221
    %v2223 = vpop.f32.mrb[0].mxu0
    %v2224 = vpop.f32.mrb[0].mxu0
    %v2225 = vadd.f32 %v2106, %v2224
    %v2226 = vpop.f32.mrb[0].mxu0
    %2227 = vmatprep.mubr.bf16.mxu0 0
    %2228 = vmatmul.mubr.bf16.gmra.mrb[0].mxu0 %v2144
    %v2229 = vpop.f32.mrb[0].mxu0
    %v2230 = vadd.f32 %v2106, %v2229
    %v2231 = vpop.f32.mrb[0].mxu0
    %v2232 = vpop.f32.mrb[0].mxu0
    %v2233 = vadd.f32 %v2106, %v2232
    %v2234 = vpop.f32.mrb[0].mxu0
    %2235 = vmatprep.mubr.bf16.mxu0 0
    %2236 = vmatmul.mubr.bf16.gmra.mrb[0].mxu0 %v2145
    %v2237 = vpop.f32.mrb[0].mxu0
    %v2238 = vadd.f32 %v2106, %v2237
    %v2239 = vpop.f32.mrb[0].mxu0
    %v2240 = vpop.f32.mrb[0].mxu0
    %v2241 = vadd.f32 %v2106, %v2240
    %v2242 = vpop.f32.mrb[0].mxu0
    %2243 = vmatprep.mubr.bf16.mxu0 0
    %2244 = vmatmul.mubr.bf16.gmra.mrb[0].mxu0 %v2146
    %v2245 = vpop.f32.mrb[0].mxu0
    %v2246 = vadd.f32 %v2106, %v2245
    %v2247 = vpop.f32.mrb[0].mxu0
    %v2248 = vpop.f32.mrb[0].mxu0
    %v2249 = vadd.f32 %v2106, %v2248
    %v2250 = vpop.f32.mrb[0].mxu0
    %2251 = vdwg.mxu0
    %v2252 = vpack.c.bf16 %v2193, %v2190
    %v2253 = vpack.c.bf16 %v2201, %v2198
    %v2254 = vpack.c.bf16 %v2209, %v2206
    %v2255 = vpack.c.bf16 %v2217, %v2214
    %v2256 = vpack.c.bf16 %v2225, %v2222
    %v2257 = vpack.c.bf16 %v2233, %v2230
    %v2258 = vpack.c.bf16 %v2241, %v2238
    %v2259 = vpack.c.bf16 %v2249, %v2246
    %v2260 = vld [vmem:[%s9] sm:$0xf]
    %v2261 = vld [vmem:[%s9 + $0x4] sm:$0xf]
    %v2262 = vld [vmem:[%s9 + $0x8] sm:$0xf]
    %v2263 = vld [vmem:[%s9 + $0xc] sm:$0xf]
    %v2264 = vld [vmem:[%s9 + $0x10] sm:$0xf]
    %v2265 = vld [vmem:[%s9 + $0x14] sm:$0xf]
    %v2266 = vld [vmem:[%s9 + $0x18] sm:$0xf]
    %v2267 = vld [vmem:[%s9 + $0x1c] sm:$0xf]
    %v2276 = vunpack.c.l.b16 %v2260
    %v2277 = vunpack.c.l.b16 %v2261
    %v2278 = vunpack.c.l.b16 %v2262
    %v2279 = vunpack.c.l.b16 %v2263
    %v2280 = vunpack.c.l.b16 %v2264
    %v2281 = vunpack.c.l.b16 %v2265
    %v2282 = vunpack.c.l.b16 %v2266
    %v2283 = vunpack.c.l.b16 %v2267
    %v2284 = vpack.c.b16 %v2277, %v2276
    %v2285 = vpack.c.b16 %v2279, %v2278
    %v2286 = vpack.c.b16 %v2281, %v2280
    %v2287 = vpack.c.b16 %v2283, %v2282
    %v2293 = vsel %vm102, %v2252, 0
    %v2296 = vsel %vm102, %v2253, 0
    %v2299 = vsel %vm102, %v2254, 0
    %v2302 = vsel %vm102, %v2255, 0
    %v2305 = vsel %vm102, %v2256, 0
    %v2308 = vsel %vm102, %v2257, 0
    %v2311 = vsel %vm102, %v2258, 0
    %v2314 = vsel %vm102, %v2259, 0
    %2316 = vmatprep.subr.bf16.mxu0 0
    %2317 = vmatpush1.bf16.msra.mxu0 %v2284
    %2318 = vmatprep.subr.bf16.mxu0 0
    %2319 = vmatpush1.bf16.msra.mxu0 %v2285
    %2320 = vmatprep.subr.bf16.mxu0 0
    %2321 = vmatpush1.bf16.msra.mxu0 %v2286
    %2322 = vmatprep.subr.bf16.mxu0 0
    %2323 = vmatpush1.bf16.msra.mxu0 %v2287
    %2324 = vmatprep.subr.bf16.mxu0 0
    %2325 = vmatpush1.bf16.msra.mxu0 0
    %2326 = vmatprep.subr.bf16.mxu0 0
    %2327 = vmatpush1.bf16.msra.mxu0 0
    %2328 = vmatprep.subr.bf16.mxu0 0
    %2329 = vmatpush1.bf16.msra.mxu0 0
    %2330 = vmatprep.subr.bf16.mxu0 0
    %2331 = vmatpush1.bf16.msra.mxu0 0
    %2332 = vmatprep.subr.bf16.mxu0 0
    %2333 = vmatpush1.bf16.msra.mxu0 0
    %2334 = vmatprep.subr.bf16.mxu0 0
    %2335 = vmatpush1.bf16.msra.mxu0 0
    %2336 = vmatprep.subr.bf16.mxu0 0
    %2337 = vmatpush1.bf16.msra.mxu0 0
    %2338 = vmatprep.subr.bf16.mxu0 0
    %2339 = vmatpush1.bf16.msra.mxu0 0
    %2340 = vmatprep.subr.bf16.mxu0 0
    %2341 = vmatpush1.bf16.msra.mxu0 0
    %2342 = vmatprep.subr.bf16.mxu0 0
    %2343 = vmatpush1.bf16.msra.mxu0 0
    %2344 = vmatprep.subr.bf16.mxu0 0
    %2345 = vmatpush1.bf16.msra.mxu0 0
    %2346 = vmatprep.subr.bf16.mxu0 0
    %2347 = vmatpush1.bf16.msra.mxu0 0
    %2348 = vmatprep.mubr.bf16.mxu0 0
    %2349 = vmatmul.mubr.bf16.gmra.mrb[0].mxu0 %v2293
    %v2350 = vpop.f32.mrb[0].mxu0
    %v2351 = vadd.f32 0.0, %v2350
    %v2352 = vpop.f32.mrb[0].mxu0
    %v2353 = vpop.f32.mrb[0].mxu0
    %v2354 = vadd.f32 0.0, %v2353
    %v2355 = vpop.f32.mrb[0].mxu0
    %2356 = vmatprep.mubr.bf16.mxu0 0
    %2357 = vmatmul.mubr.bf16.gmra.mrb[0].mxu0 %v2296
    %v2358 = vpop.f32.mrb[0].mxu0
    %v2359 = vadd.f32 0.0, %v2358
    %v2360 = vpop.f32.mrb[0].mxu0
    %v2361 = vpop.f32.mrb[0].mxu0
    %v2362 = vadd.f32 0.0, %v2361
    %v2363 = vpop.f32.mrb[0].mxu0
    %2364 = vmatprep.mubr.bf16.mxu0 0
    %2365 = vmatmul.mubr.bf16.gmra.mrb[0].mxu0 %v2299
    %v2366 = vpop.f32.mrb[0].mxu0
    %v2367 = vadd.f32 0.0, %v2366
    %v2368 = vpop.f32.mrb[0].mxu0
    %v2369 = vpop.f32.mrb[0].mxu0
    %v2370 = vadd.f32 0.0, %v2369
    %v2371 = vpop.f32.mrb[0].mxu0
    %2372 = vmatprep.mubr.bf16.mxu0 0
    %2373 = vmatmul.mubr.bf16.gmra.mrb[0].mxu0 %v2302
    %v2374 = vpop.f32.mrb[0].mxu0
    %v2375 = vadd.f32 0.0, %v2374
    %v2376 = vpop.f32.mrb[0].mxu0
    %v2377 = vpop.f32.mrb[0].mxu0
    %v2378 = vadd.f32 0.0, %v2377
    %v2379 = vpop.f32.mrb[0].mxu0
    %2380 = vmatprep.mubr.bf16.mxu0 0
    %2381 = vmatmul.mubr.bf16.gmra.mrb[0].mxu0 %v2305
    %v2382 = vpop.f32.mrb[0].mxu0
    %v2383 = vadd.f32 0.0, %v2382
    %v2384 = vpop.f32.mrb[0].mxu0
    %v2385 = vpop.f32.mrb[0].mxu0
    %v2386 = vadd.f32 0.0, %v2385
    %v2387 = vpop.f32.mrb[0].mxu0
    %2388 = vmatprep.mubr.bf16.mxu0 0
    %2389 = vmatmul.mubr.bf16.gmra.mrb[0].mxu0 %v2308
    %v2390 = vpop.f32.mrb[0].mxu0
    %v2391 = vadd.f32 0.0, %v2390
    %v2392 = vpop.f32.mrb[0].mxu0
    %v2393 = vpop.f32.mrb[0].mxu0
    %v2394 = vadd.f32 0.0, %v2393
    %v2395 = vpop.f32.mrb[0].mxu0
    %2396 = vmatprep.mubr.bf16.mxu0 0
    %2397 = vmatmul.mubr.bf16.gmra.mrb[0].mxu0 %v2311
    %v2398 = vpop.f32.mrb[0].mxu0
    %v2399 = vadd.f32 0.0, %v2398
    %v2400 = vpop.f32.mrb[0].mxu0
    %v2401 = vpop.f32.mrb[0].mxu0
    %v2402 = vadd.f32 0.0, %v2401
    %v2403 = vpop.f32.mrb[0].mxu0
    %2404 = vmatprep.mubr.bf16.mxu0 0
    %2405 = vmatmul.mubr.bf16.gmra.mrb[0].mxu0 %v2314
    %v2406 = vpop.f32.mrb[0].mxu0
    %v2407 = vadd.f32 0.0, %v2406
    %v2408 = vpop.f32.mrb[0].mxu0
    %v2409 = vpop.f32.mrb[0].mxu0
    %v2410 = vadd.f32 0.0, %v2409
    %v2411 = vpop.f32.mrb[0].mxu0
    %2412 = vdwg.mxu0
    %v2413 = vld [vmem:[%s11 + $0x9] sm:$0x1]
    %v2414 = vlaneseq
    %v2415 = vshrl.u32 %v2414, 7
    %v2416 = vsub.s32 0, %v2415
    %v2417 = vrot.slane %v2413, %v2416
    %v2418 = vmul.f32 %v2351, %v2417
    %v2419 = vmul.f32 %v2354, %v2417
    %v2420 = vmul.f32 %v2359, %v2417
    %v2421 = vmul.f32 %v2362, %v2417
    %v2422 = vmul.f32 %v2367, %v2417
    %v2423 = vmul.f32 %v2370, %v2417
    %v2424 = vmul.f32 %v2375, %v2417
    %v2425 = vmul.f32 %v2378, %v2417
    %v2426 = vmul.f32 %v2383, %v2417
    %v2427 = vmul.f32 %v2386, %v2417
    %v2428 = vmul.f32 %v2391, %v2417
    %v2429 = vmul.f32 %v2394, %v2417
    %v2430 = vmul.f32 %v2399, %v2417
    %v2431 = vmul.f32 %v2402, %v2417
    %v2432 = vmul.f32 %v2407, %v2417
    %v2433 = vmul.f32 %v2410, %v2417
    %v2434 = vld [vmem:[%s11 + $0xa] sm:$0x1]
    %v2435 = vlaneseq
    %v2436 = vshrl.u32 %v2435, 7
    %v2437 = vsub.s32 0, %v2436
    %v2438 = vrot.slane %v2434, %v2437
    %v2439 = vadd.f32 %v2418, %v2438
    %v2440 = vadd.f32 %v2419, %v2438
    %v2441 = vadd.f32 %v2420, %v2438
    %v2442 = vadd.f32 %v2421, %v2438
    %v2443 = vadd.f32 %v2422, %v2438
    %v2444 = vadd.f32 %v2423, %v2438
    %v2445 = vadd.f32 %v2424, %v2438
    %v2446 = vadd.f32 %v2425, %v2438
    %v2447 = vadd.f32 %v2426, %v2438
    %v2448 = vadd.f32 %v2427, %v2438
    %v2449 = vadd.f32 %v2428, %v2438
    %v2450 = vadd.f32 %v2429, %v2438
    %v2451 = vadd.f32 %v2430, %v2438
    %v2452 = vadd.f32 %v2431, %v2438
    %v2453 = vadd.f32 %v2432, %v2438
    %v2454 = vadd.f32 %v2433, %v2438
    %v2455 = vmax.f32 %v2439, 0.0
    %v2456 = vmax.f32 %v2440, 0.0
    %v2457 = vmax.f32 %v2441, 0.0
    %v2458 = vmax.f32 %v2442, 0.0
    %v2459 = vmax.f32 %v2443, 0.0
    %v2460 = vmax.f32 %v2444, 0.0
    %v2461 = vmax.f32 %v2445, 0.0
    %v2462 = vmax.f32 %v2446, 0.0
    %v2463 = vmax.f32 %v2447, 0.0
    %v2464 = vmax.f32 %v2448, 0.0
    %v2465 = vmax.f32 %v2449, 0.0
    %v2466 = vmax.f32 %v2450, 0.0
    %v2467 = vmax.f32 %v2451, 0.0
    %v2468 = vmax.f32 %v2452, 0.0
    %v2469 = vmax.f32 %v2453, 0.0
    %v2470 = vmax.f32 %v2454, 0.0
    %v2471 = vpack.c.bf16 %v2456, %v2455
    %v2472 = vpack.c.bf16 %v2458, %v2457
    %v2473 = vpack.c.bf16 %v2460, %v2459
    %v2474 = vpack.c.bf16 %v2462, %v2461
    %v2475 = vpack.c.bf16 %v2464, %v2463
    %v2476 = vpack.c.bf16 %v2466, %v2465
    %v2477 = vpack.c.bf16 %v2468, %v2467
    %v2478 = vpack.c.bf16 %v2470, %v2469
    %v2479 = vld [vmem:[%s10] sm:$0xf]
    %v2480 = vld [vmem:[%s10 + $0x4] sm:$0xf]
    %v2481 = vld [vmem:[%s10 + $0x8] sm:$0xf]
    %v2482 = vld [vmem:[%s10 + $0xc] sm:$0xf]
    %v2483 = vld [vmem:[%s10 + $0x10] sm:$0xf]
    %v2484 = vld [vmem:[%s10 + $0x14] sm:$0xf]
    %v2485 = vld [vmem:[%s10 + $0x18] sm:$0xf]
    %v2486 = vld [vmem:[%s10 + $0x1c] sm:$0xf]
    %v2487 = vld [vmem:[%s10 + $0x20] sm:$0xf]
    %v2488 = vld [vmem:[%s10 + $0x24] sm:$0xf]
    %v2489 = vld [vmem:[%s10 + $0x28] sm:$0xf]
    %v2490 = vld [vmem:[%s10 + $0x2c] sm:$0xf]
    %v2491 = vld [vmem:[%s10 + $0x30] sm:$0xf]
    %v2492 = vld [vmem:[%s10 + $0x34] sm:$0xf]
    %v2493 = vld [vmem:[%s10 + $0x38] sm:$0xf]
    %v2494 = vld [vmem:[%s10 + $0x3c] sm:$0xf]
    %v2495 = vld [vmem:[%s11 + $0xb] sm:$0x1]
    %v2496 = vlaneseq
    %v2497 = vshrl.u32 %v2496, 7
    %v2498 = vsub.s32 0, %v2497
    %v2499 = vrot.slane %v2495, %v2498
    %v2516 = vunpack.c.l.b16 %v2479
    %v2517 = vunpack.c.l.b16 %v2480
    %v2518 = vunpack.c.l.b16 %v2481
    %v2519 = vunpack.c.l.b16 %v2482
    %v2520 = vunpack.c.l.b16 %v2483
    %v2521 = vunpack.c.l.b16 %v2484
    %v2522 = vunpack.c.l.b16 %v2485
    %v2523 = vunpack.c.l.b16 %v2486
    %v2524 = vunpack.c.l.b16 %v2487
    %v2525 = vunpack.c.l.b16 %v2488
    %v2526 = vunpack.c.l.b16 %v2489
    %v2527 = vunpack.c.l.b16 %v2490
    %v2528 = vunpack.c.l.b16 %v2491
    %v2529 = vunpack.c.l.b16 %v2492
    %v2530 = vunpack.c.l.b16 %v2493
    %v2531 = vunpack.c.l.b16 %v2494
    %v2532 = vpack.c.b16 %v2517, %v2516
    %v2533 = vpack.c.b16 %v2519, %v2518
    %v2534 = vpack.c.b16 %v2521, %v2520
    %v2535 = vpack.c.b16 %v2523, %v2522
    %v2536 = vpack.c.b16 %v2525, %v2524
    %v2537 = vpack.c.b16 %v2527, %v2526
    %v2538 = vpack.c.b16 %v2529, %v2528
    %v2539 = vpack.c.b16 %v2531, %v2530
    %2548 = vmatprep.subr.bf16.mxu0 0
    %2549 = vmatpush1.bf16.msra.mxu0 %v2532
    %2550 = vmatprep.subr.bf16.mxu0 0
    %2551 = vmatpush1.bf16.msra.mxu0 %v2533
    %2552 = vmatprep.subr.bf16.mxu0 0
    %2553 = vmatpush1.bf16.msra.mxu0 %v2534
    %2554 = vmatprep.subr.bf16.mxu0 0
    %2555 = vmatpush1.bf16.msra.mxu0 %v2535
    %2556 = vmatprep.subr.bf16.mxu0 0
    %2557 = vmatpush1.bf16.msra.mxu0 %v2536
    %2558 = vmatprep.subr.bf16.mxu0 0
    %2559 = vmatpush1.bf16.msra.mxu0 %v2537
    %2560 = vmatprep.subr.bf16.mxu0 0
    %2561 = vmatpush1.bf16.msra.mxu0 %v2538
    %2562 = vmatprep.subr.bf16.mxu0 0
    %2563 = vmatpush1.bf16.msra.mxu0 %v2539
    %2564 = vmatprep.subr.bf16.mxu0 0
    %2565 = vmatpush1.bf16.msra.mxu0 0
    %2566 = vmatprep.subr.bf16.mxu0 0
    %2567 = vmatpush1.bf16.msra.mxu0 0
    %2568 = vmatprep.subr.bf16.mxu0 0
    %2569 = vmatpush1.bf16.msra.mxu0 0
    %2570 = vmatprep.subr.bf16.mxu0 0
    %2571 = vmatpush1.bf16.msra.mxu0 0
    %2572 = vmatprep.subr.bf16.mxu0 0
    %2573 = vmatpush1.bf16.msra.mxu0 0
    %2574 = vmatprep.subr.bf16.mxu0 0
    %2575 = vmatpush1.bf16.msra.mxu0 0
    %2576 = vmatprep.subr.bf16.mxu0 0
    %2577 = vmatpush1.bf16.msra.mxu0 0
    %2578 = vmatprep.subr.bf16.mxu0 0
    %2579 = vmatpush1.bf16.msra.mxu0 0
    %2580 = vmatprep.mubr.bf16.mxu0 0
    %2581 = vmatmul.mubr.bf16.gmra.mrb[0].mxu0 %v2471
    %v2582 = vpop.f32.mrb[0].mxu0
    %v2583 = vadd.f32 %v2499, %v2582
    %v2584 = vpop.f32.mrb[0].mxu0
    %v2585 = vpop.f32.mrb[0].mxu0
    %v2586 = vadd.f32 %v2499, %v2585
    %v2587 = vpop.f32.mrb[0].mxu0
    %2588 = vmatprep.mubr.bf16.mxu0 0
    %2589 = vmatmul.mubr.bf16.gmra.mrb[0].mxu0 %v2472
    %v2590 = vpop.f32.mrb[0].mxu0
    %v2591 = vadd.f32 %v2499, %v2590
    %v2592 = vpop.f32.mrb[0].mxu0
    %v2593 = vpop.f32.mrb[0].mxu0
    %v2594 = vadd.f32 %v2499, %v2593
    %v2595 = vpop.f32.mrb[0].mxu0
    %2596 = vmatprep.mubr.bf16.mxu0 0
    %2597 = vmatmul.mubr.bf16.gmra.mrb[0].mxu0 %v2473
    %v2598 = vpop.f32.mrb[0].mxu0
    %v2599 = vadd.f32 %v2499, %v2598
    %v2600 = vpop.f32.mrb[0].mxu0
    %v2601 = vpop.f32.mrb[0].mxu0
    %v2602 = vadd.f32 %v2499, %v2601
    %v2603 = vpop.f32.mrb[0].mxu0
    %2604 = vmatprep.mubr.bf16.mxu0 0
    %2605 = vmatmul.mubr.bf16.gmra.mrb[0].mxu0 %v2474
    %v2606 = vpop.f32.mrb[0].mxu0
    %v2607 = vadd.f32 %v2499, %v2606
    %v2608 = vpop.f32.mrb[0].mxu0
    %v2609 = vpop.f32.mrb[0].mxu0
    %v2610 = vadd.f32 %v2499, %v2609
    %v2611 = vpop.f32.mrb[0].mxu0
    %2612 = vmatprep.mubr.bf16.mxu0 0
    %2613 = vmatmul.mubr.bf16.gmra.mrb[0].mxu0 %v2475
    %v2614 = vpop.f32.mrb[0].mxu0
    %v2615 = vadd.f32 %v2499, %v2614
    %v2616 = vpop.f32.mrb[0].mxu0
    %v2617 = vpop.f32.mrb[0].mxu0
    %v2618 = vadd.f32 %v2499, %v2617
    %v2619 = vpop.f32.mrb[0].mxu0
    %2620 = vmatprep.mubr.bf16.mxu0 0
    %2621 = vmatmul.mubr.bf16.gmra.mrb[0].mxu0 %v2476
    %v2622 = vpop.f32.mrb[0].mxu0
    %v2623 = vadd.f32 %v2499, %v2622
    %v2624 = vpop.f32.mrb[0].mxu0
    %v2625 = vpop.f32.mrb[0].mxu0
    %v2626 = vadd.f32 %v2499, %v2625
    %v2627 = vpop.f32.mrb[0].mxu0
    %2628 = vmatprep.mubr.bf16.mxu0 0
    %2629 = vmatmul.mubr.bf16.gmra.mrb[0].mxu0 %v2477
    %v2630 = vpop.f32.mrb[0].mxu0
    %v2631 = vadd.f32 %v2499, %v2630
    %v2632 = vpop.f32.mrb[0].mxu0
    %v2633 = vpop.f32.mrb[0].mxu0
    %v2634 = vadd.f32 %v2499, %v2633
    %v2635 = vpop.f32.mrb[0].mxu0
    %2636 = vmatprep.mubr.bf16.mxu0 0
    %2637 = vmatmul.mubr.bf16.gmra.mrb[0].mxu0 %v2478
    %v2638 = vpop.f32.mrb[0].mxu0
    %v2639 = vadd.f32 %v2499, %v2638
    %v2640 = vpop.f32.mrb[0].mxu0
    %v2641 = vpop.f32.mrb[0].mxu0
    %v2642 = vadd.f32 %v2499, %v2641
    %v2643 = vpop.f32.mrb[0].mxu0
    %2644 = vdwg.mxu0
    %2645 = vst.msk [vmem:[%s14] sm:$0xff] %vm102, %v2583
    %2646 = vst.msk [vmem:[%s14 + $0x8] sm:$0xff] %vm102, %v2586
    %2647 = vst.msk [vmem:[%s14 + $0x10] sm:$0xff] %vm102, %v2591
    %2648 = vst.msk [vmem:[%s14 + $0x18] sm:$0xff] %vm102, %v2594
    %2649 = vst.msk [vmem:[%s14 + $0x20] sm:$0xff] %vm102, %v2599
    %2650 = vst.msk [vmem:[%s14 + $0x28] sm:$0xff] %vm102, %v2602
    %2651 = vst.msk [vmem:[%s14 + $0x30] sm:$0xff] %vm102, %v2607
    %2652 = vst.msk [vmem:[%s14 + $0x38] sm:$0xff] %vm102, %v2610
    %2653 = vst.msk [vmem:[%s14 + $0x40] sm:$0xff] %vm102, %v2615
    %2654 = vst.msk [vmem:[%s14 + $0x48] sm:$0xff] %vm102, %v2618
    %2655 = vst.msk [vmem:[%s14 + $0x50] sm:$0xff] %vm102, %v2623
    %2656 = vst.msk [vmem:[%s14 + $0x58] sm:$0xff] %vm102, %v2626
    %2657 = vst.msk [vmem:[%s14 + $0x60] sm:$0xff] %vm102, %v2631
    %2658 = vst.msk [vmem:[%s14 + $0x68] sm:$0xff] %vm102, %v2634
    %2659 = vst.msk [vmem:[%s14 + $0x70] sm:$0xff] %vm102, %v2639
    %2660 = vst.msk [vmem:[%s14 + $0x78] sm:$0xff] %vm102, %v2642
    %v2661 = vmul.f32 %v1673, %v1673
    %v2662 = vmul.f32 %v1674, %v1674
    %v2663 = vmul.f32 %v1675, %v1675
    %v2664 = vmul.f32 %v1676, %v1676
    %v2665 = vmul.f32 %v1677, %v1677
    %v2666 = vmul.f32 %v1678, %v1678
    %v2667 = vmul.f32 %v1679, %v1679
    %v2668 = vmul.f32 %v1680, %v1680
    %v2669 = vmul.f32 %v1681, %v1681
    %v2670 = vmul.f32 %v1682, %v1682
    %v2671 = vmul.f32 %v1683, %v1683
    %v2672 = vmul.f32 %v1684, %v1684
    %v2673 = vmul.f32 %v1685, %v1685
    %v2674 = vmul.f32 %v1686, %v1686
    %v2675 = vmul.f32 %v1687, %v1687
    %v2676 = vmul.f32 %v1688, %v1688
    %v2677 = vsel %vm1813, %v2661, 0.0
    %2678 = vadd.xlane.f32.xlu0 %v2677
    %v2679 = vpop.xlane.xlu0 %2678
    %v2680 = vsel %vm1813, %v2662, 0.0
    %2681 = vadd.xlane.f32.xlu0 %v2680
    %v2682 = vpop.xlane.xlu0 %2681
    %v2683 = vsel %vm1813, %v2663, 0.0
    %2684 = vadd.xlane.f32.xlu0 %v2683
    %v2685 = vpop.xlane.xlu0 %2684
    %v2686 = vsel %vm1813, %v2664, 0.0
    %2687 = vadd.xlane.f32.xlu0 %v2686
    %v2688 = vpop.xlane.xlu0 %2687
    %v2689 = vsel %vm1813, %v2665, 0.0
    %2690 = vadd.xlane.f32.xlu0 %v2689
    %v2691 = vpop.xlane.xlu0 %2690
    %v2692 = vsel %vm1813, %v2666, 0.0
    %2693 = vadd.xlane.f32.xlu0 %v2692
    %v2694 = vpop.xlane.xlu0 %2693
    %v2695 = vsel %vm1813, %v2667, 0.0
    %2696 = vadd.xlane.f32.xlu0 %v2695
    %v2697 = vpop.xlane.xlu0 %2696
    %v2698 = vsel %vm1813, %v2668, 0.0
    %2699 = vadd.xlane.f32.xlu0 %v2698
    %v2700 = vpop.xlane.xlu0 %2699
    %v2701 = vsel %vm1813, %v2669, 0.0
    %2702 = vadd.xlane.f32.xlu0 %v2701
    %v2703 = vpop.xlane.xlu0 %2702
    %v2704 = vsel %vm1813, %v2670, 0.0
    %2705 = vadd.xlane.f32.xlu0 %v2704
    %v2706 = vpop.xlane.xlu0 %2705
    %v2707 = vsel %vm1813, %v2671, 0.0
    %2708 = vadd.xlane.f32.xlu0 %v2707
    %v2709 = vpop.xlane.xlu0 %2708
    %v2710 = vsel %vm1813, %v2672, 0.0
    %2711 = vadd.xlane.f32.xlu0 %v2710
    %v2712 = vpop.xlane.xlu0 %2711
    %v2713 = vsel %vm1813, %v2673, 0.0
    %2714 = vadd.xlane.f32.xlu0 %v2713
    %v2715 = vpop.xlane.xlu0 %2714
    %v2716 = vsel %vm1813, %v2674, 0.0
    %2717 = vadd.xlane.f32.xlu0 %v2716
    %v2718 = vpop.xlane.xlu0 %2717
    %v2719 = vsel %vm1813, %v2675, 0.0
    %2720 = vadd.xlane.f32.xlu0 %v2719
    %v2721 = vpop.xlane.xlu0 %2720
    %v2722 = vsel %vm1813, %v2676, 0.0
    %2723 = vadd.xlane.f32.xlu0 %v2722
    %v2724 = vpop.xlane.xlu0 %2723
    %v2725 = vld [vmem:[%s11 + $0xc] sm:$0x1]
    %v2726 = vlaneseq
    %v2727 = vshrl.u32 %v2726, 7
    %v2728 = vsub.s32 0, %v2727
    %v2729 = vrot.slane %v2725, %v2728
    %v2730 = vadd.f32 %v2679, %v2729
    %v2731 = vadd.f32 %v2682, %v2729
    %v2732 = vadd.f32 %v2685, %v2729
    %v2733 = vadd.f32 %v2688, %v2729
    %v2734 = vadd.f32 %v2691, %v2729
    %v2735 = vadd.f32 %v2694, %v2729
    %v2736 = vadd.f32 %v2697, %v2729
    %v2737 = vadd.f32 %v2700, %v2729
    %v2738 = vadd.f32 %v2703, %v2729
    %v2739 = vadd.f32 %v2706, %v2729
    %v2740 = vadd.f32 %v2709, %v2729
    %v2741 = vadd.f32 %v2712, %v2729
    %v2742 = vadd.f32 %v2715, %v2729
    %v2743 = vadd.f32 %v2718, %v2729
    %v2744 = vadd.f32 %v2721, %v2729
    %v2745 = vadd.f32 %v2724, %v2729
    %v2746 = vmul.f32 %v1890, 2.0
    %v2747 = vmul.f32 %v1894, 2.0
    %v2748 = vmul.f32 %v1900, 2.0
    %v2749 = vmul.f32 %v1904, 2.0
    %v2750 = vmul.f32 %v1910, 2.0
    %v2751 = vmul.f32 %v1914, 2.0
    %v2752 = vmul.f32 %v1920, 2.0
    %v2753 = vmul.f32 %v1924, 2.0
    %v2754 = vmul.f32 %v1930, 2.0
    %v2755 = vmul.f32 %v1934, 2.0
    %v2756 = vmul.f32 %v1940, 2.0
    %v2757 = vmul.f32 %v1944, 2.0
    %v2758 = vmul.f32 %v1950, 2.0
    %v2759 = vmul.f32 %v1954, 2.0
    %v2760 = vmul.f32 %v1960, 2.0
    %v2761 = vmul.f32 %v1964, 2.0
    %2778 = vrot.lane.b32.xlu0 %v2746, 64
    %v2779 = vpop.permute.xlu0 %2778
    %2780 = vrot.lane.b32.xlu0 %v2747, 64
    %v2781 = vpop.permute.xlu0 %2780
    %2782 = vrot.lane.b32.xlu0 %v2748, 64
    %v2783 = vpop.permute.xlu0 %2782
    %2784 = vrot.lane.b32.xlu0 %v2749, 64
    %v2785 = vpop.permute.xlu0 %2784
    %2786 = vrot.lane.b32.xlu0 %v2750, 64
    %v2787 = vpop.permute.xlu0 %2786
    %2788 = vrot.lane.b32.xlu0 %v2751, 64
    %v2789 = vpop.permute.xlu0 %2788
    %2790 = vrot.lane.b32.xlu0 %v2752, 64
    %v2791 = vpop.permute.xlu0 %2790
    %2792 = vrot.lane.b32.xlu0 %v2753, 64
    %v2793 = vpop.permute.xlu0 %2792
    %2794 = vrot.lane.b32.xlu0 %v2754, 64
    %v2795 = vpop.permute.xlu0 %2794
    %2796 = vrot.lane.b32.xlu0 %v2755, 64
    %v2797 = vpop.permute.xlu0 %2796
    %2798 = vrot.lane.b32.xlu0 %v2756, 64
    %v2799 = vpop.permute.xlu0 %2798
    %2800 = vrot.lane.b32.xlu0 %v2757, 64
    %v2801 = vpop.permute.xlu0 %2800
    %2802 = vrot.lane.b32.xlu0 %v2758, 64
    %v2803 = vpop.permute.xlu0 %2802
    %2804 = vrot.lane.b32.xlu0 %v2759, 64
    %v2805 = vpop.permute.xlu0 %2804
    %2806 = vrot.lane.b32.xlu0 %v2760, 64
    %v2807 = vpop.permute.xlu0 %2806
    %2808 = vrot.lane.b32.xlu0 %v2761, 64
    %v2809 = vpop.permute.xlu0 %2808
    %v2826 = vsub.f32 %v2730, %v2779
    %v2827 = vsub.f32 %v2731, %v2781
    %v2828 = vsub.f32 %v2732, %v2783
    %v2829 = vsub.f32 %v2733, %v2785
    %v2830 = vsub.f32 %v2734, %v2787
    %v2831 = vsub.f32 %v2735, %v2789
    %v2832 = vsub.f32 %v2736, %v2791
    %v2833 = vsub.f32 %v2737, %v2793
    %v2834 = vsub.f32 %v2738, %v2795
    %v2835 = vsub.f32 %v2739, %v2797
    %v2836 = vsub.f32 %v2740, %v2799
    %v2837 = vsub.f32 %v2741, %v2801
    %v2838 = vsub.f32 %v2742, %v2803
    %v2839 = vsub.f32 %v2743, %v2805
    %v2840 = vsub.f32 %v2744, %v2807
    %v2841 = vsub.f32 %v2745, %v2809
    %v2842 = vmax.f32 %v2826, 0.0
    %v2843 = vmax.f32 %v2827, 0.0
    %v2844 = vmax.f32 %v2828, 0.0
    %v2845 = vmax.f32 %v2829, 0.0
    %v2846 = vmax.f32 %v2830, 0.0
    %v2847 = vmax.f32 %v2831, 0.0
    %v2848 = vmax.f32 %v2832, 0.0
    %v2849 = vmax.f32 %v2833, 0.0
    %v2850 = vmax.f32 %v2834, 0.0
    %v2851 = vmax.f32 %v2835, 0.0
    %v2852 = vmax.f32 %v2836, 0.0
    %v2853 = vmax.f32 %v2837, 0.0
    %v2854 = vmax.f32 %v2838, 0.0
    %v2855 = vmax.f32 %v2839, 0.0
    %v2856 = vmax.f32 %v2840, 0.0
    %v2857 = vmax.f32 %v2841, 0.0
    %v2858 = vmul.f32 %v2842, 0.6666667
    %v2859 = vmul.f32 %v2843, 0.6666667
    %v2860 = vmul.f32 %v2844, 0.6666667
    %v2861 = vmul.f32 %v2845, 0.6666667
    %v2862 = vmul.f32 %v2846, 0.6666667
    %v2863 = vmul.f32 %v2847, 0.6666667
    %v2864 = vmul.f32 %v2848, 0.6666667
    %v2865 = vmul.f32 %v2849, 0.6666667
    %v2866 = vmul.f32 %v2850, 0.6666667
    %v2867 = vmul.f32 %v2851, 0.6666667
    %v2868 = vmul.f32 %v2852, 0.6666667
    %v2869 = vmul.f32 %v2853, 0.6666667
    %v2870 = vmul.f32 %v2854, 0.6666667
    %v2871 = vmul.f32 %v2855, 0.6666667
    %v2872 = vmul.f32 %v2856, 0.6666667
    %v2873 = vmul.f32 %v2857, 0.6666667
    %v2874 = vadd.f32 %v2858, 1.0
    %v2875 = vadd.f32 %v2859, 1.0
    %v2876 = vadd.f32 %v2860, 1.0
    %v2877 = vadd.f32 %v2861, 1.0
    %v2878 = vadd.f32 %v2862, 1.0
    %v2879 = vadd.f32 %v2863, 1.0
    %v2880 = vadd.f32 %v2864, 1.0
    %v2881 = vadd.f32 %v2865, 1.0
    %v2882 = vadd.f32 %v2866, 1.0
    %v2883 = vadd.f32 %v2867, 1.0
    %v2884 = vadd.f32 %v2868, 1.0
    %v2885 = vadd.f32 %v2869, 1.0
    %v2886 = vadd.f32 %v2870, 1.0
    %v2887 = vadd.f32 %v2871, 1.0
    %v2888 = vadd.f32 %v2872, 1.0
    %v2889 = vadd.f32 %v2873, 1.0
    %v2890 = vadd.f32 %v2874, 1e-08
    %v2891 = vadd.f32 %v2875, 1e-08
    %v2892 = vadd.f32 %v2876, 1e-08
    %v2893 = vadd.f32 %v2877, 1e-08
    %v2894 = vadd.f32 %v2878, 1e-08
    %v2895 = vadd.f32 %v2879, 1e-08
    %v2896 = vadd.f32 %v2880, 1e-08
    %v2897 = vadd.f32 %v2881, 1e-08
    %v2898 = vadd.f32 %v2882, 1e-08
    %v2899 = vadd.f32 %v2883, 1e-08
    %v2900 = vadd.f32 %v2884, 1e-08
    %v2901 = vadd.f32 %v2885, 1e-08
    %v2902 = vadd.f32 %v2886, 1e-08
    %v2903 = vadd.f32 %v2887, 1e-08
    %v2904 = vadd.f32 %v2888, 1e-08
    %v2905 = vadd.f32 %v2889, 1e-08
    %v2906 = vrcp.pop %v2890
    %v2907 = vrcp.pop %v2891
    %v2908 = vrcp.pop %v2892
    %v2909 = vrcp.pop %v2893
    %v2910 = vrcp.pop %v2894
    %v2911 = vrcp.pop %v2895
    %v2912 = vrcp.pop %v2896
    %v2913 = vrcp.pop %v2897
    %v2914 = vrcp.pop %v2898
    %v2915 = vrcp.pop %v2899
    %v2916 = vrcp.pop %v2900
    %v2917 = vrcp.pop %v2901
    %v2918 = vrcp.pop %v2902
    %v2919 = vrcp.pop %v2903
    %v2920 = vrcp.pop %v2904
    %v2921 = vrcp.pop %v2905
    %v2922 = vpow.f32 %v2906, 1.25
    %v2923 = vpow.f32 %v2907, 1.25
    %v2924 = vpow.f32 %v2908, 1.25
    %v2925 = vpow.f32 %v2909, 1.25
    %v2926 = vpow.f32 %v2910, 1.25
    %v2927 = vpow.f32 %v2911, 1.25
    %v2928 = vpow.f32 %v2912, 1.25
    %v2929 = vpow.f32 %v2913, 1.25
    %v2930 = vpow.f32 %v2914, 1.25
    %v2931 = vpow.f32 %v2915, 1.25
    %v2932 = vpow.f32 %v2916, 1.25
    %v2933 = vpow.f32 %v2917, 1.25
    %v2934 = vpow.f32 %v2918, 1.25
    %v2935 = vpow.f32 %v2919, 1.25
    %v2936 = vpow.f32 %v2920, 1.25
    %v2937 = vpow.f32 %v2921, 1.25
    %vm2938 = vcmask 121856
    %v2939 = vsel %vm2938, %v2922, 0.0
    %2940 = vadd.xlane.f32.xlu0 %v2939
    %v2941 = vpop.xlane.xlu0 %2940
    %v2942 = vsel %vm2938, %v2923, 0.0
    %2943 = vadd.xlane.f32.xlu0 %v2942
    %v2944 = vpop.xlane.xlu0 %2943
    %v2945 = vsel %vm2938, %v2924, 0.0
    %2946 = vadd.xlane.f32.xlu0 %v2945
    %v2947 = vpop.xlane.xlu0 %2946
    %v2948 = vsel %vm2938, %v2925, 0.0
    %2949 = vadd.xlane.f32.xlu0 %v2948
    %v2950 = vpop.xlane.xlu0 %2949
    %v2951 = vsel %vm2938, %v2926, 0.0
    %2952 = vadd.xlane.f32.xlu0 %v2951
    %v2953 = vpop.xlane.xlu0 %2952
    %v2954 = vsel %vm2938, %v2927, 0.0
    %2955 = vadd.xlane.f32.xlu0 %v2954
    %v2956 = vpop.xlane.xlu0 %2955
    %v2957 = vsel %vm2938, %v2928, 0.0
    %2958 = vadd.xlane.f32.xlu0 %v2957
    %v2959 = vpop.xlane.xlu0 %2958
    %v2960 = vsel %vm2938, %v2929, 0.0
    %2961 = vadd.xlane.f32.xlu0 %v2960
    %v2962 = vpop.xlane.xlu0 %2961
    %v2963 = vsel %vm2938, %v2930, 0.0
    %2964 = vadd.xlane.f32.xlu0 %v2963
    %v2965 = vpop.xlane.xlu0 %2964
    %v2966 = vsel %vm2938, %v2931, 0.0
    %2967 = vadd.xlane.f32.xlu0 %v2966
    %v2968 = vpop.xlane.xlu0 %2967
    %v2969 = vsel %vm2938, %v2932, 0.0
    %2970 = vadd.xlane.f32.xlu0 %v2969
    %v2971 = vpop.xlane.xlu0 %2970
    %v2972 = vsel %vm2938, %v2933, 0.0
    %2973 = vadd.xlane.f32.xlu0 %v2972
    %v2974 = vpop.xlane.xlu0 %2973
    %v2975 = vsel %vm2938, %v2934, 0.0
    %2976 = vadd.xlane.f32.xlu0 %v2975
    %v2977 = vpop.xlane.xlu0 %2976
    %v2978 = vsel %vm2938, %v2935, 0.0
    %2979 = vadd.xlane.f32.xlu0 %v2978
    %v2980 = vpop.xlane.xlu0 %2979
    %v2981 = vsel %vm2938, %v2936, 0.0
    %2982 = vadd.xlane.f32.xlu0 %v2981
    %v2983 = vpop.xlane.xlu0 %2982
    %v2984 = vsel %vm2938, %v2937, 0.0
    %2985 = vadd.xlane.f32.xlu0 %v2984
    %v2986 = vpop.xlane.xlu0 %2985
    %v2987 = vrcp.pop %v2941
    %v2988 = vrcp.pop %v2944
    %v2989 = vrcp.pop %v2947
    %v2990 = vrcp.pop %v2950
    %v2991 = vrcp.pop %v2953
    %v2992 = vrcp.pop %v2956
    %v2993 = vrcp.pop %v2959
    %v2994 = vrcp.pop %v2962
    %v2995 = vrcp.pop %v2965
    %v2996 = vrcp.pop %v2968
    %v2997 = vrcp.pop %v2971
    %v2998 = vrcp.pop %v2974
    %v2999 = vrcp.pop %v2977
    %v3000 = vrcp.pop %v2980
    %v3001 = vrcp.pop %v2983
    %v3002 = vrcp.pop %v2986
    %v3003 = vmul.f32 %v2922, %v2987
    %v3004 = vmul.f32 %v2923, %v2988
    %v3005 = vmul.f32 %v2924, %v2989
    %v3006 = vmul.f32 %v2925, %v2990
    %v3007 = vmul.f32 %v2926, %v2991
    %v3008 = vmul.f32 %v2927, %v2992
    %v3009 = vmul.f32 %v2928, %v2993
    %v3010 = vmul.f32 %v2929, %v2994
    %v3011 = vmul.f32 %v2930, %v2995
    %v3012 = vmul.f32 %v2931, %v2996
    %v3013 = vmul.f32 %v2932, %v2997
    %v3014 = vmul.f32 %v2933, %v2998
    %v3015 = vmul.f32 %v2934, %v2999
    %v3016 = vmul.f32 %v2935, %v3000
    %v3017 = vmul.f32 %v2936, %v3001
    %v3018 = vmul.f32 %v2937, %v3002
    %3035 = vrot.lane.b32.xlu0 %v3003, 112
    %v3036 = vpop.permute.xlu0 %3035
    %3037 = vrot.lane.b32.xlu0 %v3004, 112
    %v3038 = vpop.permute.xlu0 %3037
    %3039 = vrot.lane.b32.xlu0 %v3005, 112
    %v3040 = vpop.permute.xlu0 %3039
    %3041 = vrot.lane.b32.xlu0 %v3006, 112
    %v3042 = vpop.permute.xlu0 %3041
    %3043 = vrot.lane.b32.xlu0 %v3007, 112
    %v3044 = vpop.permute.xlu0 %3043
    %3045 = vrot.lane.b32.xlu0 %v3008, 112
    %v3046 = vpop.permute.xlu0 %3045
    %3047 = vrot.lane.b32.xlu0 %v3009, 112
    %v3048 = vpop.permute.xlu0 %3047
    %3049 = vrot.lane.b32.xlu0 %v3010, 112
    %v3050 = vpop.permute.xlu0 %3049
    %3051 = vrot.lane.b32.xlu0 %v3011, 112
    %v3052 = vpop.permute.xlu0 %3051
    %3053 = vrot.lane.b32.xlu0 %v3012, 112
    %v3054 = vpop.permute.xlu0 %3053
    %3055 = vrot.lane.b32.xlu0 %v3013, 112
    %v3056 = vpop.permute.xlu0 %3055
    %3057 = vrot.lane.b32.xlu0 %v3014, 112
    %v3058 = vpop.permute.xlu0 %3057
    %3059 = vrot.lane.b32.xlu0 %v3015, 112
    %v3060 = vpop.permute.xlu0 %3059
    %3061 = vrot.lane.b32.xlu0 %v3016, 112
    %v3062 = vpop.permute.xlu0 %3061
    %3063 = vrot.lane.b32.xlu0 %v3017, 112
    %v3064 = vpop.permute.xlu0 %3063
    %3065 = vrot.lane.b32.xlu0 %v3018, 112
    %v3066 = vpop.permute.xlu0 %3065
    %vm3083 = vcmask 1040256
    %3084 = vst.msk [vmem:[%s12] sm:$0xff] %vm3083, %v3036
    %3085 = vst.msk [vmem:[%s12 + $0x8] sm:$0xff] %vm3083, %v3038
    %3086 = vst.msk [vmem:[%s12 + $0x10] sm:$0xff] %vm3083, %v3040
    %3087 = vst.msk [vmem:[%s12 + $0x18] sm:$0xff] %vm3083, %v3042
    %3088 = vst.msk [vmem:[%s12 + $0x20] sm:$0xff] %vm3083, %v3044
    %3089 = vst.msk [vmem:[%s12 + $0x28] sm:$0xff] %vm3083, %v3046
    %3090 = vst.msk [vmem:[%s12 + $0x30] sm:$0xff] %vm3083, %v3048
    %3091 = vst.msk [vmem:[%s12 + $0x38] sm:$0xff] %vm3083, %v3050
    %3092 = vst.msk [vmem:[%s12 + $0x40] sm:$0xff] %vm3083, %v3052
    %3093 = vst.msk [vmem:[%s12 + $0x48] sm:$0xff] %vm3083, %v3054
    %3094 = vst.msk [vmem:[%s12 + $0x50] sm:$0xff] %vm3083, %v3056
    %3095 = vst.msk [vmem:[%s12 + $0x58] sm:$0xff] %vm3083, %v3058
    %3096 = vst.msk [vmem:[%s12 + $0x60] sm:$0xff] %vm3083, %v3060
    %3097 = vst.msk [vmem:[%s12 + $0x68] sm:$0xff] %vm3083, %v3062
    %3098 = vst.msk [vmem:[%s12 + $0x70] sm:$0xff] %vm3083, %v3064
    %3099 = vst.msk [vmem:[%s12 + $0x78] sm:$0xff] %vm3083, %v3066
    %vm3100 = vcmask 1048568
    %3101 = vst.msk [vmem:[%s12] sm:$0xff] %vm3100, 0.0
    %3102 = vst.msk [vmem:[%s12 + $0x8] sm:$0xff] %vm3100, 0.0
    %3103 = vst.msk [vmem:[%s12 + $0x10] sm:$0xff] %vm3100, 0.0
    %3104 = vst.msk [vmem:[%s12 + $0x18] sm:$0xff] %vm3100, 0.0
    %3105 = vst.msk [vmem:[%s12 + $0x20] sm:$0xff] %vm3100, 0.0
    %3106 = vst.msk [vmem:[%s12 + $0x28] sm:$0xff] %vm3100, 0.0
    %3107 = vst.msk [vmem:[%s12 + $0x30] sm:$0xff] %vm3100, 0.0
    %3108 = vst.msk [vmem:[%s12 + $0x38] sm:$0xff] %vm3100, 0.0
    %3109 = vst.msk [vmem:[%s12 + $0x40] sm:$0xff] %vm3100, 0.0
    %3110 = vst.msk [vmem:[%s12 + $0x48] sm:$0xff] %vm3100, 0.0
    %3111 = vst.msk [vmem:[%s12 + $0x50] sm:$0xff] %vm3100, 0.0
    %3112 = vst.msk [vmem:[%s12 + $0x58] sm:$0xff] %vm3100, 0.0
    %3113 = vst.msk [vmem:[%s12 + $0x60] sm:$0xff] %vm3100, 0.0
    %3114 = vst.msk [vmem:[%s12 + $0x68] sm:$0xff] %vm3100, 0.0
    %3115 = vst.msk [vmem:[%s12 + $0x70] sm:$0xff] %vm3100, 0.0
    %3116 = vst.msk [vmem:[%s12 + $0x78] sm:$0xff] %vm3100, 0.0
    // Predicated region
    $region50: #{vgae_forward.1} parent=1 // pred_check
      _
    $region51: #{vgae_forward.1} parent=1 // pred_check_branch
      %3118 = sbr.rel (0) target = $region53
    $region52: #{vgae_forward.1} parent=1 // pred_region
      _
    $region53: #{vgae_forward.1} parent=1 // pred_fallthru
      _
    // Predicated region
    $region54: #{vgae_forward.1} parent=1 // pred_check
      _
    $region55: #{vgae_forward.1} parent=1 // pred_check_branch
      %3120 = sbr.rel (0) target = $region57
    $region56: #{vgae_forward.1} parent=1 // pred_region
      %s3122 = ssub.s32 2048, 2048
      %3123 = vsyncadd [#allocation3], %s3122
      %s3124 = sshll.u32 [#allocation2], 4
      %s3125 = int_to_ptr.vmem [resolvable:$true] %s3124
      %3130 = dma.vmem_to_hbm [thread:$0]  %s3125, 2048, %s13, [#allocation3], 128, 128, 8
    $region57: #{vgae_forward.1} parent=1 // pred_fallthru
      _
    // Predicated region
    $region58: #{vgae_forward.1} parent=1 // pred_check
      _
    $region59: #{vgae_forward.1} parent=1 // pred_check_branch
      %3132 = sbr.rel (0) target = $region61
    $region60: #{vgae_forward.1} parent=1 // pred_region
      _
    $region61: #{vgae_forward.1} parent=1 // pred_fallthru
      _
    // Predicated region
    $region62: #{vgae_forward.1} parent=1 // pred_check
      _
    $region63: #{vgae_forward.1} parent=1 // pred_check_branch
      %3134 = sbr.rel (0) target = $region65
    $region64: #{vgae_forward.1} parent=1 // pred_region
      _
    $region65: #{vgae_forward.1} parent=1 // pred_fallthru
      _
    // Predicated region
    $region66: #{vgae_forward.1} parent=1 // pred_check
      _
    $region67: #{vgae_forward.1} parent=1 // pred_check_branch
      %3136 = sbr.rel (0) target = $region69
    $region68: #{vgae_forward.1} parent=1 // pred_region
      %3137 = dma.done [#allocation3], 2048
    $region69: #{vgae_forward.1} parent=1 // pred_fallthru
      _
    // Predicated region
    $region70: #{vgae_forward.1} parent=1 // pred_check
      _
    $region71: #{vgae_forward.1} parent=1 // pred_check_branch
      %3139 = sbr.rel (0) target = $region73
    $region72: #{vgae_forward.1} parent=1 // pred_region
      _
    $region73: #{vgae_forward.1} parent=1 // pred_fallthru
      _
    %3140 = vsyncpa [#allocation3], 1

</llo_original>
